<compile_context>
chip_gen: v7x
topology: tpu7x:2x2x1
jax: 0.10.0
libtpu: 0.0.40
codegen_flags: <defaults>
</compile_context>

<pallas_src>
import numpy as np
import jax
import jax.numpy as jnp
from jax import lax
from jax.experimental import pallas as pl
from jax.experimental.pallas import tpu as pltpu


# ----------------------------------------------------------------------------
# Generic tiled matmul (+ optional bias, optional ReLU) Pallas kernel
# ----------------------------------------------------------------------------
def _mm_multi(a_ref, b_ref, bias_ref, o_ref, acc_ref, relu):
    """K-tiled accumulator variant (grid = (i, j, k), k innermost)."""
    k = pl.program_id(2)

    @pl.when(k == 0)
    def _init():
        acc_ref[...] = jnp.zeros_like(acc_ref)

    acc_ref[...] += jnp.dot(a_ref[...], b_ref[...],
                            preferred_element_type=jnp.float32)

    @pl.when(k == pl.num_programs(2) - 1)
    def _fin():
        r = acc_ref[...]
        if bias_ref is not None:
            r = r + bias_ref[...]
        if relu:
            r = jnp.maximum(r, 0.0)
        o_ref[...] = r.astype(o_ref.dtype)


def _mm_single(a_ref, b_ref, bias_ref, o_ref, relu):
    """Single K step: no scratch accumulator, write straight to the output tile."""
    r = jnp.dot(a_ref[...], b_ref[...], preferred_element_type=jnp.float32)
    if bias_ref is not None:
        r = r + bias_ref[...]
    if relu:
        r = jnp.maximum(r, 0.0)
    o_ref[...] = r.astype(o_ref.dtype)


def _make_mm_kernel(relu, has_bias, multi_k):
    if multi_k:
        if has_bias:
            def kernel(a_ref, b_ref, bias_ref, o_ref, acc_ref):
                _mm_multi(a_ref, b_ref, bias_ref, o_ref, acc_ref, relu)
        else:
            def kernel(a_ref, b_ref, o_ref, acc_ref):
                _mm_multi(a_ref, b_ref, None, o_ref, acc_ref, relu)
    else:
        if has_bias:
            def kernel(a_ref, b_ref, bias_ref, o_ref):
                _mm_single(a_ref, b_ref, bias_ref, o_ref, relu)
        else:
            def kernel(a_ref, b_ref, o_ref):
                _mm_single(a_ref, b_ref, None, o_ref, relu)
    return kernel


def _pick_tile(dim, cap, align):
    """Largest tile <= cap that divides `dim` and is `align`-aligned.
    Falls back to the full dim (always a legal block shape)."""
    if dim <= cap:
        return dim
    t = (cap // align) * align
    while t >= align:
        if dim % t == 0:
            return t
        t -= align
    return dim


def matmul_bias(a, b, bias=None, relu=False, *, tm_cap=256, tn_cap=512, tk_cap=4096):
    """C = relu?(A @ B [+ bias]). A:(M,K) B:(K,N) bias:(N,) -> (M,N), f32."""
    a = a.astype(jnp.float32)
    b = b.astype(jnp.float32)
    M, K = a.shape
    K2, N = b.shape
    assert K == K2
    has_bias = bias is not None

    tm = _pick_tile(M, tm_cap, 8)
    tn = _pick_tile(N, tn_cap, 128)
    tk = _pick_tile(K, tk_cap, 128)
    nm, nn, nk = M // tm, N // tn, K // tk
    multi_k = nk > 1

    kernel = _make_mm_kernel(relu, has_bias, multi_k)

    if multi_k:
        grid = (nm, nn, nk)
        a_spec = pl.BlockSpec((tm, tk), lambda i, j, k: (i, k))
        b_spec = pl.BlockSpec((tk, tn), lambda i, j, k: (k, j))
        bias_spec = pl.BlockSpec((1, tn), lambda i, j, k: (0, j))
        o_spec = pl.BlockSpec((tm, tn), lambda i, j, k: (i, j))
        scratch = [pltpu.VMEM((tm, tn), jnp.float32)]
        dims = ("parallel", "parallel", "arbitrary")
    else:
        grid = (nm, nn)
        a_spec = pl.BlockSpec((tm, tk), lambda i, j: (i, 0))
        b_spec = pl.BlockSpec((tk, tn), lambda i, j: (0, j))
        bias_spec = pl.BlockSpec((1, tn), lambda i, j: (0, j))
        o_spec = pl.BlockSpec((tm, tn), lambda i, j: (i, j))
        scratch = []
        dims = ("parallel", "parallel")

    operands = [a, b]
    in_specs = [a_spec, b_spec]
    if has_bias:
        operands.append(bias.reshape(1, N).astype(jnp.float32))
        in_specs.append(bias_spec)

    # Double-buffered tile footprint + headroom, capped below v7x's 64 MiB VMEM.
    footprint = 4 * (2 * tm * tk + 2 * tk * tn + 2 * tm * tn
                     + (2 * 8 * tn if has_bias else 0)
                     + (tm * tn if multi_k else 0))
    vmem_limit = int(min(footprint + (16 << 20), 48 << 20))

    return pl.pallas_call(
        kernel,
        out_shape=jax.ShapeDtypeStruct((M, N), jnp.float32),
        grid_spec=pltpu.PrefetchScalarGridSpec(
            num_scalar_prefetch=0,
            grid=grid,
            in_specs=in_specs,
            out_specs=o_spec,
            scratch_shapes=scratch,
        ),
        compiler_params=pltpu.CompilerParams(
            dimension_semantics=dims,
            vmem_limit_bytes=vmem_limit,
        ),
    )(*operands)


# ----------------------------------------------------------------------------
# Bilinear (align_corners=True) interpolation matrix
# ----------------------------------------------------------------------------
def bilinear_matrix(n_in, n_out):
    if n_in == 1:
        return jnp.ones((n_out, 1), jnp.float32)
    A = np.zeros((n_out, n_in), np.float32)
    scale = (n_in - 1) / (n_out - 1)
    for o in range(n_out):
        s = o * scale
        i0 = min(int(np.floor(s)), n_in - 2)
        f = s - i0
        A[o, i0] += 1.0 - f
        A[o, i0 + 1] += f
    return jnp.asarray(A)


# ----------------------------------------------------------------------------
# HEN decoder forward (everything after the backbones)
# ----------------------------------------------------------------------------
def hen_decoder(x_resnet, x_vit, params, out_channels):
    """x_resnet: (B,2048,H,W) NCHW.  x_vit: (B,768).  Returns (B,out,8H,8W) NCHW."""
    B, C_res, H, W = x_resnet.shape
    C_vit = x_vit.shape[1]
    C_in = C_res + C_vit  # 2816

    # F.interpolate of a (B,768,1,1) map to (H,W) with align_corners=True == broadcast.
    xr = jnp.transpose(x_resnet, (0, 2, 3, 1))                      # NHWC (B,H,W,2048)
    xv = jnp.broadcast_to(x_vit[:, None, None, :], (B, H, W, C_vit))
    x = jnp.concatenate([xr, xv], axis=-1)                          # (B,H,W,2816)

    # ---- Conv2d(2816, 512, 3, padding=1) + ReLU via im2col + tiled matmul ----
    # K axis tiles at 2816 => one (kh,kw) tap per K step; tn=256 gives grid (.,2,9)
    # so the parallel j axis can split across v7x's two TensorCores.
    xp = jnp.pad(x, ((0, 0), (1, 1), (1, 1), (0, 0)))
    patches = jnp.stack(
        [xp[:, kh:kh + H, kw:kw + W, :] for kh in range(3) for kw in range(3)],
        axis=3,
    ).reshape(B * H * W, 9 * C_in)
    w1f = jnp.transpose(params["w1"], (2, 3, 1, 0)).reshape(9 * C_in, 512)
    h1 = matmul_bias(patches, w1f, params["b1"], relu=True, tn_cap=256)  # (BHW, 512)

    # ---- ConvTranspose2d(512, 256, 2, stride=2) + ReLU (non-overlapping) ----
    w2f = params["w2"].reshape(512, 256 * 4)                        # cols = (co, di, dj)
    b2f = jnp.repeat(params["b2"], 4)
    h2 = matmul_bias(h1, w2f, b2f, relu=True)                       # (BHW, 1024)
    H2, W2 = 2 * H, 2 * W
    h2 = h2.reshape(B, H, W, 256, 2, 2)
    h2 = jnp.transpose(h2, (0, 1, 4, 2, 5, 3)).reshape(B, H2, W2, 256)

    # ---- Conv2d(256, out_channels, 1) BEFORE the upsample ----
    # (1x1 conv and bilinear upsample are both linear and commute exactly; the
    #  interpolation weights sum to 1 per output pixel so the bias commutes too.)
    w3f = params["w3"].reshape(out_channels, 256).T                 # (256, out)
    z = matmul_bias(h2.reshape(B * H2 * W2, 256), w3f, params["b3"])  # (B*H2*W2, out)
    z = z.reshape(B, H2, W2, out_channels)

    # ---- Upsample(scale_factor=4, bilinear, align_corners=True) on `out` channels ----
    Hout, Wout = 4 * H2, 4 * W2
    Ah = bilinear_matrix(H2, Hout)                                  # (Hout, H2)
    Aw = bilinear_matrix(W2, Wout)                                  # (Wout, W2)

    zh = jnp.transpose(z, (1, 0, 2, 3)).reshape(H2, B * W2 * out_channels)
    t = matmul_bias(Ah, zh)                                         # (Hout, B*W2*out)
    t = t.reshape(Hout, B, W2, out_channels)
    tw = jnp.transpose(t, (2, 1, 0, 3)).reshape(W2, B * Hout * out_channels)
    u = matmul_bias(Aw, tw)                                         # (Wout, B*Hout*out)
    u = u.reshape(Wout, B, Hout, out_channels)
    return jnp.transpose(u, (1, 3, 2, 0))                           # NCHW (B,out,Hout,Wout)


# ----------------------------------------------------------------------------
# Independent pure-JAX reference (original op order: upsample BEFORE 1x1 conv)
# ----------------------------------------------------------------------------
def _upsample_bilinear_align_corners(x, scale):
    B, C, h, w = x.shape
    H, W = h * scale, w * scale

    def coords(n_in, n_out):
        s = jnp.arange(n_out, dtype=jnp.float32) * ((n_in - 1) / (n_out - 1))
        i0 = jnp.clip(jnp.floor(s).astype(jnp.int32), 0, n_in - 2)
        f = s - i0.astype(jnp.float32)
        return i0, f

    h0, fh = coords(h, H)
    w0, fw = coords(w, W)
    rows0 = x[:, :, h0, :]
    rows1 = x[:, :, jnp.minimum(h0 + 1, h - 1), :]
    fh_ = fh[None, None, :, None]
    xr = rows0 * (1.0 - fh_) + rows1 * fh_
    cols0 = xr[:, :, :, w0]
    cols1 = xr[:, :, :, jnp.minimum(w0 + 1, w - 1)]
    fw_ = fw[None, None, None, :]
    return cols0 * (1.0 - fw_) + cols1 * fw_


def hen_decoder_reference(x_resnet, x_vit, params, out_channels):
    B, _, H, W = x_resnet.shape
    xv = jnp.broadcast_to(x_vit[:, :, None, None], (B, x_vit.shape[1], H, W))
    x = jnp.concatenate([x_resnet, xv], axis=1)                     # NCHW
    y = lax.conv_general_dilated(
        x, params["w1"], window_strides=(1, 1), padding=((1, 1), (1, 1)),
        dimension_numbers=("NCHW", "OIHW", "NCHW"),
        precision=lax.Precision.HIGHEST)
    y = jnp.maximum(y + params["b1"][None, :, None, None], 0.0)
    # ConvTranspose2d(512,256,2,stride=2): non-overlapping 2x2 scatter.
    t = jnp.einsum("bchw,cdij->bdhiwj", y, params["w2"],
                   precision=lax.Precision.HIGHEST)
    t = t.reshape(B, 256, 2 * H, 2 * W) + params["b2"][None, :, None, None]
    t = jnp.maximum(t, 0.0)
    u = _upsample_bilinear_align_corners(t, 4)                      # (B,256,8H,8W)
    w3 = params["w3"].reshape(out_channels, 256)
    out = jnp.einsum("bchw,oc->bohw", u, w3, precision=lax.Precision.HIGHEST)
    return out + params["b3"][None, :, None, None]


# ----------------------------------------------------------------------------
# Deterministic parameter init (shapes from the PyTorch module)
# ----------------------------------------------------------------------------
def init_params(key, out_channels):
    ks = jax.random.split(key, 6)
    return {
        "w1": 0.01 * jax.random.normal(ks[0], (512, 2048 + 768, 3, 3), jnp.float32),
        "b1": 0.01 * jax.random.normal(ks[1], (512,), jnp.float32),
        "w2": 0.02 * jax.random.normal(ks[2], (512, 256, 2, 2), jnp.float32),
        "b2": 0.01 * jax.random.normal(ks[3], (256,), jnp.float32),
        "w3": 0.02 * jax.random.normal(ks[4], (out_channels, 256, 1, 1), jnp.float32),
        "b3": 0.01 * jax.random.normal(ks[5], (out_channels,), jnp.float32),
    }


if __name__ == "__main__":
    out_channels = 8
    key = jax.random.PRNGKey(0)
    k_par, k_x, k_res, k_vit = jax.random.split(key, 4)

    params = init_params(k_par, out_channels)

    B, Hin, Win = 2, 32, 32
    H, W = Hin // 8, Win // 8  # DeepLabV3-ResNet50 backbone output stride 8

    # Module input (backbones not translated; see TODO at top).
    x = jax.random.normal(k_x, (B, 3, Hin, Win), jnp.float32)
    # Synthetic stand-ins for the pretrained backbone outputs.
    x_resnet = jax.random.normal(k_res, (B, 2048, H, W), jnp.float32)
    x_vit = jax.random.normal(k_vit, (B, 768), jnp.float32)

    run = jax.jit(lambda xr, xv, p: hen_decoder(xr, xv, p, out_channels))
    out = jax.block_until_ready(run(x_resnet, x_vit, params))

    ref_fn = jax.jit(lambda xr, xv, p: hen_decoder_reference(xr, xv, p, out_channels))
    ref = jax.block_until_ready(ref_fn(x_resnet, x_vit, params))

    assert out.shape == (B, out_channels, Hin, Win), out.shape
    assert bool(jnp.all(jnp.isfinite(out)))
    np.testing.assert_allclose(np.asarray(out), np.asarray(ref), rtol=5e-3, atol=5e-3)

    print("KERNEL_OK")
</pallas_src>

<mosaic_0001>
module attributes {stable_mosaic.version = 11 : i64} {
  func.func private @main(%arg0: i32) attributes {dimension_semantics = [#tpu.dimension_semantics<core_parallel>], iteration_bounds = array<i64: 2>, tpu.core_type = #tpu.core_type<sc_scalar_subcore>, window_params = []} {
    return
  }
}

module attributes {stable_mosaic.version = 11 : i64} {
  func.func private @main(%arg0: i32) attributes {dimension_semantics = [#tpu.dimension_semantics<core_parallel>], iteration_bounds = array<i64: 2>, tpu.core_type = #tpu.core_type<sc_scalar_subcore>, window_params = []} {
    return
  }
}

module attributes {stable_mosaic.version = 11 : i64} {
  func.func @kernel(%arg0: i32, %arg1: i32, %arg2: i32, %arg3: memref<32x2816xf32, #tpu.memory_space<vmem>>, %arg4: memref<2816x256xf32, #tpu.memory_space<vmem>>, %arg5: memref<1x256xf32, #tpu.memory_space<vmem>>, %arg6: memref<32x256xf32, #tpu.memory_space<vmem>>, %arg7: memref<32x256xf32, #tpu.memory_space<vmem>>) attributes {dimension_semantics = [#tpu.dimension_semantics<parallel>, #tpu.dimension_semantics<parallel>, #tpu.dimension_semantics<arbitrary>], iteration_bounds = array<i64: 1, 2, 9>, scalar_prefetch = 0 : i64, scratch_operands = 1 : i64, tpu.core_type = #tpu.core_type<tc>, window_params = [{transform_indices = @transform_0, window_bounds = array<i64: 32, 2816>}, {transform_indices = @transform_1, window_bounds = array<i64: 2816, 256>}, {transform_indices = @transform_2, window_bounds = array<i64: 1, 256>}, {transform_indices = @transform_3, window_bounds = array<i64: 32, 256>}]} {
    %c0_i32 = arith.constant 0 : i32
    %0 = arith.cmpi eq, %arg2, %c0_i32 : i32
    %1 = arith.extui %0 : i1 to i32
    %c0_i32_0 = arith.constant 0 : i32
    %2 = arith.cmpi ne, %1, %c0_i32_0 : i32
    scf.if %2 {
      %cst_9 = arith.constant 0.000000e+00 : f32
      %12 = vector.broadcast %cst_9 : f32 to vector<32x256xf32>
      %c0_10 = arith.constant 0 : index
      %c0_11 = arith.constant 0 : index
      %13 = vector.load %arg7[%c0_10, %c0_11] : memref<32x256xf32, #tpu.memory_space<vmem>>, vector<32x256xf32>
      tpu.vector_store %arg7[%c0_10, %c0_11], %12 {strides = array<i32>} : memref<32x256xf32, #tpu.memory_space<vmem>>, vector<32x256xf32>,
    } else {
    }
    %c0 = arith.constant 0 : index
    %c0_1 = arith.constant 0 : index
    %3 = vector.load %arg7[%c0, %c0_1] : memref<32x256xf32, #tpu.memory_space<vmem>>, vector<32x256xf32>
    %c0_2 = arith.constant 0 : index
    %c0_3 = arith.constant 0 : index
    %4 = vector.load %arg3[%c0_2, %c0_3] : memref<32x2816xf32, #tpu.memory_space<vmem>>, vector<32x2816xf32>
    %c0_4 = arith.constant 0 : index
    %c0_5 = arith.constant 0 : index
    %5 = vector.load %arg4[%c0_4, %c0_5] : memref<2816x256xf32, #tpu.memory_space<vmem>>, vector<2816x256xf32>
    %cst = arith.constant dense<0.000000e+00> : vector<32x256xf32>
    %6 = tpu.matmul %4, %5, %cst {dimension_numbers = #tpu.dot_dimension_numbers<[1], [0], [0], [1], [0, 0, 1, 1], [], []>} : vector<32x2816xf32>, vector<2816x256xf32>, vector<32x256xf32> -> vector<32x256xf32>
    %7 = arith.addf %3, %6 : vector<32x256xf32>
    %c0_6 = arith.constant 0 : index
    %c0_7 = arith.constant 0 : index
    %8 = vector.load %arg7[%c0_6, %c0_7] : memref<32x256xf32, #tpu.memory_space<vmem>>, vector<32x256xf32>
    tpu.vector_store %arg7[%c0_6, %c0_7], %7 {strides = array<i32>} : memref<32x256xf32, #tpu.memory_space<vmem>>, vector<32x256xf32>,
    %c8_i32 = arith.constant 8 : i32
    %9 = arith.cmpi eq, %arg2, %c8_i32 : i32
    %10 = arith.extui %9 : i1 to i32
    %c0_i32_8 = arith.constant 0 : i32
    %11 = arith.cmpi ne, %10, %c0_i32_8 : i32
    scf.if %11 {
      %c0_9 = arith.constant 0 : index
      %c0_10 = arith.constant 0 : index
      %12 = vector.load %arg7[%c0_9, %c0_10] : memref<32x256xf32, #tpu.memory_space<vmem>>, vector<32x256xf32>
      %c0_11 = arith.constant 0 : index
      %c0_12 = arith.constant 0 : index
      %13 = vector.load %arg5[%c0_11, %c0_12] : memref<1x256xf32, #tpu.memory_space<vmem>>, vector<1x256xf32>
      %14 = vector.broadcast %13 : vector<1x256xf32> to vector<32x256xf32>
      %15 = arith.addf %12, %14 : vector<32x256xf32>
      %cst_13 = arith.constant 0.000000e+00 : f32
      %16 = vector.broadcast %cst_13 : f32 to vector<32x256xf32>
      %17 = arith.maximumf %15, %16 : vector<32x256xf32>
      %c0_14 = arith.constant 0 : index
      %c0_15 = arith.constant 0 : index
      %18 = vector.load %arg6[%c0_14, %c0_15] : memref<32x256xf32, #tpu.memory_space<vmem>>, vector<32x256xf32>
      tpu.vector_store %arg6[%c0_14, %c0_15], %17 {strides = array<i32>} : memref<32x256xf32, #tpu.memory_space<vmem>>, vector<32x256xf32>,
    } else {
    }
    return
  }
  func.func @transform_0(%arg0: i32, %arg1: i32, %arg2: i32) -> (i32, i32) {
    %c0_i32 = arith.constant 0 : i32
    return %arg0, %arg2 : i32, i32
  }
  func.func @transform_1(%arg0: i32, %arg1: i32, %arg2: i32) -> (i32, i32) {
    %c0_i32 = arith.constant 0 : i32
    return %arg2, %arg1 : i32, i32
  }
  func.func @transform_2(%arg0: i32, %arg1: i32, %arg2: i32) -> (i32, i32) {
    %c0_i32 = arith.constant 0 : i32
    %c0_i32_0 = arith.constant 0 : i32
    return %c0_i32, %arg1 : i32, i32
  }
  func.func @transform_3(%arg0: i32, %arg1: i32, %arg2: i32) -> (i32, i32) {
    %c0_i32 = arith.constant 0 : i32
    return %arg0, %arg1 : i32, i32
  }
}

module attributes {stable_mosaic.version = 11 : i64} {
  func.func @kernel(%arg0: i32, %arg1: i32, %arg2: memref<32x512xf32, #tpu.memory_space<vmem>>, %arg3: memref<512x512xf32, #tpu.memory_space<vmem>>, %arg4: memref<1x512xf32, #tpu.memory_space<vmem>>, %arg5: memref<32x512xf32, #tpu.memory_space<vmem>>) attributes {dimension_semantics = [#tpu.dimension_semantics<parallel>, #tpu.dimension_semantics<parallel>], iteration_bounds = array<i64: 1, 2>, scalar_prefetch = 0 : i64, scratch_operands = 0 : i64, tpu.core_type = #tpu.core_type<tc>, window_params = [{transform_indices = @transform_0, window_bounds = array<i64: 32, 512>}, {transform_indices = @transform_1, window_bounds = array<i64: 512, 512>}, {transform_indices = @transform_2, window_bounds = array<i64: 1, 512>}, {transform_indices = @transform_3, window_bounds = array<i64: 32, 512>}]} {
    %c0 = arith.constant 0 : index
    %c0_0 = arith.constant 0 : index
    %0 = vector.load %arg2[%c0, %c0_0] : memref<32x512xf32, #tpu.memory_space<vmem>>, vector<32x512xf32>
    %c0_1 = arith.constant 0 : index
    %c0_2 = arith.constant 0 : index
    %1 = vector.load %arg3[%c0_1, %c0_2] : memref<512x512xf32, #tpu.memory_space<vmem>>, vector<512x512xf32>
    %cst = arith.constant dense<0.000000e+00> : vector<32x512xf32>
    %2 = tpu.matmul %0, %1, %cst {dimension_numbers = #tpu.dot_dimension_numbers<[1], [0], [0], [1], [0, 0, 1, 1], [], []>} : vector<32x512xf32>, vector<512x512xf32>, vector<32x512xf32> -> vector<32x512xf32>
    %c0_3 = arith.constant 0 : index
    %c0_4 = arith.constant 0 : index
    %3 = vector.load %arg4[%c0_3, %c0_4] : memref<1x512xf32, #tpu.memory_space<vmem>>, vector<1x512xf32>
    %4 = vector.broadcast %3 : vector<1x512xf32> to vector<32x512xf32>
    %5 = arith.addf %2, %4 : vector<32x512xf32>
    %cst_5 = arith.constant 0.000000e+00 : f32
    %6 = vector.broadcast %cst_5 : f32 to vector<32x512xf32>
    %7 = arith.maximumf %5, %6 : vector<32x512xf32>
    %c0_6 = arith.constant 0 : index
    %c0_7 = arith.constant 0 : index
    %8 = vector.load %arg5[%c0_6, %c0_7] : memref<32x512xf32, #tpu.memory_space<vmem>>, vector<32x512xf32>
    tpu.vector_store %arg5[%c0_6, %c0_7], %7 {strides = array<i32>} : memref<32x512xf32, #tpu.memory_space<vmem>>, vector<32x512xf32>,
    return
  }
  func.func @transform_0(%arg0: i32, %arg1: i32) -> (i32, i32) {
    %c0_i32 = arith.constant 0 : i32
    %c0_i32_0 = arith.constant 0 : i32
    return %arg0, %c0_i32 : i32, i32
  }
  func.func @transform_1(%arg0: i32, %arg1: i32) -> (i32, i32) {
    %c0_i32 = arith.constant 0 : i32
    %c0_i32_0 = arith.constant 0 : i32
    return %c0_i32, %arg1 : i32, i32
  }
  func.func @transform_2(%arg0: i32, %arg1: i32) -> (i32, i32) {
    %c0_i32 = arith.constant 0 : i32
    %c0_i32_0 = arith.constant 0 : i32
    return %c0_i32, %arg1 : i32, i32
  }
  func.func @transform_3(%arg0: i32, %arg1: i32) -> (i32, i32) {
    %c0_i32 = arith.constant 0 : i32
    return %arg0, %arg1 : i32, i32
  }
}

module attributes {stable_mosaic.version = 11 : i64} {
  func.func @kernel(%arg0: i32, %arg1: i32, %arg2: memref<128x256xf32, #tpu.memory_space<vmem>>, %arg3: memref<256x8xf32, #tpu.memory_space<vmem>>, %arg4: memref<1x8xf32, #tpu.memory_space<vmem>>, %arg5: memref<128x8xf32, #tpu.memory_space<vmem>>) attributes {dimension_semantics = [#tpu.dimension_semantics<parallel>, #tpu.dimension_semantics<parallel>], iteration_bounds = array<i64: 1, 1>, scalar_prefetch = 0 : i64, scratch_operands = 0 : i64, tpu.core_type = #tpu.core_type<tc>, window_params = [{transform_indices = @transform_0, window_bounds = array<i64: 128, 256>}, {transform_indices = @transform_1, window_bounds = array<i64: 256, 8>}, {transform_indices = @transform_2, window_bounds = array<i64: 1, 8>}, {transform_indices = @transform_3, window_bounds = array<i64: 128, 8>}]} {
    %c0 = arith.constant 0 : index
    %c0_0 = arith.constant 0 : index
    %0 = vector.load %arg2[%c0, %c0_0] : memref<128x256xf32, #tpu.memory_space<vmem>>, vector<128x256xf32>
    %c0_1 = arith.constant 0 : index
    %c0_2 = arith.constant 0 : index
    %1 = vector.load %arg3[%c0_1, %c0_2] : memref<256x8xf32, #tpu.memory_space<vmem>>, vector<256x8xf32>
    %cst = arith.constant dense<0.000000e+00> : vector<128x8xf32>
    %2 = tpu.matmul %0, %1, %cst {dimension_numbers = #tpu.dot_dimension_numbers<[1], [0], [0], [1], [0, 0, 1, 1], [], []>} : vector<128x256xf32>, vector<256x8xf32>, vector<128x8xf32> -> vector<128x8xf32>
    %c0_3 = arith.constant 0 : index
    %c0_4 = arith.constant 0 : index
    %3 = vector.load %arg4[%c0_3, %c0_4] : memref<1x8xf32, #tpu.memory_space<vmem>>, vector<1x8xf32>
    %4 = vector.broadcast %3 : vector<1x8xf32> to vector<128x8xf32>
    %5 = arith.addf %2, %4 : vector<128x8xf32>
    %c0_5 = arith.constant 0 : index
    %c0_6 = arith.constant 0 : index
    %6 = vector.load %arg5[%c0_5, %c0_6] : memref<128x8xf32, #tpu.memory_space<vmem>>, vector<128x8xf32>
    tpu.vector_store %arg5[%c0_5, %c0_6], %5 {strides = array<i32>} : memref<128x8xf32, #tpu.memory_space<vmem>>, vector<128x8xf32>,
    return
  }
  func.func @transform_0(%arg0: i32, %arg1: i32) -> (i32, i32) {
    %c0_i32 = arith.constant 0 : i32
    %c0_i32_0 = arith.constant 0 : i32
    return %arg0, %c0_i32 : i32, i32
  }
  func.func @transform_1(%arg0: i32, %arg1: i32) -> (i32, i32) {
    %c0_i32 = arith.constant 0 : i32
    %c0_i32_0 = arith.constant 0 : i32
    return %c0_i32, %arg1 : i32, i32
  }
  func.func @transform_2(%arg0: i32, %arg1: i32) -> (i32, i32) {
    %c0_i32 = arith.constant 0 : i32
    %c0_i32_0 = arith.constant 0 : i32
    return %c0_i32, %arg1 : i32, i32
  }
  func.func @transform_3(%arg0: i32, %arg1: i32) -> (i32, i32) {
    %c0_i32 = arith.constant 0 : i32
    return %arg0, %arg1 : i32, i32
  }
}

module attributes {stable_mosaic.version = 11 : i64} {
  func.func @kernel(%arg0: i32, %arg1: i32, %arg2: memref<32x8xf32, #tpu.memory_space<vmem>>, %arg3: memref<8x128xf32, #tpu.memory_space<vmem>>, %arg4: memref<32x128xf32, #tpu.memory_space<vmem>>) attributes {dimension_semantics = [#tpu.dimension_semantics<parallel>, #tpu.dimension_semantics<parallel>], iteration_bounds = array<i64: 1, 1>, scalar_prefetch = 0 : i64, scratch_operands = 0 : i64, tpu.core_type = #tpu.core_type<tc>, window_params = [{transform_indices = @transform_0, window_bounds = array<i64: 32, 8>}, {transform_indices = @transform_1, window_bounds = array<i64: 8, 128>}, {transform_indices = @transform_2, window_bounds = array<i64: 32, 128>}]} {
    %c0 = arith.constant 0 : index
    %c0_0 = arith.constant 0 : index
    %0 = vector.load %arg2[%c0, %c0_0] : memref<32x8xf32, #tpu.memory_space<vmem>>, vector<32x8xf32>
    %c0_1 = arith.constant 0 : index
    %c0_2 = arith.constant 0 : index
    %1 = vector.load %arg3[%c0_1, %c0_2] : memref<8x128xf32, #tpu.memory_space<vmem>>, vector<8x128xf32>
    %cst = arith.constant dense<0.000000e+00> : vector<32x128xf32>
    %2 = tpu.matmul %0, %1, %cst {dimension_numbers = #tpu.dot_dimension_numbers<[1], [0], [0], [1], [0, 0, 1, 1], [], []>} : vector<32x8xf32>, vector<8x128xf32>, vector<32x128xf32> -> vector<32x128xf32>
    %c0_3 = arith.constant 0 : index
    %c0_4 = arith.constant 0 : index
    %3 = vector.load %arg4[%c0_3, %c0_4] : memref<32x128xf32, #tpu.memory_space<vmem>>, vector<32x128xf32>
    tpu.vector_store %arg4[%c0_3, %c0_4], %2 {strides = array<i32>} : memref<32x128xf32, #tpu.memory_space<vmem>>, vector<32x128xf32>,
    return
  }
  func.func @transform_0(%arg0: i32, %arg1: i32) -> (i32, i32) {
    %c0_i32 = arith.constant 0 : i32
    %c0_i32_0 = arith.constant 0 : i32
    return %arg0, %c0_i32 : i32, i32
  }
  func.func @transform_1(%arg0: i32, %arg1: i32) -> (i32, i32) {
    %c0_i32 = arith.constant 0 : i32
    %c0_i32_0 = arith.constant 0 : i32
    return %c0_i32, %arg1 : i32, i32
  }
  func.func @transform_2(%arg0: i32, %arg1: i32) -> (i32, i32) {
    %c0_i32 = arith.constant 0 : i32
    return %arg0, %arg1 : i32, i32
  }
}

module attributes {stable_mosaic.version = 11 : i64} {
  func.func @kernel(%arg0: i32, %arg1: i32, %arg2: memref<32x8xf32, #tpu.memory_space<vmem>>, %arg3: memref<8x512xf32, #tpu.memory_space<vmem>>, %arg4: memref<32x512xf32, #tpu.memory_space<vmem>>) attributes {dimension_semantics = [#tpu.dimension_semantics<parallel>, #tpu.dimension_semantics<parallel>], iteration_bounds = array<i64: 1, 1>, scalar_prefetch = 0 : i64, scratch_operands = 0 : i64, tpu.core_type = #tpu.core_type<tc>, window_params = [{transform_indices = @transform_0, window_bounds = array<i64: 32, 8>}, {transform_indices = @transform_1, window_bounds = array<i64: 8, 512>}, {transform_indices = @transform_2, window_bounds = array<i64: 32, 512>}]} {
    %c0 = arith.constant 0 : index
    %c0_0 = arith.constant 0 : index
    %0 = vector.load %arg2[%c0, %c0_0] : memref<32x8xf32, #tpu.memory_space<vmem>>, vector<32x8xf32>
    %c0_1 = arith.constant 0 : index
    %c0_2 = arith.constant 0 : index
    %1 = vector.load %arg3[%c0_1, %c0_2] : memref<8x512xf32, #tpu.memory_space<vmem>>, vector<8x512xf32>
    %cst = arith.constant dense<0.000000e+00> : vector<32x512xf32>
    %2 = tpu.matmul %0, %1, %cst {dimension_numbers = #tpu.dot_dimension_numbers<[1], [0], [0], [1], [0, 0, 1, 1], [], []>} : vector<32x8xf32>, vector<8x512xf32>, vector<32x512xf32> -> vector<32x512xf32>
    %c0_3 = arith.constant 0 : index
    %c0_4 = arith.constant 0 : index
    %3 = vector.load %arg4[%c0_3, %c0_4] : memref<32x512xf32, #tpu.memory_space<vmem>>, vector<32x512xf32>
    tpu.vector_store %arg4[%c0_3, %c0_4], %2 {strides = array<i32>} : memref<32x512xf32, #tpu.memory_space<vmem>>, vector<32x512xf32>,
    return
  }
  func.func @transform_0(%arg0: i32, %arg1: i32) -> (i32, i32) {
    %c0_i32 = arith.constant 0 : i32
    %c0_i32_0 = arith.constant 0 : i32
    return %arg0, %c0_i32 : i32, i32
  }
  func.func @transform_1(%arg0: i32, %arg1: i32) -> (i32, i32) {
    %c0_i32 = arith.constant 0 : i32
    %c0_i32_0 = arith.constant 0 : i32
    return %c0_i32, %arg1 : i32, i32
  }
  func.func @transform_2(%arg0: i32, %arg1: i32) -> (i32, i32) {
    %c0_i32 = arith.constant 0 : i32
    return %arg0, %arg1 : i32, i32
  }
}

</mosaic_0001>

<llo_original>
// kernel: _lambda_.5
$region0: #{_lambda_.5}
  #allocation0 [shape = 'u32[]', space=smem, size = 0x4, offset = 0x4, fixed_abs, tag = 'smem constant byte address 0x4 - core index']
  #allocation1 [shape = 'u32[144,128]{1,0:T(1,128)}', space=vmem, size = 0x12000, scoped, tag = 'internal scratch']
  #allocation2 [shape = 'f32[32,256]{1,0:T(8,128)}', space=vmem, size = 0x8000, scoped, tag = 'scratch operand']
  %s0 = inlined_call_operand.vmem [shape: f32[32,25344], index: 0, kind: input, shape index: {}]
  %s1 = inlined_call_operand.hbm [shape: f32[25344,512], index: 1, kind: input, shape index: {}]
  %s2 = inlined_call_operand.vmem [shape: f32[1,512], index: 2, kind: input, shape index: {}]
  %s3 = inlined_call_operand.vmem [shape: f32[32,512], index: 3, kind: output, shape index: {}]
  %s4 = sld [smem:[#allocation0]]
  $region99: #{_lambda_.5} parent=0
    _
  %s6 = ssub.s32 1, %s4
  %s7 = scalar_select 0, %s6, %s4
  $region1: #{_lambda_.5} parent=0
    #allocation3 [shape = 'u8[720896]{0}', space=vmem, size = 0xb0000, scoped, tag = 'input window, operand 0']
    #allocation4 [shape = 'u8[5767168]{0}', space=vmem, size = 0x580000, scoped, tag = 'input window, operand 1']
    #allocation5 [shape = 's32[2]{0}', space=sflag, size = 0x8, scoped, tag = 'scoped memory for _lambda_.5']
    #allocation6 [shape = 'u8[65536]{0}', space=vmem, size = 0x10000, scoped, tag = 'output window, operand 0']
    %8 = vsyncpa [#allocation5], 0
    %s9 = scalar_lea.sflag [#allocation5], 1
    %10 = vsyncpa %s9, 0
    loop: start=0, step=1, limit=20
    $region2: #{_lambda_.5} parent=1 // loop_pre_header
      _
    $region3: #{_lambda_.5} parent=1 // loop_header
      %s12 = sphi 0, %s16
      %p13 = scmp.ge.s32.totalorder %s12, 20
      %s19 = sphi 0, %s38
      %s20 = sphi 0, %s34
      %s21 = sphi 0, %s30
      %s22 = sphi 0, %s19
      %s23 = sphi 0, %s20
      %s24 = sphi 0, %s21
      %s25 = sphi 0, %s22
      %s26 = sphi 0, %s23
      %s27 = sphi 0, %s24
      %s43 = sphi 0, %s45
      %s46 = sphi 0, %s43
      %s47 = sphi 0, %s46
      %s63 = sphi 0, %s47
      %s71 = sphi 0, %s73
      %s74 = sphi 0, %s71
      %s75 = sphi 0, %s74
      %s91 = sphi 0, %s75
      %s97 = sphi 0, %s99
      %s100 = sphi 0, %s97
      %s101 = sphi 0, %s100
      %s117 = sphi 0, %s101
      %s125 = sphi 0, %s127
      %s128 = sphi 0, %s125
      %s129 = sphi 0, %s128
      %s145 = sphi 0, %s129
    $region4: #{_lambda_.5} parent=1 // loop_header_branch
      %15 = sbr.rel (%p13) target = $region8
    $region5: #{_lambda_.5} parent=1 // loop_body
      %s17 = ssub.s32 %s12, 1
      %s18 = ssub.s32 %s12, 2
      %s28 = sadd.s32 1, %s21
      %p29 = scmp.ge.s32.totalorder %s28, 9
      %s30 = scalar_select %p29, 0, %s28
      %s31 = sadd.s32 1, %s20
      %s32 = scalar_select %p29, %s31, %s20
      %p33 = scmp.ge.s32.totalorder %s32, 2
      %s34 = scalar_select %p33, 0, %s32
      %s35 = sadd.s32 1, %s19
      %s36 = scalar_select %p33, %s35, %s19
      %p37 = scmp.ge.s32.totalorder %s36, 1
      %s38 = scalar_select %p37, 0, %s36
      %s39 = ssub.s32 %s19, %s38
      %s40 = ssub.s32 %s21, %s30
      %s41 = sor.u32 %s39, %s40
      %p42 = scmp.eq.s32.totalorder %s41, 0
      %s44 = sadd.s32 %s43, 1
      %s45 = scalar_select %p42, %s43, %s44
      %p48 = pneg %p42
      %p49 = scmp.eq.s32.totalorder %s12, 17
      %p50 = por %p48, %p49
      %p51 = scmp.ne.s32.totalorder %s43, %s46
      %p52 = scmp.eq.s32.totalorder %s12, 0
      %p53 = por %p51, %p52
      %p54 = scmp.ne.s32.totalorder %s43, %s46
      %p55 = scmp.eq.s32.totalorder %s17, 17
      %p56 = por %p54, %p55
      %p57 = scmp.ne.s32.totalorder %s46, %s47
      %p58 = scmp.eq.s32.totalorder %s17, 0
      %p59 = por %p57, %p58
      %p60 = scmp.ne.s32.totalorder %s46, %s47
      %p61 = scmp.eq.s32.totalorder %s18, 17
      %p62 = por %p60, %p61
      %p64 = scmp.ne.s32.totalorder %s47, %s63
      %p65 = scmp.eq.s32.totalorder %s18, 0
      %p66 = por %p64, %p65
      %s67 = ssub.s32 %s21, %s30
      %s68 = ssub.s32 %s20, %s34
      %s69 = sor.u32 %s67, %s68
      %p70 = scmp.eq.s32.totalorder %s69, 0
      %s72 = sadd.s32 %s71, 1
      %s73 = scalar_select %p70, %s71, %s72
      %p76 = pneg %p70
      %p77 = scmp.eq.s32.totalorder %s12, 17
      %p78 = por %p76, %p77
      %p79 = scmp.ne.s32.totalorder %s71, %s74
      %p80 = scmp.eq.s32.totalorder %s12, 0
      %p81 = por %p79, %p80
      %p82 = scmp.ne.s32.totalorder %s71, %s74
      %p83 = scmp.eq.s32.totalorder %s17, 17
      %p84 = por %p82, %p83
      %p85 = scmp.ne.s32.totalorder %s74, %s75
      %p86 = scmp.eq.s32.totalorder %s17, 0
      %p87 = por %p85, %p86
      %p88 = scmp.ne.s32.totalorder %s74, %s75
      %p89 = scmp.eq.s32.totalorder %s18, 17
      %p90 = por %p88, %p89
      %p92 = scmp.ne.s32.totalorder %s75, %s91
      %p93 = scmp.eq.s32.totalorder %s18, 0
      %p94 = por %p92, %p93
      %s95 = ssub.s32 %s20, %s34
      %p96 = scmp.eq.s32.totalorder %s95, 0
      %s98 = sadd.s32 %s97, 1
      %s99 = scalar_select %p96, %s97, %s98
      %p102 = pneg %p96
      %p103 = scmp.eq.s32.totalorder %s12, 17
      %p104 = por %p102, %p103
      %p105 = scmp.ne.s32.totalorder %s97, %s100
      %p106 = scmp.eq.s32.totalorder %s12, 0
      %p107 = por %p105, %p106
      %p108 = scmp.ne.s32.totalorder %s97, %s100
      %p109 = scmp.eq.s32.totalorder %s17, 17
      %p110 = por %p108, %p109
      %p111 = scmp.ne.s32.totalorder %s100, %s101
      %p112 = scmp.eq.s32.totalorder %s17, 0
      %p113 = por %p111, %p112
      %p114 = scmp.ne.s32.totalorder %s100, %s101
      %p115 = scmp.eq.s32.totalorder %s18, 17
      %p116 = por %p114, %p115
      %p118 = scmp.ne.s32.totalorder %s101, %s117
      %p119 = scmp.eq.s32.totalorder %s18, 0
      %p120 = por %p118, %p119
      %s121 = ssub.s32 %s19, %s38
      %s122 = ssub.s32 %s20, %s34
      %s123 = sor.u32 %s121, %s122
      %p124 = scmp.eq.s32.totalorder %s123, 0
      %s126 = sadd.s32 %s125, 1
      %s127 = scalar_select %p124, %s125, %s126
      %p130 = pneg %p124
      %p131 = scmp.eq.s32.totalorder %s12, 17
      %p132 = por %p130, %p131
      %p133 = scmp.ne.s32.totalorder %s125, %s128
      %p134 = scmp.eq.s32.totalorder %s12, 0
      %p135 = por %p133, %p134
      %p136 = scmp.ne.s32.totalorder %s125, %s128
      %p137 = scmp.eq.s32.totalorder %s17, 17
      %p138 = por %p136, %p137
      %p139 = scmp.ne.s32.totalorder %s128, %s129
      %p140 = scmp.eq.s32.totalorder %s17, 0
      %p141 = por %p139, %p140
      %p142 = scmp.ne.s32.totalorder %s128, %s129
      %p143 = scmp.eq.s32.totalorder %s18, 17
      %p144 = por %p142, %p143
      %p146 = scmp.ne.s32.totalorder %s129, %s145
      %p147 = scmp.eq.s32.totalorder %s18, 0
      %p148 = por %p146, %p147
      %p149 = scmp.le.s32.totalorder 1, %s12
      %p150 = scmp.lt.s32.totalorder %s12, 19
      %p151 = pnand %p149, %p150
      %p152 = pneg %p151
      // Predicated region
      $region9: #{_lambda_.5} parent=5 // pred_check
        _
      $region10: #{_lambda_.5} parent=5 // pred_check_branch
        %154 = sbr.rel (%p151) target = $region12
      $region11: #{_lambda_.5} parent=5 // pred_region
        %s155 = ssub.s32 %s12, 1
      $region12: #{_lambda_.5} parent=5 // pred_fallthru
        _
      %p156 = scmp.lt.s32.totalorder %s12, 18
      // Predicated region
      $region13: #{_lambda_.5} parent=5 // pred_check
        %p157 = pneg %p156
      $region14: #{_lambda_.5} parent=5 // pred_check_branch
        %159 = sbr.rel (%p157) target = $region16
      $region15: #{_lambda_.5} parent=5 // pred_region
        // Predicated region
        $region17: #{_lambda_.5} parent=15 // pred_check
          %p160 = pneg %p53
        $region18: #{_lambda_.5} parent=15 // pred_check_branch
          %162 = sbr.rel (%p160) target = $region20
        $region19: #{_lambda_.5} parent=15 // pred_region
          %s163 = sand.u32 %s43, 1
          %s164 = sand.u32 %s43, 1
          %s165 = smul.addr %s164, 704
          %s166 = scalar_lea.vmem [#allocation3], %s165
          %s167 = smul.u32 4, %s19
          %s168 = smul.u32 22, %s21
          %s169 = smul.addr %s167, 198
          %s170 = sadd.s32 %s168, %s169
          %s171 = smul.addr %s170, 8
          %s172 = scalar_lea.vmem %s0, %s171
          // Predicated region
          $region21: #{_lambda_.5} parent=19 // pred_check
            _
          $region22: #{_lambda_.5} parent=19 // pred_check_branch
            %174 = sbr.rel (0) target = $region24
          $region23: #{_lambda_.5} parent=19 // pred_region
            // Predicated region
            $region25: #{_lambda_.5} parent=23 // pred_check
              _
            $region26: #{_lambda_.5} parent=23 // pred_check_branch
              %176 = sbr.rel (0) target = $region28
            $region27: #{_lambda_.5} parent=23 // pred_region
              loop: start=0, step=1, limit=1
              $region29: #{_lambda_.5} parent=27 // loop_pre_header
                _
              $region30: #{_lambda_.5} parent=27 // loop_header
                %s178 = sphi 0, %s182
                %p179 = scmp.ge.s32.totalorder %s178, 1
                %s183 = sphi %s172, %s172
                %s184 = sphi %s166, %s166
              $region31: #{_lambda_.5} parent=27 // loop_header_branch
                %181 = sbr.rel (%p179) target = $region35
              $region32: #{_lambda_.5} parent=27 // loop_body
                %v185 = vld [vmem:[%s183] sm:$0xff]
                %186 = vst [vmem:[%s184] sm:$0xff] %v185
                %v187 = vld [vmem:[%s183 + $0x8] sm:$0xff]
                %188 = vst [vmem:[%s184 + $0x8] sm:$0xff] %v187
                %v189 = vld [vmem:[%s183 + $0x10] sm:$0xff]
                %190 = vst [vmem:[%s184 + $0x10] sm:$0xff] %v189
                %v191 = vld [vmem:[%s183 + $0x18] sm:$0xff]
                %192 = vst [vmem:[%s184 + $0x18] sm:$0xff] %v191
                %v193 = vld [vmem:[%s183 + $0x20] sm:$0xff]
                %194 = vst [vmem:[%s184 + $0x20] sm:$0xff] %v193
                %v195 = vld [vmem:[%s183 + $0x28] sm:$0xff]
                %196 = vst [vmem:[%s184 + $0x28] sm:$0xff] %v195
                %v197 = vld [vmem:[%s183 + $0x30] sm:$0xff]
                %198 = vst [vmem:[%s184 + $0x30] sm:$0xff] %v197
                %v199 = vld [vmem:[%s183 + $0x38] sm:$0xff]
                %200 = vst [vmem:[%s184 + $0x38] sm:$0xff] %v199
                %v201 = vld [vmem:[%s183 + $0x40] sm:$0xff]
                %202 = vst [vmem:[%s184 + $0x40] sm:$0xff] %v201
                %v203 = vld [vmem:[%s183 + $0x48] sm:$0xff]
                %204 = vst [vmem:[%s184 + $0x48] sm:$0xff] %v203
                %v205 = vld [vmem:[%s183 + $0x50] sm:$0xff]
                %206 = vst [vmem:[%s184 + $0x50] sm:$0xff] %v205
                %v207 = vld [vmem:[%s183 + $0x58] sm:$0xff]
                %208 = vst [vmem:[%s184 + $0x58] sm:$0xff] %v207
                %v209 = vld [vmem:[%s183 + $0x60] sm:$0xff]
                %210 = vst [vmem:[%s184 + $0x60] sm:$0xff] %v209
                %v211 = vld [vmem:[%s183 + $0x68] sm:$0xff]
                %212 = vst [vmem:[%s184 + $0x68] sm:$0xff] %v211
                %v213 = vld [vmem:[%s183 + $0x70] sm:$0xff]
                %214 = vst [vmem:[%s184 + $0x70] sm:$0xff] %v213
                %v215 = vld [vmem:[%s183 + $0x78] sm:$0xff]
                %216 = vst [vmem:[%s184 + $0x78] sm:$0xff] %v215
                %v217 = vld [vmem:[%s183 + $0x80] sm:$0xff]
                %218 = vst [vmem:[%s184 + $0x80] sm:$0xff] %v217
                %v219 = vld [vmem:[%s183 + $0x88] sm:$0xff]
                %220 = vst [vmem:[%s184 + $0x88] sm:$0xff] %v219
                %v221 = vld [vmem:[%s183 + $0x90] sm:$0xff]
                %222 = vst [vmem:[%s184 + $0x90] sm:$0xff] %v221
                %v223 = vld [vmem:[%s183 + $0x98] sm:$0xff]
                %224 = vst [vmem:[%s184 + $0x98] sm:$0xff] %v223
                %v225 = vld [vmem:[%s183 + $0xa0] sm:$0xff]
                %226 = vst [vmem:[%s184 + $0xa0] sm:$0xff] %v225
                %v227 = vld [vmem:[%s183 + $0xa8] sm:$0xff]
                %228 = vst [vmem:[%s184 + $0xa8] sm:$0xff] %v227
                %v229 = vld [vmem:[%s183 + $0x630] sm:$0xff]
                %230 = vst [vmem:[%s184 + $0xb0] sm:$0xff] %v229
                %v231 = vld [vmem:[%s183 + $0x638] sm:$0xff]
                %232 = vst [vmem:[%s184 + $0xb8] sm:$0xff] %v231
                %v233 = vld [vmem:[%s183 + $0x640] sm:$0xff]
                %234 = vst [vmem:[%s184 + $0xc0] sm:$0xff] %v233
                %v235 = vld [vmem:[%s183 + $0x648] sm:$0xff]
                %236 = vst [vmem:[%s184 + $0xc8] sm:$0xff] %v235
                %v237 = vld [vmem:[%s183 + $0x650] sm:$0xff]
                %238 = vst [vmem:[%s184 + $0xd0] sm:$0xff] %v237
                %v239 = vld [vmem:[%s183 + $0x658] sm:$0xff]
                %240 = vst [vmem:[%s184 + $0xd8] sm:$0xff] %v239
                %v241 = vld [vmem:[%s183 + $0x660] sm:$0xff]
                %242 = vst [vmem:[%s184 + $0xe0] sm:$0xff] %v241
                %v243 = vld [vmem:[%s183 + $0x668] sm:$0xff]
                %244 = vst [vmem:[%s184 + $0xe8] sm:$0xff] %v243
                %v245 = vld [vmem:[%s183 + $0x670] sm:$0xff]
                %246 = vst [vmem:[%s184 + $0xf0] sm:$0xff] %v245
                %v247 = vld [vmem:[%s183 + $0x678] sm:$0xff]
                %248 = vst [vmem:[%s184 + $0xf8] sm:$0xff] %v247
                %v249 = vld [vmem:[%s183 + $0x680] sm:$0xff]
                %250 = vst [vmem:[%s184 + $0x100] sm:$0xff] %v249
                %v251 = vld [vmem:[%s183 + $0x688] sm:$0xff]
                %252 = vst [vmem:[%s184 + $0x108] sm:$0xff] %v251
                %v253 = vld [vmem:[%s183 + $0x690] sm:$0xff]
                %254 = vst [vmem:[%s184 + $0x110] sm:$0xff] %v253
                %v255 = vld [vmem:[%s183 + $0x698] sm:$0xff]
                %256 = vst [vmem:[%s184 + $0x118] sm:$0xff] %v255
                %v257 = vld [vmem:[%s183 + $0x6a0] sm:$0xff]
                %258 = vst [vmem:[%s184 + $0x120] sm:$0xff] %v257
                %v259 = vld [vmem:[%s183 + $0x6a8] sm:$0xff]
                %260 = vst [vmem:[%s184 + $0x128] sm:$0xff] %v259
                %v261 = vld [vmem:[%s183 + $0x6b0] sm:$0xff]
                %262 = vst [vmem:[%s184 + $0x130] sm:$0xff] %v261
                %v263 = vld [vmem:[%s183 + $0x6b8] sm:$0xff]
                %264 = vst [vmem:[%s184 + $0x138] sm:$0xff] %v263
                %v265 = vld [vmem:[%s183 + $0x6c0] sm:$0xff]
                %266 = vst [vmem:[%s184 + $0x140] sm:$0xff] %v265
                %v267 = vld [vmem:[%s183 + $0x6c8] sm:$0xff]
                %268 = vst [vmem:[%s184 + $0x148] sm:$0xff] %v267
                %v269 = vld [vmem:[%s183 + $0x6d0] sm:$0xff]
                %270 = vst [vmem:[%s184 + $0x150] sm:$0xff] %v269
                %v271 = vld [vmem:[%s183 + $0x6d8] sm:$0xff]
                %272 = vst [vmem:[%s184 + $0x158] sm:$0xff] %v271
                %v273 = vld [vmem:[%s183 + $0xc60] sm:$0xff]
                %274 = vst [vmem:[%s184 + $0x160] sm:$0xff] %v273
                %v275 = vld [vmem:[%s183 + $0xc68] sm:$0xff]
                %276 = vst [vmem:[%s184 + $0x168] sm:$0xff] %v275
                %v277 = vld [vmem:[%s183 + $0xc70] sm:$0xff]
                %278 = vst [vmem:[%s184 + $0x170] sm:$0xff] %v277
                %v279 = vld [vmem:[%s183 + $0xc78] sm:$0xff]
                %280 = vst [vmem:[%s184 + $0x178] sm:$0xff] %v279
                %v281 = vld [vmem:[%s183 + $0xc80] sm:$0xff]
                %282 = vst [vmem:[%s184 + $0x180] sm:$0xff] %v281
                %v283 = vld [vmem:[%s183 + $0xc88] sm:$0xff]
                %284 = vst [vmem:[%s184 + $0x188] sm:$0xff] %v283
                %v285 = vld [vmem:[%s183 + $0xc90] sm:$0xff]
                %286 = vst [vmem:[%s184 + $0x190] sm:$0xff] %v285
                %v287 = vld [vmem:[%s183 + $0xc98] sm:$0xff]
                %288 = vst [vmem:[%s184 + $0x198] sm:$0xff] %v287
                %v289 = vld [vmem:[%s183 + $0xca0] sm:$0xff]
                %290 = vst [vmem:[%s184 + $0x1a0] sm:$0xff] %v289
                %v291 = vld [vmem:[%s183 + $0xca8] sm:$0xff]
                %292 = vst [vmem:[%s184 + $0x1a8] sm:$0xff] %v291
                %v293 = vld [vmem:[%s183 + $0xcb0] sm:$0xff]
                %294 = vst [vmem:[%s184 + $0x1b0] sm:$0xff] %v293
                %v295 = vld [vmem:[%s183 + $0xcb8] sm:$0xff]
                %296 = vst [vmem:[%s184 + $0x1b8] sm:$0xff] %v295
                %v297 = vld [vmem:[%s183 + $0xcc0] sm:$0xff]
                %298 = vst [vmem:[%s184 + $0x1c0] sm:$0xff] %v297
                %v299 = vld [vmem:[%s183 + $0xcc8] sm:$0xff]
                %300 = vst [vmem:[%s184 + $0x1c8] sm:$0xff] %v299
                %v301 = vld [vmem:[%s183 + $0xcd0] sm:$0xff]
                %302 = vst [vmem:[%s184 + $0x1d0] sm:$0xff] %v301
                %v303 = vld [vmem:[%s183 + $0xcd8] sm:$0xff]
                %304 = vst [vmem:[%s184 + $0x1d8] sm:$0xff] %v303
                %v305 = vld [vmem:[%s183 + $0xce0] sm:$0xff]
                %306 = vst [vmem:[%s184 + $0x1e0] sm:$0xff] %v305
                %v307 = vld [vmem:[%s183 + $0xce8] sm:$0xff]
                %308 = vst [vmem:[%s184 + $0x1e8] sm:$0xff] %v307
                %v309 = vld [vmem:[%s183 + $0xcf0] sm:$0xff]
                %310 = vst [vmem:[%s184 + $0x1f0] sm:$0xff] %v309
                %v311 = vld [vmem:[%s183 + $0xcf8] sm:$0xff]
                %312 = vst [vmem:[%s184 + $0x1f8] sm:$0xff] %v311
                %v313 = vld [vmem:[%s183 + $0xd00] sm:$0xff]
                %314 = vst [vmem:[%s184 + $0x200] sm:$0xff] %v313
                %v315 = vld [vmem:[%s183 + $0xd08] sm:$0xff]
                %316 = vst [vmem:[%s184 + $0x208] sm:$0xff] %v315
                %v317 = vld [vmem:[%s183 + $0x1290] sm:$0xff]
                %318 = vst [vmem:[%s184 + $0x210] sm:$0xff] %v317
                %v319 = vld [vmem:[%s183 + $0x1298] sm:$0xff]
                %320 = vst [vmem:[%s184 + $0x218] sm:$0xff] %v319
                %v321 = vld [vmem:[%s183 + $0x12a0] sm:$0xff]
                %322 = vst [vmem:[%s184 + $0x220] sm:$0xff] %v321
                %v323 = vld [vmem:[%s183 + $0x12a8] sm:$0xff]
                %324 = vst [vmem:[%s184 + $0x228] sm:$0xff] %v323
                %v325 = vld [vmem:[%s183 + $0x12b0] sm:$0xff]
                %326 = vst [vmem:[%s184 + $0x230] sm:$0xff] %v325
                %v327 = vld [vmem:[%s183 + $0x12b8] sm:$0xff]
                %328 = vst [vmem:[%s184 + $0x238] sm:$0xff] %v327
                %v329 = vld [vmem:[%s183 + $0x12c0] sm:$0xff]
                %330 = vst [vmem:[%s184 + $0x240] sm:$0xff] %v329
                %v331 = vld [vmem:[%s183 + $0x12c8] sm:$0xff]
                %332 = vst [vmem:[%s184 + $0x248] sm:$0xff] %v331
                %v333 = vld [vmem:[%s183 + $0x12d0] sm:$0xff]
                %334 = vst [vmem:[%s184 + $0x250] sm:$0xff] %v333
                %v335 = vld [vmem:[%s183 + $0x12d8] sm:$0xff]
                %336 = vst [vmem:[%s184 + $0x258] sm:$0xff] %v335
                %v337 = vld [vmem:[%s183 + $0x12e0] sm:$0xff]
                %338 = vst [vmem:[%s184 + $0x260] sm:$0xff] %v337
                %v339 = vld [vmem:[%s183 + $0x12e8] sm:$0xff]
                %340 = vst [vmem:[%s184 + $0x268] sm:$0xff] %v339
                %v341 = vld [vmem:[%s183 + $0x12f0] sm:$0xff]
                %342 = vst [vmem:[%s184 + $0x270] sm:$0xff] %v341
                %v343 = vld [vmem:[%s183 + $0x12f8] sm:$0xff]
                %344 = vst [vmem:[%s184 + $0x278] sm:$0xff] %v343
                %v345 = vld [vmem:[%s183 + $0x1300] sm:$0xff]
                %346 = vst [vmem:[%s184 + $0x280] sm:$0xff] %v345
                %v347 = vld [vmem:[%s183 + $0x1308] sm:$0xff]
                %348 = vst [vmem:[%s184 + $0x288] sm:$0xff] %v347
                %v349 = vld [vmem:[%s183 + $0x1310] sm:$0xff]
                %350 = vst [vmem:[%s184 + $0x290] sm:$0xff] %v349
                %v351 = vld [vmem:[%s183 + $0x1318] sm:$0xff]
                %352 = vst [vmem:[%s184 + $0x298] sm:$0xff] %v351
                %v353 = vld [vmem:[%s183 + $0x1320] sm:$0xff]
                %354 = vst [vmem:[%s184 + $0x2a0] sm:$0xff] %v353
                %v355 = vld [vmem:[%s183 + $0x1328] sm:$0xff]
                %356 = vst [vmem:[%s184 + $0x2a8] sm:$0xff] %v355
                %v357 = vld [vmem:[%s183 + $0x1330] sm:$0xff]
                %358 = vst [vmem:[%s184 + $0x2b0] sm:$0xff] %v357
                %v359 = vld [vmem:[%s183 + $0x1338] sm:$0xff]
                %360 = vst [vmem:[%s184 + $0x2b8] sm:$0xff] %v359
              $region33: #{_lambda_.5} parent=27 // loop_footer
                %s182 = sadd.s32 1, %s178
              $region34: #{_lambda_.5} parent=27 // loop_footer_branch
                %177 = sbr.rel target = $region30
              $region35: #{_lambda_.5} parent=27 // loop_exit
                _
            $region28: #{_lambda_.5} parent=23 // pred_fallthru
              _
            // Predicated region
            $region36: #{_lambda_.5} parent=23 // pred_check
              _
            $region37: #{_lambda_.5} parent=23 // pred_check_branch
              %362 = sbr.rel target = $region39
            $region38: #{_lambda_.5} parent=23 // pred_region
              _
            $region39: #{_lambda_.5} parent=23 // pred_fallthru
              _
          $region24: #{_lambda_.5} parent=19 // pred_fallthru
            _
          %363 = vnop
        $region20: #{_lambda_.5} parent=15 // pred_fallthru
          _
        // Predicated region
        $region40: #{_lambda_.5} parent=15 // pred_check
          %p364 = pneg %p81
        $region41: #{_lambda_.5} parent=15 // pred_check_branch
          %366 = sbr.rel (%p364) target = $region43
        $region42: #{_lambda_.5} parent=15 // pred_region
          %s367 = sand.u32 %s71, 1
          %s368 = scalar_lea.sflag [#allocation5], %s367
          %s369 = sand.u32 %s71, 1
          %s370 = smul.addr %s369, 5632
          %s371 = scalar_lea.vmem [#allocation4], %s370
          %s372 = smul.u32 352, %s21
          %s373 = smul.u32 2, %s20
          %s375 = ssub.s32 90112, 90112
          %376 = vsyncadd %s368, %s375
          %s377 = smul.addr %s372, 4
          %s378 = sadd.s32 %s373, %s377
          %s379 = smul.addr %s378, 128
          %s380 = scalar_lea.hbm %s1, %s379
          %s381 = sshll.u32 %s371, 4
          %s382 = int_to_ptr.vmem [resolvable:$true] %s381
          %387 = dma.hbm_to_vmem [thread:$0]  %s380, 90112, %s382, %s368, 512, 256, 16
        $region43: #{_lambda_.5} parent=15 // pred_fallthru
          _
        // Predicated region
        $region44: #{_lambda_.5} parent=15 // pred_check
          %p388 = pneg %p107
        $region45: #{_lambda_.5} parent=15 // pred_check_branch
          %390 = sbr.rel (%p388) target = $region47
        $region46: #{_lambda_.5} parent=15 // pred_region
          %s391 = smul.u32 2, %s20
          %p392 = scmp.lt.s32.totalorder %s391, 3
          %s393 = scalar_select %p392, %s391, 3
          %s394 = scalar_lea.vmem %s2, %s393
          %s395 = smul.u32 2, %s20
        $region47: #{_lambda_.5} parent=15 // pred_fallthru
          _
      $region16: #{_lambda_.5} parent=5 // pred_fallthru
        _
      %p396 = scmp.le.s32.totalorder 1, %s12
      %p397 = scmp.lt.s32.totalorder %s12, 19
      %p398 = pnand %p396, %p397
      %p399 = pneg %p398
      // Predicated region
      $region48: #{_lambda_.5} parent=5 // pred_check
        _
      $region49: #{_lambda_.5} parent=5 // pred_check_branch
        %401 = sbr.rel (%p398) target = $region51
      $region50: #{_lambda_.5} parent=5 // pred_region
        %s402 = ssub.s32 %s12, 1
        %s403 = sand.u32 %s46, 1
        %s404 = sand.u32 %s46, 1
        %s405 = smul.addr %s404, 704
        %s406 = scalar_lea.vmem [#allocation3], %s405
        // Predicated region
        $region52: #{_lambda_.5} parent=50 // pred_check
          %p407 = pneg %p59
        $region53: #{_lambda_.5} parent=50 // pred_check_branch
          %409 = sbr.rel (%p407) target = $region55
        $region54: #{_lambda_.5} parent=50 // pred_region
          _
        $region55: #{_lambda_.5} parent=50 // pred_fallthru
          _
        %s410 = sand.u32 %s74, 1
        %s411 = scalar_lea.sflag [#allocation5], %s410
        %s412 = sand.u32 %s74, 1
        %s413 = smul.addr %s412, 5632
        %s414 = scalar_lea.vmem [#allocation4], %s413
        // Predicated region
        $region56: #{_lambda_.5} parent=50 // pred_check
          %p415 = pneg %p87
        $region57: #{_lambda_.5} parent=50 // pred_check_branch
          %417 = sbr.rel (%p415) target = $region59
        $region58: #{_lambda_.5} parent=50 // pred_region
          %418 = dma.done %s411, 90112
        $region59: #{_lambda_.5} parent=50 // pred_fallthru
          _
        %s419 = sand.u32 %s46, 1
        %s420 = sand.u32 %s46, 1
        %s421 = smul.addr %s420, 704
        %s422 = scalar_lea.vmem [#allocation3], %s421
        %p423 = pneg %p59
        %p424 = pneg %p56
        %s425 = sand.u32 %s74, 1
        %s426 = scalar_lea.sflag [#allocation5], %s425
        %s427 = sand.u32 %s74, 1
        %s428 = smul.addr %s427, 5632
        %s429 = scalar_lea.vmem [#allocation4], %s428
        %p430 = pneg %p87
        %p431 = pneg %p84
        %s432 = smul.u32 2, %s23
        %p433 = scmp.lt.s32.totalorder %s432, 3
        %s434 = scalar_select %p433, %s432, 3
        %s435 = scalar_lea.vmem %s2, %s434
        %p436 = pneg %p113
        %p437 = pneg %p110
        %p438 = pneg %p141
        %p439 = pneg %p138
        %s440 = sand.u32 %s128, 1
        %s441 = sand.u32 %s128, 1
        %s442 = smul.addr %s441, 64
        %s443 = scalar_lea.vmem [#allocation6], %s442
        %s444 = smul.u32 4, %s22
        %s445 = smul.u32 22, %s24
        %s446 = smul.u32 352, %s24
        %s447 = smul.u32 2, %s23
        %s448 = smul.u32 2, %s23
        %p449 = scmp.lt.s32.totalorder %s448, 3
        %s450 = scalar_select %p449, %s448, 3
        %s451 = scalar_lea.vmem %s2, %s450
        %s452 = smul.u32 2, %s23
        %s453 = smul.u32 4, %s22
        %s454 = smul.u32 2, %s23
        %p455 = scmp.eq.s32.totalorder %s24, 0
        // Predicated region
        $region60: #{_lambda_.5} parent=50 // pred_check
          %p456 = pneg %p455
        $region61: #{_lambda_.5} parent=50 // pred_check_branch
          %458 = sbr.rel (%p456) target = $region63
        $region62: #{_lambda_.5} parent=50 // pred_region
          %459 = vst [vmem:[#allocation2] sm:$0xff] 0.0
          %460 = vst [vmem:[#allocation2 + $0x8] sm:$0xff] 0.0
          %461 = vst [vmem:[#allocation2 + $0x10] sm:$0xff] 0.0
          %462 = vst [vmem:[#allocation2 + $0x18] sm:$0xff] 0.0
          %463 = vst [vmem:[#allocation2 + $0x20] sm:$0xff] 0.0
          %464 = vst [vmem:[#allocation2 + $0x28] sm:$0xff] 0.0
          %465 = vst [vmem:[#allocation2 + $0x30] sm:$0xff] 0.0
          %466 = vst [vmem:[#allocation2 + $0x38] sm:$0xff] 0.0
        $region63: #{_lambda_.5} parent=50 // pred_fallthru
          _
        %v467 = vld [vmem:[#allocation2] sm:$0xff]
        %v468 = vld [vmem:[#allocation2 + $0x8] sm:$0xff]
        %v469 = vld [vmem:[#allocation2 + $0x10] sm:$0xff]
        %v470 = vld [vmem:[#allocation2 + $0x18] sm:$0xff]
        %v471 = vld [vmem:[#allocation2 + $0x20] sm:$0xff]
        %v472 = vld [vmem:[#allocation2 + $0x28] sm:$0xff]
        %v473 = vld [vmem:[#allocation2 + $0x30] sm:$0xff]
        %v474 = vld [vmem:[#allocation2 + $0x38] sm:$0xff]
        %v475 = vld [vmem:[%s406] sm:$0xff]
        %v476 = vld [vmem:[%s406 + $0x8] sm:$0xff]
        %v477 = vld [vmem:[%s406 + $0x10] sm:$0xff]
        %v478 = vld [vmem:[%s406 + $0x18] sm:$0xff]
        %v479 = vld [vmem:[%s406 + $0x20] sm:$0xff]
        %v480 = vld [vmem:[%s406 + $0x28] sm:$0xff]
        %v481 = vld [vmem:[%s406 + $0x30] sm:$0xff]
        %v482 = vld [vmem:[%s406 + $0x38] sm:$0xff]
        %v483 = vld [vmem:[%s406 + $0x40] sm:$0xff]
        %v484 = vld [vmem:[%s406 + $0x48] sm:$0xff]
        %v485 = vld [vmem:[%s406 + $0x50] sm:$0xff]
        %v486 = vld [vmem:[%s406 + $0x58] sm:$0xff]
        %v487 = vld [vmem:[%s406 + $0x60] sm:$0xff]
        %v488 = vld [vmem:[%s406 + $0x68] sm:$0xff]
        %v489 = vld [vmem:[%s406 + $0x70] sm:$0xff]
        %v490 = vld [vmem:[%s406 + $0x78] sm:$0xff]
        %v491 = vld [vmem:[%s406 + $0x80] sm:$0xff]
        %v492 = vld [vmem:[%s406 + $0x88] sm:$0xff]
        %v493 = vld [vmem:[%s406 + $0x90] sm:$0xff]
        %v494 = vld [vmem:[%s406 + $0x98] sm:$0xff]
        %v495 = vld [vmem:[%s406 + $0xa0] sm:$0xff]
        %v496 = vld [vmem:[%s406 + $0xa8] sm:$0xff]
        %v497 = vld [vmem:[%s406 + $0xb0] sm:$0xff]
        %v498 = vld [vmem:[%s406 + $0xb8] sm:$0xff]
        %v499 = vld [vmem:[%s406 + $0xc0] sm:$0xff]
        %v500 = vld [vmem:[%s406 + $0xc8] sm:$0xff]
        %v501 = vld [vmem:[%s406 + $0xd0] sm:$0xff]
        %v502 = vld [vmem:[%s406 + $0xd8] sm:$0xff]
        %v503 = vld [vmem:[%s406 + $0xe0] sm:$0xff]
        %v504 = vld [vmem:[%s406 + $0xe8] sm:$0xff]
        %v505 = vld [vmem:[%s406 + $0xf0] sm:$0xff]
        %v506 = vld [vmem:[%s406 + $0xf8] sm:$0xff]
        %v507 = vld [vmem:[%s406 + $0x100] sm:$0xff]
        %v508 = vld [vmem:[%s406 + $0x108] sm:$0xff]
        %v509 = vld [vmem:[%s406 + $0x110] sm:$0xff]
        %v510 = vld [vmem:[%s406 + $0x118] sm:$0xff]
        %v511 = vld [vmem:[%s406 + $0x120] sm:$0xff]
        %v512 = vld [vmem:[%s406 + $0x128] sm:$0xff]
        %v513 = vld [vmem:[%s406 + $0x130] sm:$0xff]
        %v514 = vld [vmem:[%s406 + $0x138] sm:$0xff]
        %v515 = vld [vmem:[%s406 + $0x140] sm:$0xff]
        %v516 = vld [vmem:[%s406 + $0x148] sm:$0xff]
        %v517 = vld [vmem:[%s406 + $0x150] sm:$0xff]
        %v518 = vld [vmem:[%s406 + $0x158] sm:$0xff]
        %v519 = vld [vmem:[%s406 + $0x160] sm:$0xff]
        %v520 = vld [vmem:[%s406 + $0x168] sm:$0xff]
        %v521 = vld [vmem:[%s406 + $0x170] sm:$0xff]
        %v522 = vld [vmem:[%s406 + $0x178] sm:$0xff]
        %v523 = vld [vmem:[%s406 + $0x180] sm:$0xff]
        %v524 = vld [vmem:[%s406 + $0x188] sm:$0xff]
        %v525 = vld [vmem:[%s406 + $0x190] sm:$0xff]
        %v526 = vld [vmem:[%s406 + $0x198] sm:$0xff]
        %v527 = vld [vmem:[%s406 + $0x1a0] sm:$0xff]
        %v528 = vld [vmem:[%s406 + $0x1a8] sm:$0xff]
        %v529 = vld [vmem:[%s406 + $0x1b0] sm:$0xff]
        %v530 = vld [vmem:[%s406 + $0x1b8] sm:$0xff]
        %v531 = vld [vmem:[%s406 + $0x1c0] sm:$0xff]
        %v532 = vld [vmem:[%s406 + $0x1c8] sm:$0xff]
        %v533 = vld [vmem:[%s406 + $0x1d0] sm:$0xff]
        %v534 = vld [vmem:[%s406 + $0x1d8] sm:$0xff]
        %v535 = vld [vmem:[%s406 + $0x1e0] sm:$0xff]
        %v536 = vld [vmem:[%s406 + $0x1e8] sm:$0xff]
        %v537 = vld [vmem:[%s406 + $0x1f0] sm:$0xff]
        %v538 = vld [vmem:[%s406 + $0x1f8] sm:$0xff]
        %v539 = vld [vmem:[%s406 + $0x200] sm:$0xff]
        %v540 = vld [vmem:[%s406 + $0x208] sm:$0xff]
        %v541 = vld [vmem:[%s406 + $0x210] sm:$0xff]
        %v542 = vld [vmem:[%s406 + $0x218] sm:$0xff]
        %v543 = vld [vmem:[%s406 + $0x220] sm:$0xff]
        %v544 = vld [vmem:[%s406 + $0x228] sm:$0xff]
        %v545 = vld [vmem:[%s406 + $0x230] sm:$0xff]
        %v546 = vld [vmem:[%s406 + $0x238] sm:$0xff]
        %v547 = vld [vmem:[%s406 + $0x240] sm:$0xff]
        %v548 = vld [vmem:[%s406 + $0x248] sm:$0xff]
        %v549 = vld [vmem:[%s406 + $0x250] sm:$0xff]
        %v550 = vld [vmem:[%s406 + $0x258] sm:$0xff]
        %v551 = vld [vmem:[%s406 + $0x260] sm:$0xff]
        %v552 = vld [vmem:[%s406 + $0x268] sm:$0xff]
        %v553 = vld [vmem:[%s406 + $0x270] sm:$0xff]
        %v554 = vld [vmem:[%s406 + $0x278] sm:$0xff]
        %v555 = vld [vmem:[%s406 + $0x280] sm:$0xff]
        %v556 = vld [vmem:[%s406 + $0x288] sm:$0xff]
        %v557 = vld [vmem:[%s406 + $0x290] sm:$0xff]
        %v558 = vld [vmem:[%s406 + $0x298] sm:$0xff]
        %v559 = vld [vmem:[%s406 + $0x2a0] sm:$0xff]
        %v560 = vld [vmem:[%s406 + $0x2a8] sm:$0xff]
        %v561 = vld [vmem:[%s406 + $0x2b0] sm:$0xff]
        %v562 = vld [vmem:[%s406 + $0x2b8] sm:$0xff]
        %v563 = vld [vmem:[%s414] sm:$0xff]
        %v564 = vld [vmem:[%s414 + $0x8] sm:$0xff]
        %v565 = vld [vmem:[%s414 + $0x10] sm:$0xff]
        %v566 = vld [vmem:[%s414 + $0x18] sm:$0xff]
        %v567 = vld [vmem:[%s414 + $0x20] sm:$0xff]
        %v568 = vld [vmem:[%s414 + $0x28] sm:$0xff]
        %v569 = vld [vmem:[%s414 + $0x30] sm:$0xff]
        %v570 = vld [vmem:[%s414 + $0x38] sm:$0xff]
        %v571 = vld [vmem:[%s414 + $0x40] sm:$0xff]
        %v572 = vld [vmem:[%s414 + $0x48] sm:$0xff]
        %v573 = vld [vmem:[%s414 + $0x50] sm:$0xff]
        %v574 = vld [vmem:[%s414 + $0x58] sm:$0xff]
        %v575 = vld [vmem:[%s414 + $0x60] sm:$0xff]
        %v576 = vld [vmem:[%s414 + $0x68] sm:$0xff]
        %v577 = vld [vmem:[%s414 + $0x70] sm:$0xff]
        %v578 = vld [vmem:[%s414 + $0x78] sm:$0xff]
        %v579 = vld [vmem:[%s414 + $0x80] sm:$0xff]
        %v580 = vld [vmem:[%s414 + $0x88] sm:$0xff]
        %v581 = vld [vmem:[%s414 + $0x90] sm:$0xff]
        %v582 = vld [vmem:[%s414 + $0x98] sm:$0xff]
        %v583 = vld [vmem:[%s414 + $0xa0] sm:$0xff]
        %v584 = vld [vmem:[%s414 + $0xa8] sm:$0xff]
        %v585 = vld [vmem:[%s414 + $0xb0] sm:$0xff]
        %v586 = vld [vmem:[%s414 + $0xb8] sm:$0xff]
        %v587 = vld [vmem:[%s414 + $0xc0] sm:$0xff]
        %v588 = vld [vmem:[%s414 + $0xc8] sm:$0xff]
        %v589 = vld [vmem:[%s414 + $0xd0] sm:$0xff]
        %v590 = vld [vmem:[%s414 + $0xd8] sm:$0xff]
        %v591 = vld [vmem:[%s414 + $0xe0] sm:$0xff]
        %v592 = vld [vmem:[%s414 + $0xe8] sm:$0xff]
        %v593 = vld [vmem:[%s414 + $0xf0] sm:$0xff]
        %v594 = vld [vmem:[%s414 + $0xf8] sm:$0xff]
        %v595 = vld [vmem:[%s414 + $0x100] sm:$0xff]
        %v596 = vld [vmem:[%s414 + $0x108] sm:$0xff]
        %v597 = vld [vmem:[%s414 + $0x110] sm:$0xff]
        %v598 = vld [vmem:[%s414 + $0x118] sm:$0xff]
        %v599 = vld [vmem:[%s414 + $0x120] sm:$0xff]
        %v600 = vld [vmem:[%s414 + $0x128] sm:$0xff]
        %v601 = vld [vmem:[%s414 + $0x130] sm:$0xff]
        %v602 = vld [vmem:[%s414 + $0x138] sm:$0xff]
        %v603 = vld [vmem:[%s414 + $0x140] sm:$0xff]
        %v604 = vld [vmem:[%s414 + $0x148] sm:$0xff]
        %v605 = vld [vmem:[%s414 + $0x150] sm:$0xff]
        %v606 = vld [vmem:[%s414 + $0x158] sm:$0xff]
        %v607 = vld [vmem:[%s414 + $0x160] sm:$0xff]
        %v608 = vld [vmem:[%s414 + $0x168] sm:$0xff]
        %v609 = vld [vmem:[%s414 + $0x170] sm:$0xff]
        %v610 = vld [vmem:[%s414 + $0x178] sm:$0xff]
        %v611 = vld [vmem:[%s414 + $0x180] sm:$0xff]
        %v612 = vld [vmem:[%s414 + $0x188] sm:$0xff]
        %v613 = vld [vmem:[%s414 + $0x190] sm:$0xff]
        %v614 = vld [vmem:[%s414 + $0x198] sm:$0xff]
        %v615 = vld [vmem:[%s414 + $0x1a0] sm:$0xff]
        %v616 = vld [vmem:[%s414 + $0x1a8] sm:$0xff]
        %v617 = vld [vmem:[%s414 + $0x1b0] sm:$0xff]
        %v618 = vld [vmem:[%s414 + $0x1b8] sm:$0xff]
        %v619 = vld [vmem:[%s414 + $0x1c0] sm:$0xff]
        %v620 = vld [vmem:[%s414 + $0x1c8] sm:$0xff]
        %v621 = vld [vmem:[%s414 + $0x1d0] sm:$0xff]
        %v622 = vld [vmem:[%s414 + $0x1d8] sm:$0xff]
        %v623 = vld [vmem:[%s414 + $0x1e0] sm:$0xff]
        %v624 = vld [vmem:[%s414 + $0x1e8] sm:$0xff]
        %v625 = vld [vmem:[%s414 + $0x1f0] sm:$0xff]
        %v626 = vld [vmem:[%s414 + $0x1f8] sm:$0xff]
        %v627 = vld [vmem:[%s414 + $0x200] sm:$0xff]
        %v628 = vld [vmem:[%s414 + $0x208] sm:$0xff]
        %v629 = vld [vmem:[%s414 + $0x210] sm:$0xff]
        %v630 = vld [vmem:[%s414 + $0x218] sm:$0xff]
        %v631 = vld [vmem:[%s414 + $0x220] sm:$0xff]
        %v632 = vld [vmem:[%s414 + $0x228] sm:$0xff]
        %v633 = vld [vmem:[%s414 + $0x230] sm:$0xff]
        %v634 = vld [vmem:[%s414 + $0x238] sm:$0xff]
        %v635 = vld [vmem:[%s414 + $0x240] sm:$0xff]
        %v636 = vld [vmem:[%s414 + $0x248] sm:$0xff]
        %v637 = vld [vmem:[%s414 + $0x250] sm:$0xff]
        %v638 = vld [vmem:[%s414 + $0x258] sm:$0xff]
        %v639 = vld [vmem:[%s414 + $0x260] sm:$0xff]
        %v640 = vld [vmem:[%s414 + $0x268] sm:$0xff]
        %v641 = vld [vmem:[%s414 + $0x270] sm:$0xff]
        %v642 = vld [vmem:[%s414 + $0x278] sm:$0xff]
        %v643 = vld [vmem:[%s414 + $0x280] sm:$0xff]
        %v644 = vld [vmem:[%s414 + $0x288] sm:$0xff]
        %v645 = vld [vmem:[%s414 + $0x290] sm:$0xff]
        %v646 = vld [vmem:[%s414 + $0x298] sm:$0xff]
        %v647 = vld [vmem:[%s414 + $0x2a0] sm:$0xff]
        %v648 = vld [vmem:[%s414 + $0x2a8] sm:$0xff]
        %v649 = vld [vmem:[%s414 + $0x2b0] sm:$0xff]
        %v650 = vld [vmem:[%s414 + $0x2b8] sm:$0xff]
        %v651 = vld [vmem:[%s414 + $0x2c0] sm:$0xff]
        %v652 = vld [vmem:[%s414 + $0x2c8] sm:$0xff]
        %v653 = vld [vmem:[%s414 + $0x2d0] sm:$0xff]
        %v654 = vld [vmem:[%s414 + $0x2d8] sm:$0xff]
        %v655 = vld [vmem:[%s414 + $0x2e0] sm:$0xff]
        %v656 = vld [vmem:[%s414 + $0x2e8] sm:$0xff]
        %v657 = vld [vmem:[%s414 + $0x2f0] sm:$0xff]
        %v658 = vld [vmem:[%s414 + $0x2f8] sm:$0xff]
        %v659 = vld [vmem:[%s414 + $0x300] sm:$0xff]
        %v660 = vld [vmem:[%s414 + $0x308] sm:$0xff]
        %v661 = vld [vmem:[%s414 + $0x310] sm:$0xff]
        %v662 = vld [vmem:[%s414 + $0x318] sm:$0xff]
        %v663 = vld [vmem:[%s414 + $0x320] sm:$0xff]
        %v664 = vld [vmem:[%s414 + $0x328] sm:$0xff]
        %v665 = vld [vmem:[%s414 + $0x330] sm:$0xff]
        %v666 = vld [vmem:[%s414 + $0x338] sm:$0xff]
        %v667 = vld [vmem:[%s414 + $0x340] sm:$0xff]
        %v668 = vld [vmem:[%s414 + $0x348] sm:$0xff]
        %v669 = vld [vmem:[%s414 + $0x350] sm:$0xff]
        %v670 = vld [vmem:[%s414 + $0x358] sm:$0xff]
        %v671 = vld [vmem:[%s414 + $0x360] sm:$0xff]
        %v672 = vld [vmem:[%s414 + $0x368] sm:$0xff]
        %v673 = vld [vmem:[%s414 + $0x370] sm:$0xff]
        %v674 = vld [vmem:[%s414 + $0x378] sm:$0xff]
        %v675 = vld [vmem:[%s414 + $0x380] sm:$0xff]
        %v676 = vld [vmem:[%s414 + $0x388] sm:$0xff]
        %v677 = vld [vmem:[%s414 + $0x390] sm:$0xff]
        %v678 = vld [vmem:[%s414 + $0x398] sm:$0xff]
        %v679 = vld [vmem:[%s414 + $0x3a0] sm:$0xff]
        %v680 = vld [vmem:[%s414 + $0x3a8] sm:$0xff]
        %v681 = vld [vmem:[%s414 + $0x3b0] sm:$0xff]
        %v682 = vld [vmem:[%s414 + $0x3b8] sm:$0xff]
        %v683 = vld [vmem:[%s414 + $0x3c0] sm:$0xff]
        %v684 = vld [vmem:[%s414 + $0x3c8] sm:$0xff]
        %v685 = vld [vmem:[%s414 + $0x3d0] sm:$0xff]
        %v686 = vld [vmem:[%s414 + $0x3d8] sm:$0xff]
        %v687 = vld [vmem:[%s414 + $0x3e0] sm:$0xff]
        %v688 = vld [vmem:[%s414 + $0x3e8] sm:$0xff]
        %v689 = vld [vmem:[%s414 + $0x3f0] sm:$0xff]
        %v690 = vld [vmem:[%s414 + $0x3f8] sm:$0xff]
        %v691 = vld [vmem:[%s414 + $0x400] sm:$0xff]
        %v692 = vld [vmem:[%s414 + $0x408] sm:$0xff]
        %v693 = vld [vmem:[%s414 + $0x410] sm:$0xff]
        %v694 = vld [vmem:[%s414 + $0x418] sm:$0xff]
        %v695 = vld [vmem:[%s414 + $0x420] sm:$0xff]
        %v696 = vld [vmem:[%s414 + $0x428] sm:$0xff]
        %v697 = vld [vmem:[%s414 + $0x430] sm:$0xff]
        %v698 = vld [vmem:[%s414 + $0x438] sm:$0xff]
        %v699 = vld [vmem:[%s414 + $0x440] sm:$0xff]
        %v700 = vld [vmem:[%s414 + $0x448] sm:$0xff]
        %v701 = vld [vmem:[%s414 + $0x450] sm:$0xff]
        %v702 = vld [vmem:[%s414 + $0x458] sm:$0xff]
        %v703 = vld [vmem:[%s414 + $0x460] sm:$0xff]
        %v704 = vld [vmem:[%s414 + $0x468] sm:$0xff]
        %v705 = vld [vmem:[%s414 + $0x470] sm:$0xff]
        %v706 = vld [vmem:[%s414 + $0x478] sm:$0xff]
        %v707 = vld [vmem:[%s414 + $0x480] sm:$0xff]
        %v708 = vld [vmem:[%s414 + $0x488] sm:$0xff]
        %v709 = vld [vmem:[%s414 + $0x490] sm:$0xff]
        %v710 = vld [vmem:[%s414 + $0x498] sm:$0xff]
        %v711 = vld [vmem:[%s414 + $0x4a0] sm:$0xff]
        %v712 = vld [vmem:[%s414 + $0x4a8] sm:$0xff]
        %v713 = vld [vmem:[%s414 + $0x4b0] sm:$0xff]
        %v714 = vld [vmem:[%s414 + $0x4b8] sm:$0xff]
        %v715 = vld [vmem:[%s414 + $0x4c0] sm:$0xff]
        %v716 = vld [vmem:[%s414 + $0x4c8] sm:$0xff]
        %v717 = vld [vmem:[%s414 + $0x4d0] sm:$0xff]
        %v718 = vld [vmem:[%s414 + $0x4d8] sm:$0xff]
        %v719 = vld [vmem:[%s414 + $0x4e0] sm:$0xff]
        %v720 = vld [vmem:[%s414 + $0x4e8] sm:$0xff]
        %v721 = vld [vmem:[%s414 + $0x4f0] sm:$0xff]
        %v722 = vld [vmem:[%s414 + $0x4f8] sm:$0xff]
        %v723 = vld [vmem:[%s414 + $0x500] sm:$0xff]
        %v724 = vld [vmem:[%s414 + $0x508] sm:$0xff]
        %v725 = vld [vmem:[%s414 + $0x510] sm:$0xff]
        %v726 = vld [vmem:[%s414 + $0x518] sm:$0xff]
        %v727 = vld [vmem:[%s414 + $0x520] sm:$0xff]
        %v728 = vld [vmem:[%s414 + $0x528] sm:$0xff]
        %v729 = vld [vmem:[%s414 + $0x530] sm:$0xff]
        %v730 = vld [vmem:[%s414 + $0x538] sm:$0xff]
        %v731 = vld [vmem:[%s414 + $0x540] sm:$0xff]
        %v732 = vld [vmem:[%s414 + $0x548] sm:$0xff]
        %v733 = vld [vmem:[%s414 + $0x550] sm:$0xff]
        %v734 = vld [vmem:[%s414 + $0x558] sm:$0xff]
        %v735 = vld [vmem:[%s414 + $0x560] sm:$0xff]
        %v736 = vld [vmem:[%s414 + $0x568] sm:$0xff]
        %v737 = vld [vmem:[%s414 + $0x570] sm:$0xff]
        %v738 = vld [vmem:[%s414 + $0x578] sm:$0xff]
        %v739 = vld [vmem:[%s414 + $0x580] sm:$0xff]
        %v740 = vld [vmem:[%s414 + $0x588] sm:$0xff]
        %v741 = vld [vmem:[%s414 + $0x590] sm:$0xff]
        %v742 = vld [vmem:[%s414 + $0x598] sm:$0xff]
        %v743 = vld [vmem:[%s414 + $0x5a0] sm:$0xff]
        %v744 = vld [vmem:[%s414 + $0x5a8] sm:$0xff]
        %v745 = vld [vmem:[%s414 + $0x5b0] sm:$0xff]
        %v746 = vld [vmem:[%s414 + $0x5b8] sm:$0xff]
        %v747 = vld [vmem:[%s414 + $0x5c0] sm:$0xff]
        %v748 = vld [vmem:[%s414 + $0x5c8] sm:$0xff]
        %v749 = vld [vmem:[%s414 + $0x5d0] sm:$0xff]
        %v750 = vld [vmem:[%s414 + $0x5d8] sm:$0xff]
        %v751 = vld [vmem:[%s414 + $0x5e0] sm:$0xff]
        %v752 = vld [vmem:[%s414 + $0x5e8] sm:$0xff]
        %v753 = vld [vmem:[%s414 + $0x5f0] sm:$0xff]
        %v754 = vld [vmem:[%s414 + $0x5f8] sm:$0xff]
        %v755 = vld [vmem:[%s414 + $0x600] sm:$0xff]
        %v756 = vld [vmem:[%s414 + $0x608] sm:$0xff]
        %v757 = vld [vmem:[%s414 + $0x610] sm:$0xff]
        %v758 = vld [vmem:[%s414 + $0x618] sm:$0xff]
        %v759 = vld [vmem:[%s414 + $0x620] sm:$0xff]
        %v760 = vld [vmem:[%s414 + $0x628] sm:$0xff]
        %v761 = vld [vmem:[%s414 + $0x630] sm:$0xff]
        %v762 = vld [vmem:[%s414 + $0x638] sm:$0xff]
        %v763 = vld [vmem:[%s414 + $0x640] sm:$0xff]
        %v764 = vld [vmem:[%s414 + $0x648] sm:$0xff]
        %v765 = vld [vmem:[%s414 + $0x650] sm:$0xff]
        %v766 = vld [vmem:[%s414 + $0x658] sm:$0xff]
        %v767 = vld [vmem:[%s414 + $0x660] sm:$0xff]
        %v768 = vld [vmem:[%s414 + $0x668] sm:$0xff]
        %v769 = vld [vmem:[%s414 + $0x670] sm:$0xff]
        %v770 = vld [vmem:[%s414 + $0x678] sm:$0xff]
        %v771 = vld [vmem:[%s414 + $0x680] sm:$0xff]
        %v772 = vld [vmem:[%s414 + $0x688] sm:$0xff]
        %v773 = vld [vmem:[%s414 + $0x690] sm:$0xff]
        %v774 = vld [vmem:[%s414 + $0x698] sm:$0xff]
        %v775 = vld [vmem:[%s414 + $0x6a0] sm:$0xff]
        %v776 = vld [vmem:[%s414 + $0x6a8] sm:$0xff]
        %v777 = vld [vmem:[%s414 + $0x6b0] sm:$0xff]
        %v778 = vld [vmem:[%s414 + $0x6b8] sm:$0xff]
        %v779 = vld [vmem:[%s414 + $0x6c0] sm:$0xff]
        %v780 = vld [vmem:[%s414 + $0x6c8] sm:$0xff]
        %v781 = vld [vmem:[%s414 + $0x6d0] sm:$0xff]
        %v782 = vld [vmem:[%s414 + $0x6d8] sm:$0xff]
        %v783 = vld [vmem:[%s414 + $0x6e0] sm:$0xff]
        %v784 = vld [vmem:[%s414 + $0x6e8] sm:$0xff]
        %v785 = vld [vmem:[%s414 + $0x6f0] sm:$0xff]
        %v786 = vld [vmem:[%s414 + $0x6f8] sm:$0xff]
        %v787 = vld [vmem:[%s414 + $0x700] sm:$0xff]
        %v788 = vld [vmem:[%s414 + $0x708] sm:$0xff]
        %v789 = vld [vmem:[%s414 + $0x710] sm:$0xff]
        %v790 = vld [vmem:[%s414 + $0x718] sm:$0xff]
        %v791 = vld [vmem:[%s414 + $0x720] sm:$0xff]
        %v792 = vld [vmem:[%s414 + $0x728] sm:$0xff]
        %v793 = vld [vmem:[%s414 + $0x730] sm:$0xff]
        %v794 = vld [vmem:[%s414 + $0x738] sm:$0xff]
        %v795 = vld [vmem:[%s414 + $0x740] sm:$0xff]
        %v796 = vld [vmem:[%s414 + $0x748] sm:$0xff]
        %v797 = vld [vmem:[%s414 + $0x750] sm:$0xff]
        %v798 = vld [vmem:[%s414 + $0x758] sm:$0xff]
        %v799 = vld [vmem:[%s414 + $0x760] sm:$0xff]
        %v800 = vld [vmem:[%s414 + $0x768] sm:$0xff]
        %v801 = vld [vmem:[%s414 + $0x770] sm:$0xff]
        %v802 = vld [vmem:[%s414 + $0x778] sm:$0xff]
        %v803 = vld [vmem:[%s414 + $0x780] sm:$0xff]
        %v804 = vld [vmem:[%s414 + $0x788] sm:$0xff]
        %v805 = vld [vmem:[%s414 + $0x790] sm:$0xff]
        %v806 = vld [vmem:[%s414 + $0x798] sm:$0xff]
        %v807 = vld [vmem:[%s414 + $0x7a0] sm:$0xff]
        %v808 = vld [vmem:[%s414 + $0x7a8] sm:$0xff]
        %v809 = vld [vmem:[%s414 + $0x7b0] sm:$0xff]
        %v810 = vld [vmem:[%s414 + $0x7b8] sm:$0xff]
        %v811 = vld [vmem:[%s414 + $0x7c0] sm:$0xff]
        %v812 = vld [vmem:[%s414 + $0x7c8] sm:$0xff]
        %v813 = vld [vmem:[%s414 + $0x7d0] sm:$0xff]
        %v814 = vld [vmem:[%s414 + $0x7d8] sm:$0xff]
        %v815 = vld [vmem:[%s414 + $0x7e0] sm:$0xff]
        %v816 = vld [vmem:[%s414 + $0x7e8] sm:$0xff]
        %v817 = vld [vmem:[%s414 + $0x7f0] sm:$0xff]
        %v818 = vld [vmem:[%s414 + $0x7f8] sm:$0xff]
        %v819 = vld [vmem:[%s414 + $0x800] sm:$0xff]
        %v820 = vld [vmem:[%s414 + $0x808] sm:$0xff]
        %v821 = vld [vmem:[%s414 + $0x810] sm:$0xff]
        %v822 = vld [vmem:[%s414 + $0x818] sm:$0xff]
        %v823 = vld [vmem:[%s414 + $0x820] sm:$0xff]
        %v824 = vld [vmem:[%s414 + $0x828] sm:$0xff]
        %v825 = vld [vmem:[%s414 + $0x830] sm:$0xff]
        %v826 = vld [vmem:[%s414 + $0x838] sm:$0xff]
        %v827 = vld [vmem:[%s414 + $0x840] sm:$0xff]
        %v828 = vld [vmem:[%s414 + $0x848] sm:$0xff]
        %v829 = vld [vmem:[%s414 + $0x850] sm:$0xff]
        %v830 = vld [vmem:[%s414 + $0x858] sm:$0xff]
        %v831 = vld [vmem:[%s414 + $0x860] sm:$0xff]
        %v832 = vld [vmem:[%s414 + $0x868] sm:$0xff]
        %v833 = vld [vmem:[%s414 + $0x870] sm:$0xff]
        %v834 = vld [vmem:[%s414 + $0x878] sm:$0xff]
        %v835 = vld [vmem:[%s414 + $0x880] sm:$0xff]
        %v836 = vld [vmem:[%s414 + $0x888] sm:$0xff]
        %v837 = vld [vmem:[%s414 + $0x890] sm:$0xff]
        %v838 = vld [vmem:[%s414 + $0x898] sm:$0xff]
        %v839 = vld [vmem:[%s414 + $0x8a0] sm:$0xff]
        %v840 = vld [vmem:[%s414 + $0x8a8] sm:$0xff]
        %v841 = vld [vmem:[%s414 + $0x8b0] sm:$0xff]
        %v842 = vld [vmem:[%s414 + $0x8b8] sm:$0xff]
        %v843 = vld [vmem:[%s414 + $0x8c0] sm:$0xff]
        %v844 = vld [vmem:[%s414 + $0x8c8] sm:$0xff]
        %v845 = vld [vmem:[%s414 + $0x8d0] sm:$0xff]
        %v846 = vld [vmem:[%s414 + $0x8d8] sm:$0xff]
        %v847 = vld [vmem:[%s414 + $0x8e0] sm:$0xff]
        %v848 = vld [vmem:[%s414 + $0x8e8] sm:$0xff]
        %v849 = vld [vmem:[%s414 + $0x8f0] sm:$0xff]
        %v850 = vld [vmem:[%s414 + $0x8f8] sm:$0xff]
        %v851 = vld [vmem:[%s414 + $0x900] sm:$0xff]
        %v852 = vld [vmem:[%s414 + $0x908] sm:$0xff]
        %v853 = vld [vmem:[%s414 + $0x910] sm:$0xff]
        %v854 = vld [vmem:[%s414 + $0x918] sm:$0xff]
        %v855 = vld [vmem:[%s414 + $0x920] sm:$0xff]
        %v856 = vld [vmem:[%s414 + $0x928] sm:$0xff]
        %v857 = vld [vmem:[%s414 + $0x930] sm:$0xff]
        %v858 = vld [vmem:[%s414 + $0x938] sm:$0xff]
        %v859 = vld [vmem:[%s414 + $0x940] sm:$0xff]
        %v860 = vld [vmem:[%s414 + $0x948] sm:$0xff]
        %v861 = vld [vmem:[%s414 + $0x950] sm:$0xff]
        %v862 = vld [vmem:[%s414 + $0x958] sm:$0xff]
        %v863 = vld [vmem:[%s414 + $0x960] sm:$0xff]
        %v864 = vld [vmem:[%s414 + $0x968] sm:$0xff]
        %v865 = vld [vmem:[%s414 + $0x970] sm:$0xff]
        %v866 = vld [vmem:[%s414 + $0x978] sm:$0xff]
        %v867 = vld [vmem:[%s414 + $0x980] sm:$0xff]
        %v868 = vld [vmem:[%s414 + $0x988] sm:$0xff]
        %v869 = vld [vmem:[%s414 + $0x990] sm:$0xff]
        %v870 = vld [vmem:[%s414 + $0x998] sm:$0xff]
        %v871 = vld [vmem:[%s414 + $0x9a0] sm:$0xff]
        %v872 = vld [vmem:[%s414 + $0x9a8] sm:$0xff]
        %v873 = vld [vmem:[%s414 + $0x9b0] sm:$0xff]
        %v874 = vld [vmem:[%s414 + $0x9b8] sm:$0xff]
        %v875 = vld [vmem:[%s414 + $0x9c0] sm:$0xff]
        %v876 = vld [vmem:[%s414 + $0x9c8] sm:$0xff]
        %v877 = vld [vmem:[%s414 + $0x9d0] sm:$0xff]
        %v878 = vld [vmem:[%s414 + $0x9d8] sm:$0xff]
        %v879 = vld [vmem:[%s414 + $0x9e0] sm:$0xff]
        %v880 = vld [vmem:[%s414 + $0x9e8] sm:$0xff]
        %v881 = vld [vmem:[%s414 + $0x9f0] sm:$0xff]
        %v882 = vld [vmem:[%s414 + $0x9f8] sm:$0xff]
        %v883 = vld [vmem:[%s414 + $0xa00] sm:$0xff]
        %v884 = vld [vmem:[%s414 + $0xa08] sm:$0xff]
        %v885 = vld [vmem:[%s414 + $0xa10] sm:$0xff]
        %v886 = vld [vmem:[%s414 + $0xa18] sm:$0xff]
        %v887 = vld [vmem:[%s414 + $0xa20] sm:$0xff]
        %v888 = vld [vmem:[%s414 + $0xa28] sm:$0xff]
        %v889 = vld [vmem:[%s414 + $0xa30] sm:$0xff]
        %v890 = vld [vmem:[%s414 + $0xa38] sm:$0xff]
        %v891 = vld [vmem:[%s414 + $0xa40] sm:$0xff]
        %v892 = vld [vmem:[%s414 + $0xa48] sm:$0xff]
        %v893 = vld [vmem:[%s414 + $0xa50] sm:$0xff]
        %v894 = vld [vmem:[%s414 + $0xa58] sm:$0xff]
        %v895 = vld [vmem:[%s414 + $0xa60] sm:$0xff]
        %v896 = vld [vmem:[%s414 + $0xa68] sm:$0xff]
        %v897 = vld [vmem:[%s414 + $0xa70] sm:$0xff]
        %v898 = vld [vmem:[%s414 + $0xa78] sm:$0xff]
        %v899 = vld [vmem:[%s414 + $0xa80] sm:$0xff]
        %v900 = vld [vmem:[%s414 + $0xa88] sm:$0xff]
        %v901 = vld [vmem:[%s414 + $0xa90] sm:$0xff]
        %v902 = vld [vmem:[%s414 + $0xa98] sm:$0xff]
        %v903 = vld [vmem:[%s414 + $0xaa0] sm:$0xff]
        %v904 = vld [vmem:[%s414 + $0xaa8] sm:$0xff]
        %v905 = vld [vmem:[%s414 + $0xab0] sm:$0xff]
        %v906 = vld [vmem:[%s414 + $0xab8] sm:$0xff]
        %v907 = vld [vmem:[%s414 + $0xac0] sm:$0xff]
        %v908 = vld [vmem:[%s414 + $0xac8] sm:$0xff]
        %v909 = vld [vmem:[%s414 + $0xad0] sm:$0xff]
        %v910 = vld [vmem:[%s414 + $0xad8] sm:$0xff]
        %v911 = vld [vmem:[%s414 + $0xae0] sm:$0xff]
        %v912 = vld [vmem:[%s414 + $0xae8] sm:$0xff]
        %v913 = vld [vmem:[%s414 + $0xaf0] sm:$0xff]
        %v914 = vld [vmem:[%s414 + $0xaf8] sm:$0xff]
        %v915 = vld [vmem:[%s414 + $0xb00] sm:$0xff]
        %v916 = vld [vmem:[%s414 + $0xb08] sm:$0xff]
        %v917 = vld [vmem:[%s414 + $0xb10] sm:$0xff]
        %v918 = vld [vmem:[%s414 + $0xb18] sm:$0xff]
        %v919 = vld [vmem:[%s414 + $0xb20] sm:$0xff]
        %v920 = vld [vmem:[%s414 + $0xb28] sm:$0xff]
        %v921 = vld [vmem:[%s414 + $0xb30] sm:$0xff]
        %v922 = vld [vmem:[%s414 + $0xb38] sm:$0xff]
        %v923 = vld [vmem:[%s414 + $0xb40] sm:$0xff]
        %v924 = vld [vmem:[%s414 + $0xb48] sm:$0xff]
        %v925 = vld [vmem:[%s414 + $0xb50] sm:$0xff]
        %v926 = vld [vmem:[%s414 + $0xb58] sm:$0xff]
        %v927 = vld [vmem:[%s414 + $0xb60] sm:$0xff]
        %v928 = vld [vmem:[%s414 + $0xb68] sm:$0xff]
        %v929 = vld [vmem:[%s414 + $0xb70] sm:$0xff]
        %v930 = vld [vmem:[%s414 + $0xb78] sm:$0xff]
        %v931 = vld [vmem:[%s414 + $0xb80] sm:$0xff]
        %v932 = vld [vmem:[%s414 + $0xb88] sm:$0xff]
        %v933 = vld [vmem:[%s414 + $0xb90] sm:$0xff]
        %v934 = vld [vmem:[%s414 + $0xb98] sm:$0xff]
        %v935 = vld [vmem:[%s414 + $0xba0] sm:$0xff]
        %v936 = vld [vmem:[%s414 + $0xba8] sm:$0xff]
        %v937 = vld [vmem:[%s414 + $0xbb0] sm:$0xff]
        %v938 = vld [vmem:[%s414 + $0xbb8] sm:$0xff]
        %v939 = vld [vmem:[%s414 + $0xbc0] sm:$0xff]
        %v940 = vld [vmem:[%s414 + $0xbc8] sm:$0xff]
        %v941 = vld [vmem:[%s414 + $0xbd0] sm:$0xff]
        %v942 = vld [vmem:[%s414 + $0xbd8] sm:$0xff]
        %v943 = vld [vmem:[%s414 + $0xbe0] sm:$0xff]
        %v944 = vld [vmem:[%s414 + $0xbe8] sm:$0xff]
        %v945 = vld [vmem:[%s414 + $0xbf0] sm:$0xff]
        %v946 = vld [vmem:[%s414 + $0xbf8] sm:$0xff]
        %v947 = vld [vmem:[%s414 + $0xc00] sm:$0xff]
        %v948 = vld [vmem:[%s414 + $0xc08] sm:$0xff]
        %v949 = vld [vmem:[%s414 + $0xc10] sm:$0xff]
        %v950 = vld [vmem:[%s414 + $0xc18] sm:$0xff]
        %v951 = vld [vmem:[%s414 + $0xc20] sm:$0xff]
        %v952 = vld [vmem:[%s414 + $0xc28] sm:$0xff]
        %v953 = vld [vmem:[%s414 + $0xc30] sm:$0xff]
        %v954 = vld [vmem:[%s414 + $0xc38] sm:$0xff]
        %v955 = vld [vmem:[%s414 + $0xc40] sm:$0xff]
        %v956 = vld [vmem:[%s414 + $0xc48] sm:$0xff]
        %v957 = vld [vmem:[%s414 + $0xc50] sm:$0xff]
        %v958 = vld [vmem:[%s414 + $0xc58] sm:$0xff]
        %v959 = vld [vmem:[%s414 + $0xc60] sm:$0xff]
        %v960 = vld [vmem:[%s414 + $0xc68] sm:$0xff]
        %v961 = vld [vmem:[%s414 + $0xc70] sm:$0xff]
        %v962 = vld [vmem:[%s414 + $0xc78] sm:$0xff]
        %v963 = vld [vmem:[%s414 + $0xc80] sm:$0xff]
        %v964 = vld [vmem:[%s414 + $0xc88] sm:$0xff]
        %v965 = vld [vmem:[%s414 + $0xc90] sm:$0xff]
        %v966 = vld [vmem:[%s414 + $0xc98] sm:$0xff]
        %v967 = vld [vmem:[%s414 + $0xca0] sm:$0xff]
        %v968 = vld [vmem:[%s414 + $0xca8] sm:$0xff]
        %v969 = vld [vmem:[%s414 + $0xcb0] sm:$0xff]
        %v970 = vld [vmem:[%s414 + $0xcb8] sm:$0xff]
        %v971 = vld [vmem:[%s414 + $0xcc0] sm:$0xff]
        %v972 = vld [vmem:[%s414 + $0xcc8] sm:$0xff]
        %v973 = vld [vmem:[%s414 + $0xcd0] sm:$0xff]
        %v974 = vld [vmem:[%s414 + $0xcd8] sm:$0xff]
        %v975 = vld [vmem:[%s414 + $0xce0] sm:$0xff]
        %v976 = vld [vmem:[%s414 + $0xce8] sm:$0xff]
        %v977 = vld [vmem:[%s414 + $0xcf0] sm:$0xff]
        %v978 = vld [vmem:[%s414 + $0xcf8] sm:$0xff]
        %v979 = vld [vmem:[%s414 + $0xd00] sm:$0xff]
        %v980 = vld [vmem:[%s414 + $0xd08] sm:$0xff]
        %v981 = vld [vmem:[%s414 + $0xd10] sm:$0xff]
        %v982 = vld [vmem:[%s414 + $0xd18] sm:$0xff]
        %v983 = vld [vmem:[%s414 + $0xd20] sm:$0xff]
        %v984 = vld [vmem:[%s414 + $0xd28] sm:$0xff]
        %v985 = vld [vmem:[%s414 + $0xd30] sm:$0xff]
        %v986 = vld [vmem:[%s414 + $0xd38] sm:$0xff]
        %v987 = vld [vmem:[%s414 + $0xd40] sm:$0xff]
        %v988 = vld [vmem:[%s414 + $0xd48] sm:$0xff]
        %v989 = vld [vmem:[%s414 + $0xd50] sm:$0xff]
        %v990 = vld [vmem:[%s414 + $0xd58] sm:$0xff]
        %v991 = vld [vmem:[%s414 + $0xd60] sm:$0xff]
        %v992 = vld [vmem:[%s414 + $0xd68] sm:$0xff]
        %v993 = vld [vmem:[%s414 + $0xd70] sm:$0xff]
        %v994 = vld [vmem:[%s414 + $0xd78] sm:$0xff]
        %v995 = vld [vmem:[%s414 + $0xd80] sm:$0xff]
        %v996 = vld [vmem:[%s414 + $0xd88] sm:$0xff]
        %v997 = vld [vmem:[%s414 + $0xd90] sm:$0xff]
        %v998 = vld [vmem:[%s414 + $0xd98] sm:$0xff]
        %v999 = vld [vmem:[%s414 + $0xda0] sm:$0xff]
        %v1000 = vld [vmem:[%s414 + $0xda8] sm:$0xff]
        %v1001 = vld [vmem:[%s414 + $0xdb0] sm:$0xff]
        %v1002 = vld [vmem:[%s414 + $0xdb8] sm:$0xff]
        %v1003 = vld [vmem:[%s414 + $0xdc0] sm:$0xff]
        %v1004 = vld [vmem:[%s414 + $0xdc8] sm:$0xff]
        %v1005 = vld [vmem:[%s414 + $0xdd0] sm:$0xff]
        %v1006 = vld [vmem:[%s414 + $0xdd8] sm:$0xff]
        %v1007 = vld [vmem:[%s414 + $0xde0] sm:$0xff]
        %v1008 = vld [vmem:[%s414 + $0xde8] sm:$0xff]
        %v1009 = vld [vmem:[%s414 + $0xdf0] sm:$0xff]
        %v1010 = vld [vmem:[%s414 + $0xdf8] sm:$0xff]
        %v1011 = vld [vmem:[%s414 + $0xe00] sm:$0xff]
        %v1012 = vld [vmem:[%s414 + $0xe08] sm:$0xff]
        %v1013 = vld [vmem:[%s414 + $0xe10] sm:$0xff]
        %v1014 = vld [vmem:[%s414 + $0xe18] sm:$0xff]
        %v1015 = vld [vmem:[%s414 + $0xe20] sm:$0xff]
        %v1016 = vld [vmem:[%s414 + $0xe28] sm:$0xff]
        %v1017 = vld [vmem:[%s414 + $0xe30] sm:$0xff]
        %v1018 = vld [vmem:[%s414 + $0xe38] sm:$0xff]
        %v1019 = vld [vmem:[%s414 + $0xe40] sm:$0xff]
        %v1020 = vld [vmem:[%s414 + $0xe48] sm:$0xff]
        %v1021 = vld [vmem:[%s414 + $0xe50] sm:$0xff]
        %v1022 = vld [vmem:[%s414 + $0xe58] sm:$0xff]
        %v1023 = vld [vmem:[%s414 + $0xe60] sm:$0xff]
        %v1024 = vld [vmem:[%s414 + $0xe68] sm:$0xff]
        %v1025 = vld [vmem:[%s414 + $0xe70] sm:$0xff]
        %v1026 = vld [vmem:[%s414 + $0xe78] sm:$0xff]
        %v1027 = vld [vmem:[%s414 + $0xe80] sm:$0xff]
        %v1028 = vld [vmem:[%s414 + $0xe88] sm:$0xff]
        %v1029 = vld [vmem:[%s414 + $0xe90] sm:$0xff]
        %v1030 = vld [vmem:[%s414 + $0xe98] sm:$0xff]
        %v1031 = vld [vmem:[%s414 + $0xea0] sm:$0xff]
        %v1032 = vld [vmem:[%s414 + $0xea8] sm:$0xff]
        %v1033 = vld [vmem:[%s414 + $0xeb0] sm:$0xff]
        %v1034 = vld [vmem:[%s414 + $0xeb8] sm:$0xff]
        %v1035 = vld [vmem:[%s414 + $0xec0] sm:$0xff]
        %v1036 = vld [vmem:[%s414 + $0xec8] sm:$0xff]
        %v1037 = vld [vmem:[%s414 + $0xed0] sm:$0xff]
        %v1038 = vld [vmem:[%s414 + $0xed8] sm:$0xff]
        %v1039 = vld [vmem:[%s414 + $0xee0] sm:$0xff]
        %v1040 = vld [vmem:[%s414 + $0xee8] sm:$0xff]
        %v1041 = vld [vmem:[%s414 + $0xef0] sm:$0xff]
        %v1042 = vld [vmem:[%s414 + $0xef8] sm:$0xff]
        %v1043 = vld [vmem:[%s414 + $0xf00] sm:$0xff]
        %v1044 = vld [vmem:[%s414 + $0xf08] sm:$0xff]
        %v1045 = vld [vmem:[%s414 + $0xf10] sm:$0xff]
        %v1046 = vld [vmem:[%s414 + $0xf18] sm:$0xff]
        %v1047 = vld [vmem:[%s414 + $0xf20] sm:$0xff]
        %v1048 = vld [vmem:[%s414 + $0xf28] sm:$0xff]
        %v1049 = vld [vmem:[%s414 + $0xf30] sm:$0xff]
        %v1050 = vld [vmem:[%s414 + $0xf38] sm:$0xff]
        %v1051 = vld [vmem:[%s414 + $0xf40] sm:$0xff]
        %v1052 = vld [vmem:[%s414 + $0xf48] sm:$0xff]
        %v1053 = vld [vmem:[%s414 + $0xf50] sm:$0xff]
        %v1054 = vld [vmem:[%s414 + $0xf58] sm:$0xff]
        %v1055 = vld [vmem:[%s414 + $0xf60] sm:$0xff]
        %v1056 = vld [vmem:[%s414 + $0xf68] sm:$0xff]
        %v1057 = vld [vmem:[%s414 + $0xf70] sm:$0xff]
        %v1058 = vld [vmem:[%s414 + $0xf78] sm:$0xff]
        %v1059 = vld [vmem:[%s414 + $0xf80] sm:$0xff]
        %v1060 = vld [vmem:[%s414 + $0xf88] sm:$0xff]
        %v1061 = vld [vmem:[%s414 + $0xf90] sm:$0xff]
        %v1062 = vld [vmem:[%s414 + $0xf98] sm:$0xff]
        %v1063 = vld [vmem:[%s414 + $0xfa0] sm:$0xff]
        %v1064 = vld [vmem:[%s414 + $0xfa8] sm:$0xff]
        %v1065 = vld [vmem:[%s414 + $0xfb0] sm:$0xff]
        %v1066 = vld [vmem:[%s414 + $0xfb8] sm:$0xff]
        %v1067 = vld [vmem:[%s414 + $0xfc0] sm:$0xff]
        %v1068 = vld [vmem:[%s414 + $0xfc8] sm:$0xff]
        %v1069 = vld [vmem:[%s414 + $0xfd0] sm:$0xff]
        %v1070 = vld [vmem:[%s414 + $0xfd8] sm:$0xff]
        %v1071 = vld [vmem:[%s414 + $0xfe0] sm:$0xff]
        %v1072 = vld [vmem:[%s414 + $0xfe8] sm:$0xff]
        %v1073 = vld [vmem:[%s414 + $0xff0] sm:$0xff]
        %v1074 = vld [vmem:[%s414 + $0xff8] sm:$0xff]
        %v1075 = vld [vmem:[%s414 + $0x1000] sm:$0xff]
        %v1076 = vld [vmem:[%s414 + $0x1008] sm:$0xff]
        %v1077 = vld [vmem:[%s414 + $0x1010] sm:$0xff]
        %v1078 = vld [vmem:[%s414 + $0x1018] sm:$0xff]
        %v1079 = vld [vmem:[%s414 + $0x1020] sm:$0xff]
        %v1080 = vld [vmem:[%s414 + $0x1028] sm:$0xff]
        %v1081 = vld [vmem:[%s414 + $0x1030] sm:$0xff]
        %v1082 = vld [vmem:[%s414 + $0x1038] sm:$0xff]
        %v1083 = vld [vmem:[%s414 + $0x1040] sm:$0xff]
        %v1084 = vld [vmem:[%s414 + $0x1048] sm:$0xff]
        %v1085 = vld [vmem:[%s414 + $0x1050] sm:$0xff]
        %v1086 = vld [vmem:[%s414 + $0x1058] sm:$0xff]
        %v1087 = vld [vmem:[%s414 + $0x1060] sm:$0xff]
        %v1088 = vld [vmem:[%s414 + $0x1068] sm:$0xff]
        %v1089 = vld [vmem:[%s414 + $0x1070] sm:$0xff]
        %v1090 = vld [vmem:[%s414 + $0x1078] sm:$0xff]
        %v1091 = vld [vmem:[%s414 + $0x1080] sm:$0xff]
        %v1092 = vld [vmem:[%s414 + $0x1088] sm:$0xff]
        %v1093 = vld [vmem:[%s414 + $0x1090] sm:$0xff]
        %v1094 = vld [vmem:[%s414 + $0x1098] sm:$0xff]
        %v1095 = vld [vmem:[%s414 + $0x10a0] sm:$0xff]
        %v1096 = vld [vmem:[%s414 + $0x10a8] sm:$0xff]
        %v1097 = vld [vmem:[%s414 + $0x10b0] sm:$0xff]
        %v1098 = vld [vmem:[%s414 + $0x10b8] sm:$0xff]
        %v1099 = vld [vmem:[%s414 + $0x10c0] sm:$0xff]
        %v1100 = vld [vmem:[%s414 + $0x10c8] sm:$0xff]
        %v1101 = vld [vmem:[%s414 + $0x10d0] sm:$0xff]
        %v1102 = vld [vmem:[%s414 + $0x10d8] sm:$0xff]
        %v1103 = vld [vmem:[%s414 + $0x10e0] sm:$0xff]
        %v1104 = vld [vmem:[%s414 + $0x10e8] sm:$0xff]
        %v1105 = vld [vmem:[%s414 + $0x10f0] sm:$0xff]
        %v1106 = vld [vmem:[%s414 + $0x10f8] sm:$0xff]
        %v1107 = vld [vmem:[%s414 + $0x1100] sm:$0xff]
        %v1108 = vld [vmem:[%s414 + $0x1108] sm:$0xff]
        %v1109 = vld [vmem:[%s414 + $0x1110] sm:$0xff]
        %v1110 = vld [vmem:[%s414 + $0x1118] sm:$0xff]
        %v1111 = vld [vmem:[%s414 + $0x1120] sm:$0xff]
        %v1112 = vld [vmem:[%s414 + $0x1128] sm:$0xff]
        %v1113 = vld [vmem:[%s414 + $0x1130] sm:$0xff]
        %v1114 = vld [vmem:[%s414 + $0x1138] sm:$0xff]
        %v1115 = vld [vmem:[%s414 + $0x1140] sm:$0xff]
        %v1116 = vld [vmem:[%s414 + $0x1148] sm:$0xff]
        %v1117 = vld [vmem:[%s414 + $0x1150] sm:$0xff]
        %v1118 = vld [vmem:[%s414 + $0x1158] sm:$0xff]
        %v1119 = vld [vmem:[%s414 + $0x1160] sm:$0xff]
        %v1120 = vld [vmem:[%s414 + $0x1168] sm:$0xff]
        %v1121 = vld [vmem:[%s414 + $0x1170] sm:$0xff]
        %v1122 = vld [vmem:[%s414 + $0x1178] sm:$0xff]
        %v1123 = vld [vmem:[%s414 + $0x1180] sm:$0xff]
        %v1124 = vld [vmem:[%s414 + $0x1188] sm:$0xff]
        %v1125 = vld [vmem:[%s414 + $0x1190] sm:$0xff]
        %v1126 = vld [vmem:[%s414 + $0x1198] sm:$0xff]
        %v1127 = vld [vmem:[%s414 + $0x11a0] sm:$0xff]
        %v1128 = vld [vmem:[%s414 + $0x11a8] sm:$0xff]
        %v1129 = vld [vmem:[%s414 + $0x11b0] sm:$0xff]
        %v1130 = vld [vmem:[%s414 + $0x11b8] sm:$0xff]
        %v1131 = vld [vmem:[%s414 + $0x11c0] sm:$0xff]
        %v1132 = vld [vmem:[%s414 + $0x11c8] sm:$0xff]
        %v1133 = vld [vmem:[%s414 + $0x11d0] sm:$0xff]
        %v1134 = vld [vmem:[%s414 + $0x11d8] sm:$0xff]
        %v1135 = vld [vmem:[%s414 + $0x11e0] sm:$0xff]
        %v1136 = vld [vmem:[%s414 + $0x11e8] sm:$0xff]
        %v1137 = vld [vmem:[%s414 + $0x11f0] sm:$0xff]
        %v1138 = vld [vmem:[%s414 + $0x11f8] sm:$0xff]
        %v1139 = vld [vmem:[%s414 + $0x1200] sm:$0xff]
        %v1140 = vld [vmem:[%s414 + $0x1208] sm:$0xff]
        %v1141 = vld [vmem:[%s414 + $0x1210] sm:$0xff]
        %v1142 = vld [vmem:[%s414 + $0x1218] sm:$0xff]
        %v1143 = vld [vmem:[%s414 + $0x1220] sm:$0xff]
        %v1144 = vld [vmem:[%s414 + $0x1228] sm:$0xff]
        %v1145 = vld [vmem:[%s414 + $0x1230] sm:$0xff]
        %v1146 = vld [vmem:[%s414 + $0x1238] sm:$0xff]
        %v1147 = vld [vmem:[%s414 + $0x1240] sm:$0xff]
        %v1148 = vld [vmem:[%s414 + $0x1248] sm:$0xff]
        %v1149 = vld [vmem:[%s414 + $0x1250] sm:$0xff]
        %v1150 = vld [vmem:[%s414 + $0x1258] sm:$0xff]
        %v1151 = vld [vmem:[%s414 + $0x1260] sm:$0xff]
        %v1152 = vld [vmem:[%s414 + $0x1268] sm:$0xff]
        %v1153 = vld [vmem:[%s414 + $0x1270] sm:$0xff]
        %v1154 = vld [vmem:[%s414 + $0x1278] sm:$0xff]
        %v1155 = vld [vmem:[%s414 + $0x1280] sm:$0xff]
        %v1156 = vld [vmem:[%s414 + $0x1288] sm:$0xff]
        %v1157 = vld [vmem:[%s414 + $0x1290] sm:$0xff]
        %v1158 = vld [vmem:[%s414 + $0x1298] sm:$0xff]
        %v1159 = vld [vmem:[%s414 + $0x12a0] sm:$0xff]
        %v1160 = vld [vmem:[%s414 + $0x12a8] sm:$0xff]
        %v1161 = vld [vmem:[%s414 + $0x12b0] sm:$0xff]
        %v1162 = vld [vmem:[%s414 + $0x12b8] sm:$0xff]
        %v1163 = vld [vmem:[%s414 + $0x12c0] sm:$0xff]
        %v1164 = vld [vmem:[%s414 + $0x12c8] sm:$0xff]
        %v1165 = vld [vmem:[%s414 + $0x12d0] sm:$0xff]
        %v1166 = vld [vmem:[%s414 + $0x12d8] sm:$0xff]
        %v1167 = vld [vmem:[%s414 + $0x12e0] sm:$0xff]
        %v1168 = vld [vmem:[%s414 + $0x12e8] sm:$0xff]
        %v1169 = vld [vmem:[%s414 + $0x12f0] sm:$0xff]
        %v1170 = vld [vmem:[%s414 + $0x12f8] sm:$0xff]
        %v1171 = vld [vmem:[%s414 + $0x1300] sm:$0xff]
        %v1172 = vld [vmem:[%s414 + $0x1308] sm:$0xff]
        %v1173 = vld [vmem:[%s414 + $0x1310] sm:$0xff]
        %v1174 = vld [vmem:[%s414 + $0x1318] sm:$0xff]
        %v1175 = vld [vmem:[%s414 + $0x1320] sm:$0xff]
        %v1176 = vld [vmem:[%s414 + $0x1328] sm:$0xff]
        %v1177 = vld [vmem:[%s414 + $0x1330] sm:$0xff]
        %v1178 = vld [vmem:[%s414 + $0x1338] sm:$0xff]
        %v1179 = vld [vmem:[%s414 + $0x1340] sm:$0xff]
        %v1180 = vld [vmem:[%s414 + $0x1348] sm:$0xff]
        %v1181 = vld [vmem:[%s414 + $0x1350] sm:$0xff]
        %v1182 = vld [vmem:[%s414 + $0x1358] sm:$0xff]
        %v1183 = vld [vmem:[%s414 + $0x1360] sm:$0xff]
        %v1184 = vld [vmem:[%s414 + $0x1368] sm:$0xff]
        %v1185 = vld [vmem:[%s414 + $0x1370] sm:$0xff]
        %v1186 = vld [vmem:[%s414 + $0x1378] sm:$0xff]
        %v1187 = vld [vmem:[%s414 + $0x1380] sm:$0xff]
        %v1188 = vld [vmem:[%s414 + $0x1388] sm:$0xff]
        %v1189 = vld [vmem:[%s414 + $0x1390] sm:$0xff]
        %v1190 = vld [vmem:[%s414 + $0x1398] sm:$0xff]
        %v1191 = vld [vmem:[%s414 + $0x13a0] sm:$0xff]
        %v1192 = vld [vmem:[%s414 + $0x13a8] sm:$0xff]
        %v1193 = vld [vmem:[%s414 + $0x13b0] sm:$0xff]
        %v1194 = vld [vmem:[%s414 + $0x13b8] sm:$0xff]
        %v1195 = vld [vmem:[%s414 + $0x13c0] sm:$0xff]
        %v1196 = vld [vmem:[%s414 + $0x13c8] sm:$0xff]
        %v1197 = vld [vmem:[%s414 + $0x13d0] sm:$0xff]
        %v1198 = vld [vmem:[%s414 + $0x13d8] sm:$0xff]
        %v1199 = vld [vmem:[%s414 + $0x13e0] sm:$0xff]
        %v1200 = vld [vmem:[%s414 + $0x13e8] sm:$0xff]
        %v1201 = vld [vmem:[%s414 + $0x13f0] sm:$0xff]
        %v1202 = vld [vmem:[%s414 + $0x13f8] sm:$0xff]
        %v1203 = vld [vmem:[%s414 + $0x1400] sm:$0xff]
        %v1204 = vld [vmem:[%s414 + $0x1408] sm:$0xff]
        %v1205 = vld [vmem:[%s414 + $0x1410] sm:$0xff]
        %v1206 = vld [vmem:[%s414 + $0x1418] sm:$0xff]
        %v1207 = vld [vmem:[%s414 + $0x1420] sm:$0xff]
        %v1208 = vld [vmem:[%s414 + $0x1428] sm:$0xff]
        %v1209 = vld [vmem:[%s414 + $0x1430] sm:$0xff]
        %v1210 = vld [vmem:[%s414 + $0x1438] sm:$0xff]
        %v1211 = vld [vmem:[%s414 + $0x1440] sm:$0xff]
        %v1212 = vld [vmem:[%s414 + $0x1448] sm:$0xff]
        %v1213 = vld [vmem:[%s414 + $0x1450] sm:$0xff]
        %v1214 = vld [vmem:[%s414 + $0x1458] sm:$0xff]
        %v1215 = vld [vmem:[%s414 + $0x1460] sm:$0xff]
        %v1216 = vld [vmem:[%s414 + $0x1468] sm:$0xff]
        %v1217 = vld [vmem:[%s414 + $0x1470] sm:$0xff]
        %v1218 = vld [vmem:[%s414 + $0x1478] sm:$0xff]
        %v1219 = vld [vmem:[%s414 + $0x1480] sm:$0xff]
        %v1220 = vld [vmem:[%s414 + $0x1488] sm:$0xff]
        %v1221 = vld [vmem:[%s414 + $0x1490] sm:$0xff]
        %v1222 = vld [vmem:[%s414 + $0x1498] sm:$0xff]
        %v1223 = vld [vmem:[%s414 + $0x14a0] sm:$0xff]
        %v1224 = vld [vmem:[%s414 + $0x14a8] sm:$0xff]
        %v1225 = vld [vmem:[%s414 + $0x14b0] sm:$0xff]
        %v1226 = vld [vmem:[%s414 + $0x14b8] sm:$0xff]
        %v1227 = vld [vmem:[%s414 + $0x14c0] sm:$0xff]
        %v1228 = vld [vmem:[%s414 + $0x14c8] sm:$0xff]
        %v1229 = vld [vmem:[%s414 + $0x14d0] sm:$0xff]
        %v1230 = vld [vmem:[%s414 + $0x14d8] sm:$0xff]
        %v1231 = vld [vmem:[%s414 + $0x14e0] sm:$0xff]
        %v1232 = vld [vmem:[%s414 + $0x14e8] sm:$0xff]
        %v1233 = vld [vmem:[%s414 + $0x14f0] sm:$0xff]
        %v1234 = vld [vmem:[%s414 + $0x14f8] sm:$0xff]
        %v1235 = vld [vmem:[%s414 + $0x1500] sm:$0xff]
        %v1236 = vld [vmem:[%s414 + $0x1508] sm:$0xff]
        %v1237 = vld [vmem:[%s414 + $0x1510] sm:$0xff]
        %v1238 = vld [vmem:[%s414 + $0x1518] sm:$0xff]
        %v1239 = vld [vmem:[%s414 + $0x1520] sm:$0xff]
        %v1240 = vld [vmem:[%s414 + $0x1528] sm:$0xff]
        %v1241 = vld [vmem:[%s414 + $0x1530] sm:$0xff]
        %v1242 = vld [vmem:[%s414 + $0x1538] sm:$0xff]
        %v1243 = vld [vmem:[%s414 + $0x1540] sm:$0xff]
        %v1244 = vld [vmem:[%s414 + $0x1548] sm:$0xff]
        %v1245 = vld [vmem:[%s414 + $0x1550] sm:$0xff]
        %v1246 = vld [vmem:[%s414 + $0x1558] sm:$0xff]
        %v1247 = vld [vmem:[%s414 + $0x1560] sm:$0xff]
        %v1248 = vld [vmem:[%s414 + $0x1568] sm:$0xff]
        %v1249 = vld [vmem:[%s414 + $0x1570] sm:$0xff]
        %v1250 = vld [vmem:[%s414 + $0x1578] sm:$0xff]
        %v1251 = vld [vmem:[%s414 + $0x1580] sm:$0xff]
        %v1252 = vld [vmem:[%s414 + $0x1588] sm:$0xff]
        %v1253 = vld [vmem:[%s414 + $0x1590] sm:$0xff]
        %v1254 = vld [vmem:[%s414 + $0x1598] sm:$0xff]
        %v1255 = vld [vmem:[%s414 + $0x15a0] sm:$0xff]
        %v1256 = vld [vmem:[%s414 + $0x15a8] sm:$0xff]
        %v1257 = vld [vmem:[%s414 + $0x15b0] sm:$0xff]
        %v1258 = vld [vmem:[%s414 + $0x15b8] sm:$0xff]
        %v1259 = vld [vmem:[%s414 + $0x15c0] sm:$0xff]
        %v1260 = vld [vmem:[%s414 + $0x15c8] sm:$0xff]
        %v1261 = vld [vmem:[%s414 + $0x15d0] sm:$0xff]
        %v1262 = vld [vmem:[%s414 + $0x15d8] sm:$0xff]
        %v1263 = vld [vmem:[%s414 + $0x15e0] sm:$0xff]
        %v1264 = vld [vmem:[%s414 + $0x15e8] sm:$0xff]
        %v1265 = vld [vmem:[%s414 + $0x15f0] sm:$0xff]
        %v1266 = vld [vmem:[%s414 + $0x15f8] sm:$0xff]
        %1267 = vmatprep.subr.mxu0 %v564
        %1268 = vmatpush1.msra.mxu0 %v563
        %1269 = vmatprep.subr.mxu0 %v566
        %1270 = vmatpush1.msra.mxu0 %v565
        %1271 = vmatprep.subr.mxu0 %v568
        %1272 = vmatpush1.msra.mxu0 %v567
        %1273 = vmatprep.subr.mxu0 %v570
        %1274 = vmatpush1.msra.mxu0 %v569
        %1275 = vmatprep.subr.mxu0 %v572
        %1276 = vmatpush1.msra.mxu0 %v571
        %1277 = vmatprep.subr.mxu0 %v574
        %1278 = vmatpush1.msra.mxu0 %v573
        %1279 = vmatprep.subr.mxu0 %v576
        %1280 = vmatpush1.msra.mxu0 %v575
        %1281 = vmatprep.subr.mxu0 %v578
        %1282 = vmatpush1.msra.mxu0 %v577
        %1283 = vmatprep.subr.mxu0 %v580
        %1284 = vmatpush1.msra.mxu0 %v579
        %1285 = vmatprep.subr.mxu0 %v582
        %1286 = vmatpush1.msra.mxu0 %v581
        %1287 = vmatprep.subr.mxu0 %v584
        %1288 = vmatpush1.msra.mxu0 %v583
        %1289 = vmatprep.subr.mxu0 %v586
        %1290 = vmatpush1.msra.mxu0 %v585
        %1291 = vmatprep.subr.mxu0 %v588
        %1292 = vmatpush1.msra.mxu0 %v587
        %1293 = vmatprep.subr.mxu0 %v590
        %1294 = vmatpush1.msra.mxu0 %v589
        %1295 = vmatprep.subr.mxu0 %v592
        %1296 = vmatpush1.msra.mxu0 %v591
        %1297 = vmatprep.subr.mxu0 %v594
        %1298 = vmatpush1.msra.mxu0 %v593
        %1299 = vmatprep.subr.mxu0 %v596
        %1300 = vmatpush1.msra.mxu0 %v595
        %1301 = vmatprep.subr.mxu0 %v598
        %1302 = vmatpush1.msra.mxu0 %v597
        %1303 = vmatprep.subr.mxu0 %v600
        %1304 = vmatpush1.msra.mxu0 %v599
        %1305 = vmatprep.subr.mxu0 %v602
        %1306 = vmatpush1.msra.mxu0 %v601
        %1307 = vmatprep.subr.mxu0 %v604
        %1308 = vmatpush1.msra.mxu0 %v603
        %1309 = vmatprep.subr.mxu0 %v606
        %1310 = vmatpush1.msra.mxu0 %v605
        %1311 = vmatprep.subr.mxu0 %v608
        %1312 = vmatpush1.msra.mxu0 %v607
        %1313 = vmatprep.subr.mxu0 %v610
        %1314 = vmatpush1.msra.mxu0 %v609
        %1315 = vmatprep.subr.mxu0 %v612
        %1316 = vmatpush1.msra.mxu0 %v611
        %1317 = vmatprep.subr.mxu0 %v614
        %1318 = vmatpush1.msra.mxu0 %v613
        %1319 = vmatprep.subr.mxu0 %v616
        %1320 = vmatpush1.msra.mxu0 %v615
        %1321 = vmatprep.subr.mxu0 %v618
        %1322 = vmatpush1.msra.mxu0 %v617
        %1323 = vmatprep.subr.mxu0 %v620
        %1324 = vmatpush1.msra.mxu0 %v619
        %1325 = vmatprep.subr.mxu0 %v622
        %1326 = vmatpush1.msra.mxu0 %v621
        %1327 = vmatprep.subr.mxu0 %v624
        %1328 = vmatpush1.msra.mxu0 %v623
        %1329 = vmatprep.subr.mxu0 %v626
        %1330 = vmatpush1.msra.mxu0 %v625
        %1331 = vmatprep.mubr.f32.mxu0 %v476
        %1332 = vmatmul.mubr.f32.gmra.mrb[0].mxu0 %v475
        %v1333 = vpop.f32.mrb[0].mxu0
        %v1334 = vadd.f32 0.0, %v1333
        %v1335 = vpop.f32.mrb[0].mxu0
        %v1336 = vadd.f32 0.0, %v1335
        %1337 = vmatprep.mubr.f32.mxu0 %v498
        %1338 = vmatmul.mubr.f32.gmra.mrb[0].mxu0 %v497
        %v1339 = vpop.f32.mrb[0].mxu0
        %v1340 = vadd.f32 0.0, %v1339
        %v1341 = vpop.f32.mrb[0].mxu0
        %v1342 = vadd.f32 0.0, %v1341
        %1343 = vmatprep.mubr.f32.mxu0 %v520
        %1344 = vmatmul.mubr.f32.gmra.mrb[0].mxu0 %v519
        %v1345 = vpop.f32.mrb[0].mxu0
        %v1346 = vadd.f32 0.0, %v1345
        %v1347 = vpop.f32.mrb[0].mxu0
        %v1348 = vadd.f32 0.0, %v1347
        %1349 = vmatprep.mubr.f32.mxu0 %v542
        %1350 = vmatmul.mubr.f32.gmra.mrb[0].mxu0 %v541
        %v1351 = vpop.f32.mrb[0].mxu0
        %v1352 = vadd.f32 0.0, %v1351
        %v1353 = vpop.f32.mrb[0].mxu0
        %v1354 = vadd.f32 0.0, %v1353
        %1355 = vdwg.mxu0
        %1356 = vmatprep.subr.mxu0 %v628
        %1357 = vmatpush1.msra.mxu0 %v627
        %1358 = vmatprep.subr.mxu0 %v630
        %1359 = vmatpush1.msra.mxu0 %v629
        %1360 = vmatprep.subr.mxu0 %v632
        %1361 = vmatpush1.msra.mxu0 %v631
        %1362 = vmatprep.subr.mxu0 %v634
        %1363 = vmatpush1.msra.mxu0 %v633
        %1364 = vmatprep.subr.mxu0 %v636
        %1365 = vmatpush1.msra.mxu0 %v635
        %1366 = vmatprep.subr.mxu0 %v638
        %1367 = vmatpush1.msra.mxu0 %v637
        %1368 = vmatprep.subr.mxu0 %v640
        %1369 = vmatpush1.msra.mxu0 %v639
        %1370 = vmatprep.subr.mxu0 %v642
        %1371 = vmatpush1.msra.mxu0 %v641
        %1372 = vmatprep.subr.mxu0 %v644
        %1373 = vmatpush1.msra.mxu0 %v643
        %1374 = vmatprep.subr.mxu0 %v646
        %1375 = vmatpush1.msra.mxu0 %v645
        %1376 = vmatprep.subr.mxu0 %v648
        %1377 = vmatpush1.msra.mxu0 %v647
        %1378 = vmatprep.subr.mxu0 %v650
        %1379 = vmatpush1.msra.mxu0 %v649
        %1380 = vmatprep.subr.mxu0 %v652
        %1381 = vmatpush1.msra.mxu0 %v651
        %1382 = vmatprep.subr.mxu0 %v654
        %1383 = vmatpush1.msra.mxu0 %v653
        %1384 = vmatprep.subr.mxu0 %v656
        %1385 = vmatpush1.msra.mxu0 %v655
        %1386 = vmatprep.subr.mxu0 %v658
        %1387 = vmatpush1.msra.mxu0 %v657
        %1388 = vmatprep.subr.mxu0 %v660
        %1389 = vmatpush1.msra.mxu0 %v659
        %1390 = vmatprep.subr.mxu0 %v662
        %1391 = vmatpush1.msra.mxu0 %v661
        %1392 = vmatprep.subr.mxu0 %v664
        %1393 = vmatpush1.msra.mxu0 %v663
        %1394 = vmatprep.subr.mxu0 %v666
        %1395 = vmatpush1.msra.mxu0 %v665
        %1396 = vmatprep.subr.mxu0 %v668
        %1397 = vmatpush1.msra.mxu0 %v667
        %1398 = vmatprep.subr.mxu0 %v670
        %1399 = vmatpush1.msra.mxu0 %v669
        %1400 = vmatprep.subr.mxu0 %v672
        %1401 = vmatpush1.msra.mxu0 %v671
        %1402 = vmatprep.subr.mxu0 %v674
        %1403 = vmatpush1.msra.mxu0 %v673
        %1404 = vmatprep.subr.mxu0 %v676
        %1405 = vmatpush1.msra.mxu0 %v675
        %1406 = vmatprep.subr.mxu0 %v678
        %1407 = vmatpush1.msra.mxu0 %v677
        %1408 = vmatprep.subr.mxu0 %v680
        %1409 = vmatpush1.msra.mxu0 %v679
        %1410 = vmatprep.subr.mxu0 %v682
        %1411 = vmatpush1.msra.mxu0 %v681
        %1412 = vmatprep.subr.mxu0 %v684
        %1413 = vmatpush1.msra.mxu0 %v683
        %1414 = vmatprep.subr.mxu0 %v686
        %1415 = vmatpush1.msra.mxu0 %v685
        %1416 = vmatprep.subr.mxu0 %v688
        %1417 = vmatpush1.msra.mxu0 %v687
        %1418 = vmatprep.subr.mxu0 %v690
        %1419 = vmatpush1.msra.mxu0 %v689
        %1420 = vmatprep.mubr.f32.mxu0 %v478
        %1421 = vmatmul.mubr.f32.gmra.mrb[0].mxu0 %v477
        %v1422 = vpop.f32.mrb[0].mxu0
        %v1423 = vadd.f32 %v1334, %v1422
        %v1424 = vpop.f32.mrb[0].mxu0
        %v1425 = vadd.f32 %v1336, %v1424
        %1426 = vmatprep.mubr.f32.mxu0 %v500
        %1427 = vmatmul.mubr.f32.gmra.mrb[0].mxu0 %v499
        %v1428 = vpop.f32.mrb[0].mxu0
        %v1429 = vadd.f32 %v1340, %v1428
        %v1430 = vpop.f32.mrb[0].mxu0
        %v1431 = vadd.f32 %v1342, %v1430
        %1432 = vmatprep.mubr.f32.mxu0 %v522
        %1433 = vmatmul.mubr.f32.gmra.mrb[0].mxu0 %v521
        %v1434 = vpop.f32.mrb[0].mxu0
        %v1435 = vadd.f32 %v1346, %v1434
        %v1436 = vpop.f32.mrb[0].mxu0
        %v1437 = vadd.f32 %v1348, %v1436
        %1438 = vmatprep.mubr.f32.mxu0 %v544
        %1439 = vmatmul.mubr.f32.gmra.mrb[0].mxu0 %v543
        %v1440 = vpop.f32.mrb[0].mxu0
        %v1441 = vadd.f32 %v1352, %v1440
        %v1442 = vpop.f32.mrb[0].mxu0
        %v1443 = vadd.f32 %v1354, %v1442
        %1444 = vdwg.mxu0
        %1445 = vmatprep.subr.mxu0 %v692
        %1446 = vmatpush1.msra.mxu0 %v691
        %1447 = vmatprep.subr.mxu0 %v694
        %1448 = vmatpush1.msra.mxu0 %v693
        %1449 = vmatprep.subr.mxu0 %v696
        %1450 = vmatpush1.msra.mxu0 %v695
        %1451 = vmatprep.subr.mxu0 %v698
        %1452 = vmatpush1.msra.mxu0 %v697
        %1453 = vmatprep.subr.mxu0 %v700
        %1454 = vmatpush1.msra.mxu0 %v699
        %1455 = vmatprep.subr.mxu0 %v702
        %1456 = vmatpush1.msra.mxu0 %v701
        %1457 = vmatprep.subr.mxu0 %v704
        %1458 = vmatpush1.msra.mxu0 %v703
        %1459 = vmatprep.subr.mxu0 %v706
        %1460 = vmatpush1.msra.mxu0 %v705
        %1461 = vmatprep.subr.mxu0 %v708
        %1462 = vmatpush1.msra.mxu0 %v707
        %1463 = vmatprep.subr.mxu0 %v710
        %1464 = vmatpush1.msra.mxu0 %v709
        %1465 = vmatprep.subr.mxu0 %v712
        %1466 = vmatpush1.msra.mxu0 %v711
        %1467 = vmatprep.subr.mxu0 %v714
        %1468 = vmatpush1.msra.mxu0 %v713
        %1469 = vmatprep.subr.mxu0 %v716
        %1470 = vmatpush1.msra.mxu0 %v715
        %1471 = vmatprep.subr.mxu0 %v718
        %1472 = vmatpush1.msra.mxu0 %v717
        %1473 = vmatprep.subr.mxu0 %v720
        %1474 = vmatpush1.msra.mxu0 %v719
        %1475 = vmatprep.subr.mxu0 %v722
        %1476 = vmatpush1.msra.mxu0 %v721
        %1477 = vmatprep.subr.mxu0 %v724
        %1478 = vmatpush1.msra.mxu0 %v723
        %1479 = vmatprep.subr.mxu0 %v726
        %1480 = vmatpush1.msra.mxu0 %v725
        %1481 = vmatprep.subr.mxu0 %v728
        %1482 = vmatpush1.msra.mxu0 %v727
        %1483 = vmatprep.subr.mxu0 %v730
        %1484 = vmatpush1.msra.mxu0 %v729
        %1485 = vmatprep.subr.mxu0 %v732
        %1486 = vmatpush1.msra.mxu0 %v731
        %1487 = vmatprep.subr.mxu0 %v734
        %1488 = vmatpush1.msra.mxu0 %v733
        %1489 = vmatprep.subr.mxu0 %v736
        %1490 = vmatpush1.msra.mxu0 %v735
        %1491 = vmatprep.subr.mxu0 %v738
        %1492 = vmatpush1.msra.mxu0 %v737
        %1493 = vmatprep.subr.mxu0 %v740
        %1494 = vmatpush1.msra.mxu0 %v739
        %1495 = vmatprep.subr.mxu0 %v742
        %1496 = vmatpush1.msra.mxu0 %v741
        %1497 = vmatprep.subr.mxu0 %v744
        %1498 = vmatpush1.msra.mxu0 %v743
        %1499 = vmatprep.subr.mxu0 %v746
        %1500 = vmatpush1.msra.mxu0 %v745
        %1501 = vmatprep.subr.mxu0 %v748
        %1502 = vmatpush1.msra.mxu0 %v747
        %1503 = vmatprep.subr.mxu0 %v750
        %1504 = vmatpush1.msra.mxu0 %v749
        %1505 = vmatprep.subr.mxu0 %v752
        %1506 = vmatpush1.msra.mxu0 %v751
        %1507 = vmatprep.subr.mxu0 %v754
        %1508 = vmatpush1.msra.mxu0 %v753
        %1509 = vmatprep.mubr.f32.mxu0 %v480
        %1510 = vmatmul.mubr.f32.gmra.mrb[0].mxu0 %v479
        %v1511 = vpop.f32.mrb[0].mxu0
        %v1512 = vadd.f32 %v1423, %v1511
        %v1513 = vpop.f32.mrb[0].mxu0
        %v1514 = vadd.f32 %v1425, %v1513
        %1515 = vmatprep.mubr.f32.mxu0 %v502
        %1516 = vmatmul.mubr.f32.gmra.mrb[0].mxu0 %v501
        %v1517 = vpop.f32.mrb[0].mxu0
        %v1518 = vadd.f32 %v1429, %v1517
        %v1519 = vpop.f32.mrb[0].mxu0
        %v1520 = vadd.f32 %v1431, %v1519
        %1521 = vmatprep.mubr.f32.mxu0 %v524
        %1522 = vmatmul.mubr.f32.gmra.mrb[0].mxu0 %v523
        %v1523 = vpop.f32.mrb[0].mxu0
        %v1524 = vadd.f32 %v1435, %v1523
        %v1525 = vpop.f32.mrb[0].mxu0
        %v1526 = vadd.f32 %v1437, %v1525
        %1527 = vmatprep.mubr.f32.mxu0 %v546
        %1528 = vmatmul.mubr.f32.gmra.mrb[0].mxu0 %v545
        %v1529 = vpop.f32.mrb[0].mxu0
        %v1530 = vadd.f32 %v1441, %v1529
        %v1531 = vpop.f32.mrb[0].mxu0
        %v1532 = vadd.f32 %v1443, %v1531
        %1533 = vdwg.mxu0
        %1534 = vmatprep.subr.mxu0 %v756
        %1535 = vmatpush1.msra.mxu0 %v755
        %1536 = vmatprep.subr.mxu0 %v758
        %1537 = vmatpush1.msra.mxu0 %v757
        %1538 = vmatprep.subr.mxu0 %v760
        %1539 = vmatpush1.msra.mxu0 %v759
        %1540 = vmatprep.subr.mxu0 %v762
        %1541 = vmatpush1.msra.mxu0 %v761
        %1542 = vmatprep.subr.mxu0 %v764
        %1543 = vmatpush1.msra.mxu0 %v763
        %1544 = vmatprep.subr.mxu0 %v766
        %1545 = vmatpush1.msra.mxu0 %v765
        %1546 = vmatprep.subr.mxu0 %v768
        %1547 = vmatpush1.msra.mxu0 %v767
        %1548 = vmatprep.subr.mxu0 %v770
        %1549 = vmatpush1.msra.mxu0 %v769
        %1550 = vmatprep.subr.mxu0 %v772
        %1551 = vmatpush1.msra.mxu0 %v771
        %1552 = vmatprep.subr.mxu0 %v774
        %1553 = vmatpush1.msra.mxu0 %v773
        %1554 = vmatprep.subr.mxu0 %v776
        %1555 = vmatpush1.msra.mxu0 %v775
        %1556 = vmatprep.subr.mxu0 %v778
        %1557 = vmatpush1.msra.mxu0 %v777
        %1558 = vmatprep.subr.mxu0 %v780
        %1559 = vmatpush1.msra.mxu0 %v779
        %1560 = vmatprep.subr.mxu0 %v782
        %1561 = vmatpush1.msra.mxu0 %v781
        %1562 = vmatprep.subr.mxu0 %v784
        %1563 = vmatpush1.msra.mxu0 %v783
        %1564 = vmatprep.subr.mxu0 %v786
        %1565 = vmatpush1.msra.mxu0 %v785
        %1566 = vmatprep.subr.mxu0 %v788
        %1567 = vmatpush1.msra.mxu0 %v787
        %1568 = vmatprep.subr.mxu0 %v790
        %1569 = vmatpush1.msra.mxu0 %v789
        %1570 = vmatprep.subr.mxu0 %v792
        %1571 = vmatpush1.msra.mxu0 %v791
        %1572 = vmatprep.subr.mxu0 %v794
        %1573 = vmatpush1.msra.mxu0 %v793
        %1574 = vmatprep.subr.mxu0 %v796
        %1575 = vmatpush1.msra.mxu0 %v795
        %1576 = vmatprep.subr.mxu0 %v798
        %1577 = vmatpush1.msra.mxu0 %v797
        %1578 = vmatprep.subr.mxu0 %v800
        %1579 = vmatpush1.msra.mxu0 %v799
        %1580 = vmatprep.subr.mxu0 %v802
        %1581 = vmatpush1.msra.mxu0 %v801
        %1582 = vmatprep.subr.mxu0 %v804
        %1583 = vmatpush1.msra.mxu0 %v803
        %1584 = vmatprep.subr.mxu0 %v806
        %1585 = vmatpush1.msra.mxu0 %v805
        %1586 = vmatprep.subr.mxu0 %v808
        %1587 = vmatpush1.msra.mxu0 %v807
        %1588 = vmatprep.subr.mxu0 %v810
        %1589 = vmatpush1.msra.mxu0 %v809
        %1590 = vmatprep.subr.mxu0 %v812
        %1591 = vmatpush1.msra.mxu0 %v811
        %1592 = vmatprep.subr.mxu0 %v814
        %1593 = vmatpush1.msra.mxu0 %v813
        %1594 = vmatprep.subr.mxu0 %v816
        %1595 = vmatpush1.msra.mxu0 %v815
        %1596 = vmatprep.subr.mxu0 %v818
        %1597 = vmatpush1.msra.mxu0 %v817
        %1598 = vmatprep.mubr.f32.mxu0 %v482
        %1599 = vmatmul.mubr.f32.gmra.mrb[0].mxu0 %v481
        %v1600 = vpop.f32.mrb[0].mxu0
        %v1601 = vadd.f32 %v1512, %v1600
        %v1602 = vpop.f32.mrb[0].mxu0
        %v1603 = vadd.f32 %v1514, %v1602
        %1604 = vmatprep.mubr.f32.mxu0 %v504
        %1605 = vmatmul.mubr.f32.gmra.mrb[0].mxu0 %v503
        %v1606 = vpop.f32.mrb[0].mxu0
        %v1607 = vadd.f32 %v1518, %v1606
        %v1608 = vpop.f32.mrb[0].mxu0
        %v1609 = vadd.f32 %v1520, %v1608
        %1610 = vmatprep.mubr.f32.mxu0 %v526
        %1611 = vmatmul.mubr.f32.gmra.mrb[0].mxu0 %v525
        %v1612 = vpop.f32.mrb[0].mxu0
        %v1613 = vadd.f32 %v1524, %v1612
        %v1614 = vpop.f32.mrb[0].mxu0
        %v1615 = vadd.f32 %v1526, %v1614
        %1616 = vmatprep.mubr.f32.mxu0 %v548
        %1617 = vmatmul.mubr.f32.gmra.mrb[0].mxu0 %v547
        %v1618 = vpop.f32.mrb[0].mxu0
        %v1619 = vadd.f32 %v1530, %v1618
        %v1620 = vpop.f32.mrb[0].mxu0
        %v1621 = vadd.f32 %v1532, %v1620
        %1622 = vdwg.mxu0
        %1623 = vmatprep.subr.mxu0 %v820
        %1624 = vmatpush1.msra.mxu0 %v819
        %1625 = vmatprep.subr.mxu0 %v822
        %1626 = vmatpush1.msra.mxu0 %v821
        %1627 = vmatprep.subr.mxu0 %v824
        %1628 = vmatpush1.msra.mxu0 %v823
        %1629 = vmatprep.subr.mxu0 %v826
        %1630 = vmatpush1.msra.mxu0 %v825
        %1631 = vmatprep.subr.mxu0 %v828
        %1632 = vmatpush1.msra.mxu0 %v827
        %1633 = vmatprep.subr.mxu0 %v830
        %1634 = vmatpush1.msra.mxu0 %v829
        %1635 = vmatprep.subr.mxu0 %v832
        %1636 = vmatpush1.msra.mxu0 %v831
        %1637 = vmatprep.subr.mxu0 %v834
        %1638 = vmatpush1.msra.mxu0 %v833
        %1639 = vmatprep.subr.mxu0 %v836
        %1640 = vmatpush1.msra.mxu0 %v835
        %1641 = vmatprep.subr.mxu0 %v838
        %1642 = vmatpush1.msra.mxu0 %v837
        %1643 = vmatprep.subr.mxu0 %v840
        %1644 = vmatpush1.msra.mxu0 %v839
        %1645 = vmatprep.subr.mxu0 %v842
        %1646 = vmatpush1.msra.mxu0 %v841
        %1647 = vmatprep.subr.mxu0 %v844
        %1648 = vmatpush1.msra.mxu0 %v843
        %1649 = vmatprep.subr.mxu0 %v846
        %1650 = vmatpush1.msra.mxu0 %v845
        %1651 = vmatprep.subr.mxu0 %v848
        %1652 = vmatpush1.msra.mxu0 %v847
        %1653 = vmatprep.subr.mxu0 %v850
        %1654 = vmatpush1.msra.mxu0 %v849
        %1655 = vmatprep.subr.mxu0 %v852
        %1656 = vmatpush1.msra.mxu0 %v851
        %1657 = vmatprep.subr.mxu0 %v854
        %1658 = vmatpush1.msra.mxu0 %v853
        %1659 = vmatprep.subr.mxu0 %v856
        %1660 = vmatpush1.msra.mxu0 %v855
        %1661 = vmatprep.subr.mxu0 %v858
        %1662 = vmatpush1.msra.mxu0 %v857
        %1663 = vmatprep.subr.mxu0 %v860
        %1664 = vmatpush1.msra.mxu0 %v859
        %1665 = vmatprep.subr.mxu0 %v862
        %1666 = vmatpush1.msra.mxu0 %v861
        %1667 = vmatprep.subr.mxu0 %v864
        %1668 = vmatpush1.msra.mxu0 %v863
        %1669 = vmatprep.subr.mxu0 %v866
        %1670 = vmatpush1.msra.mxu0 %v865
        %1671 = vmatprep.subr.mxu0 %v868
        %1672 = vmatpush1.msra.mxu0 %v867
        %1673 = vmatprep.subr.mxu0 %v870
        %1674 = vmatpush1.msra.mxu0 %v869
        %1675 = vmatprep.subr.mxu0 %v872
        %1676 = vmatpush1.msra.mxu0 %v871
        %1677 = vmatprep.subr.mxu0 %v874
        %1678 = vmatpush1.msra.mxu0 %v873
        %1679 = vmatprep.subr.mxu0 %v876
        %1680 = vmatpush1.msra.mxu0 %v875
        %1681 = vmatprep.subr.mxu0 %v878
        %1682 = vmatpush1.msra.mxu0 %v877
        %1683 = vmatprep.subr.mxu0 %v880
        %1684 = vmatpush1.msra.mxu0 %v879
        %1685 = vmatprep.subr.mxu0 %v882
        %1686 = vmatpush1.msra.mxu0 %v881
        %1687 = vmatprep.mubr.f32.mxu0 %v484
        %1688 = vmatmul.mubr.f32.gmra.mrb[0].mxu0 %v483
        %v1689 = vpop.f32.mrb[0].mxu0
        %v1690 = vadd.f32 %v1601, %v1689
        %v1691 = vpop.f32.mrb[0].mxu0
        %v1692 = vadd.f32 %v1603, %v1691
        %1693 = vmatprep.mubr.f32.mxu0 %v506
        %1694 = vmatmul.mubr.f32.gmra.mrb[0].mxu0 %v505
        %v1695 = vpop.f32.mrb[0].mxu0
        %v1696 = vadd.f32 %v1607, %v1695
        %v1697 = vpop.f32.mrb[0].mxu0
        %v1698 = vadd.f32 %v1609, %v1697
        %1699 = vmatprep.mubr.f32.mxu0 %v528
        %1700 = vmatmul.mubr.f32.gmra.mrb[0].mxu0 %v527
        %v1701 = vpop.f32.mrb[0].mxu0
        %v1702 = vadd.f32 %v1613, %v1701
        %v1703 = vpop.f32.mrb[0].mxu0
        %v1704 = vadd.f32 %v1615, %v1703
        %1705 = vmatprep.mubr.f32.mxu0 %v550
        %1706 = vmatmul.mubr.f32.gmra.mrb[0].mxu0 %v549
        %v1707 = vpop.f32.mrb[0].mxu0
        %v1708 = vadd.f32 %v1619, %v1707
        %v1709 = vpop.f32.mrb[0].mxu0
        %v1710 = vadd.f32 %v1621, %v1709
        %1711 = vdwg.mxu0
        %1712 = vmatprep.subr.mxu0 %v884
        %1713 = vmatpush1.msra.mxu0 %v883
        %1714 = vmatprep.subr.mxu0 %v886
        %1715 = vmatpush1.msra.mxu0 %v885
        %1716 = vmatprep.subr.mxu0 %v888
        %1717 = vmatpush1.msra.mxu0 %v887
        %1718 = vmatprep.subr.mxu0 %v890
        %1719 = vmatpush1.msra.mxu0 %v889
        %1720 = vmatprep.subr.mxu0 %v892
        %1721 = vmatpush1.msra.mxu0 %v891
        %1722 = vmatprep.subr.mxu0 %v894
        %1723 = vmatpush1.msra.mxu0 %v893
        %1724 = vmatprep.subr.mxu0 %v896
        %1725 = vmatpush1.msra.mxu0 %v895
        %1726 = vmatprep.subr.mxu0 %v898
        %1727 = vmatpush1.msra.mxu0 %v897
        %1728 = vmatprep.subr.mxu0 %v900
        %1729 = vmatpush1.msra.mxu0 %v899
        %1730 = vmatprep.subr.mxu0 %v902
        %1731 = vmatpush1.msra.mxu0 %v901
        %1732 = vmatprep.subr.mxu0 %v904
        %1733 = vmatpush1.msra.mxu0 %v903
        %1734 = vmatprep.subr.mxu0 %v906
        %1735 = vmatpush1.msra.mxu0 %v905
        %1736 = vmatprep.subr.mxu0 %v908
        %1737 = vmatpush1.msra.mxu0 %v907
        %1738 = vmatprep.subr.mxu0 %v910
        %1739 = vmatpush1.msra.mxu0 %v909
        %1740 = vmatprep.subr.mxu0 %v912
        %1741 = vmatpush1.msra.mxu0 %v911
        %1742 = vmatprep.subr.mxu0 %v914
        %1743 = vmatpush1.msra.mxu0 %v913
        %1744 = vmatprep.subr.mxu0 %v916
        %1745 = vmatpush1.msra.mxu0 %v915
        %1746 = vmatprep.subr.mxu0 %v918
        %1747 = vmatpush1.msra.mxu0 %v917
        %1748 = vmatprep.subr.mxu0 %v920
        %1749 = vmatpush1.msra.mxu0 %v919
        %1750 = vmatprep.subr.mxu0 %v922
        %1751 = vmatpush1.msra.mxu0 %v921
        %1752 = vmatprep.subr.mxu0 %v924
        %1753 = vmatpush1.msra.mxu0 %v923
        %1754 = vmatprep.subr.mxu0 %v926
        %1755 = vmatpush1.msra.mxu0 %v925
        %1756 = vmatprep.subr.mxu0 %v928
        %1757 = vmatpush1.msra.mxu0 %v927
        %1758 = vmatprep.subr.mxu0 %v930
        %1759 = vmatpush1.msra.mxu0 %v929
        %1760 = vmatprep.subr.mxu0 %v932
        %1761 = vmatpush1.msra.mxu0 %v931
        %1762 = vmatprep.subr.mxu0 %v934
        %1763 = vmatpush1.msra.mxu0 %v933
        %1764 = vmatprep.subr.mxu0 %v936
        %1765 = vmatpush1.msra.mxu0 %v935
        %1766 = vmatprep.subr.mxu0 %v938
        %1767 = vmatpush1.msra.mxu0 %v937
        %1768 = vmatprep.subr.mxu0 %v940
        %1769 = vmatpush1.msra.mxu0 %v939
        %1770 = vmatprep.subr.mxu0 %v942
        %1771 = vmatpush1.msra.mxu0 %v941
        %1772 = vmatprep.subr.mxu0 %v944
        %1773 = vmatpush1.msra.mxu0 %v943
        %1774 = vmatprep.subr.mxu0 %v946
        %1775 = vmatpush1.msra.mxu0 %v945
        %1776 = vmatprep.mubr.f32.mxu0 %v486
        %1777 = vmatmul.mubr.f32.gmra.mrb[0].mxu0 %v485
        %v1778 = vpop.f32.mrb[0].mxu0
        %v1779 = vadd.f32 %v1690, %v1778
        %v1780 = vpop.f32.mrb[0].mxu0
        %v1781 = vadd.f32 %v1692, %v1780
        %1782 = vmatprep.mubr.f32.mxu0 %v508
        %1783 = vmatmul.mubr.f32.gmra.mrb[0].mxu0 %v507
        %v1784 = vpop.f32.mrb[0].mxu0
        %v1785 = vadd.f32 %v1696, %v1784
        %v1786 = vpop.f32.mrb[0].mxu0
        %v1787 = vadd.f32 %v1698, %v1786
        %1788 = vmatprep.mubr.f32.mxu0 %v530
        %1789 = vmatmul.mubr.f32.gmra.mrb[0].mxu0 %v529
        %v1790 = vpop.f32.mrb[0].mxu0
        %v1791 = vadd.f32 %v1702, %v1790
        %v1792 = vpop.f32.mrb[0].mxu0
        %v1793 = vadd.f32 %v1704, %v1792
        %1794 = vmatprep.mubr.f32.mxu0 %v552
        %1795 = vmatmul.mubr.f32.gmra.mrb[0].mxu0 %v551
        %v1796 = vpop.f32.mrb[0].mxu0
        %v1797 = vadd.f32 %v1708, %v1796
        %v1798 = vpop.f32.mrb[0].mxu0
        %v1799 = vadd.f32 %v1710, %v1798
        %1800 = vdwg.mxu0
        %1801 = vmatprep.subr.mxu0 %v948
        %1802 = vmatpush1.msra.mxu0 %v947
        %1803 = vmatprep.subr.mxu0 %v950
        %1804 = vmatpush1.msra.mxu0 %v949
        %1805 = vmatprep.subr.mxu0 %v952
        %1806 = vmatpush1.msra.mxu0 %v951
        %1807 = vmatprep.subr.mxu0 %v954
        %1808 = vmatpush1.msra.mxu0 %v953
        %1809 = vmatprep.subr.mxu0 %v956
        %1810 = vmatpush1.msra.mxu0 %v955
        %1811 = vmatprep.subr.mxu0 %v958
        %1812 = vmatpush1.msra.mxu0 %v957
        %1813 = vmatprep.subr.mxu0 %v960
        %1814 = vmatpush1.msra.mxu0 %v959
        %1815 = vmatprep.subr.mxu0 %v962
        %1816 = vmatpush1.msra.mxu0 %v961
        %1817 = vmatprep.subr.mxu0 %v964
        %1818 = vmatpush1.msra.mxu0 %v963
        %1819 = vmatprep.subr.mxu0 %v966
        %1820 = vmatpush1.msra.mxu0 %v965
        %1821 = vmatprep.subr.mxu0 %v968
        %1822 = vmatpush1.msra.mxu0 %v967
        %1823 = vmatprep.subr.mxu0 %v970
        %1824 = vmatpush1.msra.mxu0 %v969
        %1825 = vmatprep.subr.mxu0 %v972
        %1826 = vmatpush1.msra.mxu0 %v971
        %1827 = vmatprep.subr.mxu0 %v974
        %1828 = vmatpush1.msra.mxu0 %v973
        %1829 = vmatprep.subr.mxu0 %v976
        %1830 = vmatpush1.msra.mxu0 %v975
        %1831 = vmatprep.subr.mxu0 %v978
        %1832 = vmatpush1.msra.mxu0 %v977
        %1833 = vmatprep.subr.mxu0 %v980
        %1834 = vmatpush1.msra.mxu0 %v979
        %1835 = vmatprep.subr.mxu0 %v982
        %1836 = vmatpush1.msra.mxu0 %v981
        %1837 = vmatprep.subr.mxu0 %v984
        %1838 = vmatpush1.msra.mxu0 %v983
        %1839 = vmatprep.subr.mxu0 %v986
        %1840 = vmatpush1.msra.mxu0 %v985
        %1841 = vmatprep.subr.mxu0 %v988
        %1842 = vmatpush1.msra.mxu0 %v987
        %1843 = vmatprep.subr.mxu0 %v990
        %1844 = vmatpush1.msra.mxu0 %v989
        %1845 = vmatprep.subr.mxu0 %v992
        %1846 = vmatpush1.msra.mxu0 %v991
        %1847 = vmatprep.subr.mxu0 %v994
        %1848 = vmatpush1.msra.mxu0 %v993
        %1849 = vmatprep.subr.mxu0 %v996
        %1850 = vmatpush1.msra.mxu0 %v995
        %1851 = vmatprep.subr.mxu0 %v998
        %1852 = vmatpush1.msra.mxu0 %v997
        %1853 = vmatprep.subr.mxu0 %v1000
        %1854 = vmatpush1.msra.mxu0 %v999
        %1855 = vmatprep.subr.mxu0 %v1002
        %1856 = vmatpush1.msra.mxu0 %v1001
        %1857 = vmatprep.subr.mxu0 %v1004
        %1858 = vmatpush1.msra.mxu0 %v1003
        %1859 = vmatprep.subr.mxu0 %v1006
        %1860 = vmatpush1.msra.mxu0 %v1005
        %1861 = vmatprep.subr.mxu0 %v1008
        %1862 = vmatpush1.msra.mxu0 %v1007
        %1863 = vmatprep.subr.mxu0 %v1010
        %1864 = vmatpush1.msra.mxu0 %v1009
        %1865 = vmatprep.mubr.f32.mxu0 %v488
        %1866 = vmatmul.mubr.f32.gmra.mrb[0].mxu0 %v487
        %v1867 = vpop.f32.mrb[0].mxu0
        %v1868 = vadd.f32 %v1779, %v1867
        %v1869 = vpop.f32.mrb[0].mxu0
        %v1870 = vadd.f32 %v1781, %v1869
        %1871 = vmatprep.mubr.f32.mxu0 %v510
        %1872 = vmatmul.mubr.f32.gmra.mrb[0].mxu0 %v509
        %v1873 = vpop.f32.mrb[0].mxu0
        %v1874 = vadd.f32 %v1785, %v1873
        %v1875 = vpop.f32.mrb[0].mxu0
        %v1876 = vadd.f32 %v1787, %v1875
        %1877 = vmatprep.mubr.f32.mxu0 %v532
        %1878 = vmatmul.mubr.f32.gmra.mrb[0].mxu0 %v531
        %v1879 = vpop.f32.mrb[0].mxu0
        %v1880 = vadd.f32 %v1791, %v1879
        %v1881 = vpop.f32.mrb[0].mxu0
        %v1882 = vadd.f32 %v1793, %v1881
        %1883 = vmatprep.mubr.f32.mxu0 %v554
        %1884 = vmatmul.mubr.f32.gmra.mrb[0].mxu0 %v553
        %v1885 = vpop.f32.mrb[0].mxu0
        %v1886 = vadd.f32 %v1797, %v1885
        %v1887 = vpop.f32.mrb[0].mxu0
        %v1888 = vadd.f32 %v1799, %v1887
        %1889 = vdwg.mxu0
        %1890 = vmatprep.subr.mxu0 %v1012
        %1891 = vmatpush1.msra.mxu0 %v1011
        %1892 = vmatprep.subr.mxu0 %v1014
        %1893 = vmatpush1.msra.mxu0 %v1013
        %1894 = vmatprep.subr.mxu0 %v1016
        %1895 = vmatpush1.msra.mxu0 %v1015
        %1896 = vmatprep.subr.mxu0 %v1018
        %1897 = vmatpush1.msra.mxu0 %v1017
        %1898 = vmatprep.subr.mxu0 %v1020
        %1899 = vmatpush1.msra.mxu0 %v1019
        %1900 = vmatprep.subr.mxu0 %v1022
        %1901 = vmatpush1.msra.mxu0 %v1021
        %1902 = vmatprep.subr.mxu0 %v1024
        %1903 = vmatpush1.msra.mxu0 %v1023
        %1904 = vmatprep.subr.mxu0 %v1026
        %1905 = vmatpush1.msra.mxu0 %v1025
        %1906 = vmatprep.subr.mxu0 %v1028
        %1907 = vmatpush1.msra.mxu0 %v1027
        %1908 = vmatprep.subr.mxu0 %v1030
        %1909 = vmatpush1.msra.mxu0 %v1029
        %1910 = vmatprep.subr.mxu0 %v1032
        %1911 = vmatpush1.msra.mxu0 %v1031
        %1912 = vmatprep.subr.mxu0 %v1034
        %1913 = vmatpush1.msra.mxu0 %v1033
        %1914 = vmatprep.subr.mxu0 %v1036
        %1915 = vmatpush1.msra.mxu0 %v1035
        %1916 = vmatprep.subr.mxu0 %v1038
        %1917 = vmatpush1.msra.mxu0 %v1037
        %1918 = vmatprep.subr.mxu0 %v1040
        %1919 = vmatpush1.msra.mxu0 %v1039
        %1920 = vmatprep.subr.mxu0 %v1042
        %1921 = vmatpush1.msra.mxu0 %v1041
        %1922 = vmatprep.subr.mxu0 %v1044
        %1923 = vmatpush1.msra.mxu0 %v1043
        %1924 = vmatprep.subr.mxu0 %v1046
        %1925 = vmatpush1.msra.mxu0 %v1045
        %1926 = vmatprep.subr.mxu0 %v1048
        %1927 = vmatpush1.msra.mxu0 %v1047
        %1928 = vmatprep.subr.mxu0 %v1050
        %1929 = vmatpush1.msra.mxu0 %v1049
        %1930 = vmatprep.subr.mxu0 %v1052
        %1931 = vmatpush1.msra.mxu0 %v1051
        %1932 = vmatprep.subr.mxu0 %v1054
        %1933 = vmatpush1.msra.mxu0 %v1053
        %1934 = vmatprep.subr.mxu0 %v1056
        %1935 = vmatpush1.msra.mxu0 %v1055
        %1936 = vmatprep.subr.mxu0 %v1058
        %1937 = vmatpush1.msra.mxu0 %v1057
        %1938 = vmatprep.subr.mxu0 %v1060
        %1939 = vmatpush1.msra.mxu0 %v1059
        %1940 = vmatprep.subr.mxu0 %v1062
        %1941 = vmatpush1.msra.mxu0 %v1061
        %1942 = vmatprep.subr.mxu0 %v1064
        %1943 = vmatpush1.msra.mxu0 %v1063
        %1944 = vmatprep.subr.mxu0 %v1066
        %1945 = vmatpush1.msra.mxu0 %v1065
        %1946 = vmatprep.subr.mxu0 %v1068
        %1947 = vmatpush1.msra.mxu0 %v1067
        %1948 = vmatprep.subr.mxu0 %v1070
        %1949 = vmatpush1.msra.mxu0 %v1069
        %1950 = vmatprep.subr.mxu0 %v1072
        %1951 = vmatpush1.msra.mxu0 %v1071
        %1952 = vmatprep.subr.mxu0 %v1074
        %1953 = vmatpush1.msra.mxu0 %v1073
        %1954 = vmatprep.mubr.f32.mxu0 %v490
        %1955 = vmatmul.mubr.f32.gmra.mrb[0].mxu0 %v489
        %v1956 = vpop.f32.mrb[0].mxu0
        %v1957 = vadd.f32 %v1868, %v1956
        %v1958 = vpop.f32.mrb[0].mxu0
        %v1959 = vadd.f32 %v1870, %v1958
        %1960 = vmatprep.mubr.f32.mxu0 %v512
        %1961 = vmatmul.mubr.f32.gmra.mrb[0].mxu0 %v511
        %v1962 = vpop.f32.mrb[0].mxu0
        %v1963 = vadd.f32 %v1874, %v1962
        %v1964 = vpop.f32.mrb[0].mxu0
        %v1965 = vadd.f32 %v1876, %v1964
        %1966 = vmatprep.mubr.f32.mxu0 %v534
        %1967 = vmatmul.mubr.f32.gmra.mrb[0].mxu0 %v533
        %v1968 = vpop.f32.mrb[0].mxu0
        %v1969 = vadd.f32 %v1880, %v1968
        %v1970 = vpop.f32.mrb[0].mxu0
        %v1971 = vadd.f32 %v1882, %v1970
        %1972 = vmatprep.mubr.f32.mxu0 %v556
        %1973 = vmatmul.mubr.f32.gmra.mrb[0].mxu0 %v555
        %v1974 = vpop.f32.mrb[0].mxu0
        %v1975 = vadd.f32 %v1886, %v1974
        %v1976 = vpop.f32.mrb[0].mxu0
        %v1977 = vadd.f32 %v1888, %v1976
        %1978 = vdwg.mxu0
        %1979 = vmatprep.subr.mxu0 %v1076
        %1980 = vmatpush1.msra.mxu0 %v1075
        %1981 = vmatprep.subr.mxu0 %v1078
        %1982 = vmatpush1.msra.mxu0 %v1077
        %1983 = vmatprep.subr.mxu0 %v1080
        %1984 = vmatpush1.msra.mxu0 %v1079
        %1985 = vmatprep.subr.mxu0 %v1082
        %1986 = vmatpush1.msra.mxu0 %v1081
        %1987 = vmatprep.subr.mxu0 %v1084
        %1988 = vmatpush1.msra.mxu0 %v1083
        %1989 = vmatprep.subr.mxu0 %v1086
        %1990 = vmatpush1.msra.mxu0 %v1085
        %1991 = vmatprep.subr.mxu0 %v1088
        %1992 = vmatpush1.msra.mxu0 %v1087
        %1993 = vmatprep.subr.mxu0 %v1090
        %1994 = vmatpush1.msra.mxu0 %v1089
        %1995 = vmatprep.subr.mxu0 %v1092
        %1996 = vmatpush1.msra.mxu0 %v1091
        %1997 = vmatprep.subr.mxu0 %v1094
        %1998 = vmatpush1.msra.mxu0 %v1093
        %1999 = vmatprep.subr.mxu0 %v1096
        %2000 = vmatpush1.msra.mxu0 %v1095
        %2001 = vmatprep.subr.mxu0 %v1098
        %2002 = vmatpush1.msra.mxu0 %v1097
        %2003 = vmatprep.subr.mxu0 %v1100
        %2004 = vmatpush1.msra.mxu0 %v1099
        %2005 = vmatprep.subr.mxu0 %v1102
        %2006 = vmatpush1.msra.mxu0 %v1101
        %2007 = vmatprep.subr.mxu0 %v1104
        %2008 = vmatpush1.msra.mxu0 %v1103
        %2009 = vmatprep.subr.mxu0 %v1106
        %2010 = vmatpush1.msra.mxu0 %v1105
        %2011 = vmatprep.subr.mxu0 %v1108
        %2012 = vmatpush1.msra.mxu0 %v1107
        %2013 = vmatprep.subr.mxu0 %v1110
        %2014 = vmatpush1.msra.mxu0 %v1109
        %2015 = vmatprep.subr.mxu0 %v1112
        %2016 = vmatpush1.msra.mxu0 %v1111
        %2017 = vmatprep.subr.mxu0 %v1114
        %2018 = vmatpush1.msra.mxu0 %v1113
        %2019 = vmatprep.subr.mxu0 %v1116
        %2020 = vmatpush1.msra.mxu0 %v1115
        %2021 = vmatprep.subr.mxu0 %v1118
        %2022 = vmatpush1.msra.mxu0 %v1117
        %2023 = vmatprep.subr.mxu0 %v1120
        %2024 = vmatpush1.msra.mxu0 %v1119
        %2025 = vmatprep.subr.mxu0 %v1122
        %2026 = vmatpush1.msra.mxu0 %v1121
        %2027 = vmatprep.subr.mxu0 %v1124
        %2028 = vmatpush1.msra.mxu0 %v1123
        %2029 = vmatprep.subr.mxu0 %v1126
        %2030 = vmatpush1.msra.mxu0 %v1125
        %2031 = vmatprep.subr.mxu0 %v1128
        %2032 = vmatpush1.msra.mxu0 %v1127
        %2033 = vmatprep.subr.mxu0 %v1130
        %2034 = vmatpush1.msra.mxu0 %v1129
        %2035 = vmatprep.subr.mxu0 %v1132
        %2036 = vmatpush1.msra.mxu0 %v1131
        %2037 = vmatprep.subr.mxu0 %v1134
        %2038 = vmatpush1.msra.mxu0 %v1133
        %2039 = vmatprep.subr.mxu0 %v1136
        %2040 = vmatpush1.msra.mxu0 %v1135
        %2041 = vmatprep.subr.mxu0 %v1138
        %2042 = vmatpush1.msra.mxu0 %v1137
        %2043 = vmatprep.mubr.f32.mxu0 %v492
        %2044 = vmatmul.mubr.f32.gmra.mrb[0].mxu0 %v491
        %v2045 = vpop.f32.mrb[0].mxu0
        %v2046 = vadd.f32 %v1957, %v2045
        %v2047 = vpop.f32.mrb[0].mxu0
        %v2048 = vadd.f32 %v1959, %v2047
        %2049 = vmatprep.mubr.f32.mxu0 %v514
        %2050 = vmatmul.mubr.f32.gmra.mrb[0].mxu0 %v513
        %v2051 = vpop.f32.mrb[0].mxu0
        %v2052 = vadd.f32 %v1963, %v2051
        %v2053 = vpop.f32.mrb[0].mxu0
        %v2054 = vadd.f32 %v1965, %v2053
        %2055 = vmatprep.mubr.f32.mxu0 %v536
        %2056 = vmatmul.mubr.f32.gmra.mrb[0].mxu0 %v535
        %v2057 = vpop.f32.mrb[0].mxu0
        %v2058 = vadd.f32 %v1969, %v2057
        %v2059 = vpop.f32.mrb[0].mxu0
        %v2060 = vadd.f32 %v1971, %v2059
        %2061 = vmatprep.mubr.f32.mxu0 %v558
        %2062 = vmatmul.mubr.f32.gmra.mrb[0].mxu0 %v557
        %v2063 = vpop.f32.mrb[0].mxu0
        %v2064 = vadd.f32 %v1975, %v2063
        %v2065 = vpop.f32.mrb[0].mxu0
        %v2066 = vadd.f32 %v1977, %v2065
        %2067 = vdwg.mxu0
        %2068 = vmatprep.subr.mxu0 %v1140
        %2069 = vmatpush1.msra.mxu0 %v1139
        %2070 = vmatprep.subr.mxu0 %v1142
        %2071 = vmatpush1.msra.mxu0 %v1141
        %2072 = vmatprep.subr.mxu0 %v1144
        %2073 = vmatpush1.msra.mxu0 %v1143
        %2074 = vmatprep.subr.mxu0 %v1146
        %2075 = vmatpush1.msra.mxu0 %v1145
        %2076 = vmatprep.subr.mxu0 %v1148
        %2077 = vmatpush1.msra.mxu0 %v1147
        %2078 = vmatprep.subr.mxu0 %v1150
        %2079 = vmatpush1.msra.mxu0 %v1149
        %2080 = vmatprep.subr.mxu0 %v1152
        %2081 = vmatpush1.msra.mxu0 %v1151
        %2082 = vmatprep.subr.mxu0 %v1154
        %2083 = vmatpush1.msra.mxu0 %v1153
        %2084 = vmatprep.subr.mxu0 %v1156
        %2085 = vmatpush1.msra.mxu0 %v1155
        %2086 = vmatprep.subr.mxu0 %v1158
        %2087 = vmatpush1.msra.mxu0 %v1157
        %2088 = vmatprep.subr.mxu0 %v1160
        %2089 = vmatpush1.msra.mxu0 %v1159
        %2090 = vmatprep.subr.mxu0 %v1162
        %2091 = vmatpush1.msra.mxu0 %v1161
        %2092 = vmatprep.subr.mxu0 %v1164
        %2093 = vmatpush1.msra.mxu0 %v1163
        %2094 = vmatprep.subr.mxu0 %v1166
        %2095 = vmatpush1.msra.mxu0 %v1165
        %2096 = vmatprep.subr.mxu0 %v1168
        %2097 = vmatpush1.msra.mxu0 %v1167
        %2098 = vmatprep.subr.mxu0 %v1170
        %2099 = vmatpush1.msra.mxu0 %v1169
        %2100 = vmatprep.subr.mxu0 %v1172
        %2101 = vmatpush1.msra.mxu0 %v1171
        %2102 = vmatprep.subr.mxu0 %v1174
        %2103 = vmatpush1.msra.mxu0 %v1173
        %2104 = vmatprep.subr.mxu0 %v1176
        %2105 = vmatpush1.msra.mxu0 %v1175
        %2106 = vmatprep.subr.mxu0 %v1178
        %2107 = vmatpush1.msra.mxu0 %v1177
        %2108 = vmatprep.subr.mxu0 %v1180
        %2109 = vmatpush1.msra.mxu0 %v1179
        %2110 = vmatprep.subr.mxu0 %v1182
        %2111 = vmatpush1.msra.mxu0 %v1181
        %2112 = vmatprep.subr.mxu0 %v1184
        %2113 = vmatpush1.msra.mxu0 %v1183
        %2114 = vmatprep.subr.mxu0 %v1186
        %2115 = vmatpush1.msra.mxu0 %v1185
        %2116 = vmatprep.subr.mxu0 %v1188
        %2117 = vmatpush1.msra.mxu0 %v1187
        %2118 = vmatprep.subr.mxu0 %v1190
        %2119 = vmatpush1.msra.mxu0 %v1189
        %2120 = vmatprep.subr.mxu0 %v1192
        %2121 = vmatpush1.msra.mxu0 %v1191
        %2122 = vmatprep.subr.mxu0 %v1194
        %2123 = vmatpush1.msra.mxu0 %v1193
        %2124 = vmatprep.subr.mxu0 %v1196
        %2125 = vmatpush1.msra.mxu0 %v1195
        %2126 = vmatprep.subr.mxu0 %v1198
        %2127 = vmatpush1.msra.mxu0 %v1197
        %2128 = vmatprep.subr.mxu0 %v1200
        %2129 = vmatpush1.msra.mxu0 %v1199
        %2130 = vmatprep.subr.mxu0 %v1202
        %2131 = vmatpush1.msra.mxu0 %v1201
        %2132 = vmatprep.mubr.f32.mxu0 %v494
        %2133 = vmatmul.mubr.f32.gmra.mrb[0].mxu0 %v493
        %v2134 = vpop.f32.mrb[0].mxu0
        %v2135 = vadd.f32 %v2046, %v2134
        %v2136 = vpop.f32.mrb[0].mxu0
        %v2137 = vadd.f32 %v2048, %v2136
        %2138 = vmatprep.mubr.f32.mxu0 %v516
        %2139 = vmatmul.mubr.f32.gmra.mrb[0].mxu0 %v515
        %v2140 = vpop.f32.mrb[0].mxu0
        %v2141 = vadd.f32 %v2052, %v2140
        %v2142 = vpop.f32.mrb[0].mxu0
        %v2143 = vadd.f32 %v2054, %v2142
        %2144 = vmatprep.mubr.f32.mxu0 %v538
        %2145 = vmatmul.mubr.f32.gmra.mrb[0].mxu0 %v537
        %v2146 = vpop.f32.mrb[0].mxu0
        %v2147 = vadd.f32 %v2058, %v2146
        %v2148 = vpop.f32.mrb[0].mxu0
        %v2149 = vadd.f32 %v2060, %v2148
        %2150 = vmatprep.mubr.f32.mxu0 %v560
        %2151 = vmatmul.mubr.f32.gmra.mrb[0].mxu0 %v559
        %v2152 = vpop.f32.mrb[0].mxu0
        %v2153 = vadd.f32 %v2064, %v2152
        %v2154 = vpop.f32.mrb[0].mxu0
        %v2155 = vadd.f32 %v2066, %v2154
        %2156 = vdwg.mxu0
        %2157 = vmatprep.subr.mxu0 %v1204
        %2158 = vmatpush1.msra.mxu0 %v1203
        %2159 = vmatprep.subr.mxu0 %v1206
        %2160 = vmatpush1.msra.mxu0 %v1205
        %2161 = vmatprep.subr.mxu0 %v1208
        %2162 = vmatpush1.msra.mxu0 %v1207
        %2163 = vmatprep.subr.mxu0 %v1210
        %2164 = vmatpush1.msra.mxu0 %v1209
        %2165 = vmatprep.subr.mxu0 %v1212
        %2166 = vmatpush1.msra.mxu0 %v1211
        %2167 = vmatprep.subr.mxu0 %v1214
        %2168 = vmatpush1.msra.mxu0 %v1213
        %2169 = vmatprep.subr.mxu0 %v1216
        %2170 = vmatpush1.msra.mxu0 %v1215
        %2171 = vmatprep.subr.mxu0 %v1218
        %2172 = vmatpush1.msra.mxu0 %v1217
        %2173 = vmatprep.subr.mxu0 %v1220
        %2174 = vmatpush1.msra.mxu0 %v1219
        %2175 = vmatprep.subr.mxu0 %v1222
        %2176 = vmatpush1.msra.mxu0 %v1221
        %2177 = vmatprep.subr.mxu0 %v1224
        %2178 = vmatpush1.msra.mxu0 %v1223
        %2179 = vmatprep.subr.mxu0 %v1226
        %2180 = vmatpush1.msra.mxu0 %v1225
        %2181 = vmatprep.subr.mxu0 %v1228
        %2182 = vmatpush1.msra.mxu0 %v1227
        %2183 = vmatprep.subr.mxu0 %v1230
        %2184 = vmatpush1.msra.mxu0 %v1229
        %2185 = vmatprep.subr.mxu0 %v1232
        %2186 = vmatpush1.msra.mxu0 %v1231
        %2187 = vmatprep.subr.mxu0 %v1234
        %2188 = vmatpush1.msra.mxu0 %v1233
        %2189 = vmatprep.subr.mxu0 %v1236
        %2190 = vmatpush1.msra.mxu0 %v1235
        %2191 = vmatprep.subr.mxu0 %v1238
        %2192 = vmatpush1.msra.mxu0 %v1237
        %2193 = vmatprep.subr.mxu0 %v1240
        %2194 = vmatpush1.msra.mxu0 %v1239
        %2195 = vmatprep.subr.mxu0 %v1242
        %2196 = vmatpush1.msra.mxu0 %v1241
        %2197 = vmatprep.subr.mxu0 %v1244
        %2198 = vmatpush1.msra.mxu0 %v1243
        %2199 = vmatprep.subr.mxu0 %v1246
        %2200 = vmatpush1.msra.mxu0 %v1245
        %2201 = vmatprep.subr.mxu0 %v1248
        %2202 = vmatpush1.msra.mxu0 %v1247
        %2203 = vmatprep.subr.mxu0 %v1250
        %2204 = vmatpush1.msra.mxu0 %v1249
        %2205 = vmatprep.subr.mxu0 %v1252
        %2206 = vmatpush1.msra.mxu0 %v1251
        %2207 = vmatprep.subr.mxu0 %v1254
        %2208 = vmatpush1.msra.mxu0 %v1253
        %2209 = vmatprep.subr.mxu0 %v1256
        %2210 = vmatpush1.msra.mxu0 %v1255
        %2211 = vmatprep.subr.mxu0 %v1258
        %2212 = vmatpush1.msra.mxu0 %v1257
        %2213 = vmatprep.subr.mxu0 %v1260
        %2214 = vmatpush1.msra.mxu0 %v1259
        %2215 = vmatprep.subr.mxu0 %v1262
        %2216 = vmatpush1.msra.mxu0 %v1261
        %2217 = vmatprep.subr.mxu0 %v1264
        %2218 = vmatpush1.msra.mxu0 %v1263
        %2219 = vmatprep.subr.mxu0 %v1266
        %2220 = vmatpush1.msra.mxu0 %v1265
        %2221 = vmatprep.mubr.f32.mxu0 %v496
        %2222 = vmatmul.mubr.f32.gmra.mrb[0].mxu0 %v495
        %v2223 = vpop.f32.mrb[0].mxu0
        %v2224 = vadd.f32 %v2135, %v2223
        %v2225 = vpop.f32.mrb[0].mxu0
        %v2226 = vadd.f32 %v2137, %v2225
        %2227 = vmatprep.mubr.f32.mxu0 %v518
        %2228 = vmatmul.mubr.f32.gmra.mrb[0].mxu0 %v517
        %v2229 = vpop.f32.mrb[0].mxu0
        %v2230 = vadd.f32 %v2141, %v2229
        %v2231 = vpop.f32.mrb[0].mxu0
        %v2232 = vadd.f32 %v2143, %v2231
        %2233 = vmatprep.mubr.f32.mxu0 %v540
        %2234 = vmatmul.mubr.f32.gmra.mrb[0].mxu0 %v539
        %v2235 = vpop.f32.mrb[0].mxu0
        %v2236 = vadd.f32 %v2147, %v2235
        %v2237 = vpop.f32.mrb[0].mxu0
        %v2238 = vadd.f32 %v2149, %v2237
        %2239 = vmatprep.mubr.f32.mxu0 %v562
        %2240 = vmatmul.mubr.f32.gmra.mrb[0].mxu0 %v561
        %v2241 = vpop.f32.mrb[0].mxu0
        %v2242 = vadd.f32 %v2153, %v2241
        %v2243 = vpop.f32.mrb[0].mxu0
        %v2244 = vadd.f32 %v2155, %v2243
        %2245 = vdwg.mxu0
        %v2246 = vadd.f32 %v467, %v2224
        %v2247 = vadd.f32 %v468, %v2226
        %v2248 = vadd.f32 %v469, %v2230
        %v2249 = vadd.f32 %v470, %v2232
        %v2250 = vadd.f32 %v471, %v2236
        %v2251 = vadd.f32 %v472, %v2238
        %v2252 = vadd.f32 %v473, %v2242
        %v2253 = vadd.f32 %v474, %v2244
        %2254 = vst [vmem:[#allocation2] sm:$0xff] %v2246
        %2255 = vst [vmem:[#allocation2 + $0x8] sm:$0xff] %v2247
        %2256 = vst [vmem:[#allocation2 + $0x10] sm:$0xff] %v2248
        %2257 = vst [vmem:[#allocation2 + $0x18] sm:$0xff] %v2249
        %2258 = vst [vmem:[#allocation2 + $0x20] sm:$0xff] %v2250
        %2259 = vst [vmem:[#allocation2 + $0x28] sm:$0xff] %v2251
        %2260 = vst [vmem:[#allocation2 + $0x30] sm:$0xff] %v2252
        %2261 = vst [vmem:[#allocation2 + $0x38] sm:$0xff] %v2253
        %p2262 = scmp.eq.s32.totalorder %s24, 8
        // Predicated region
        $region64: #{_lambda_.5} parent=50 // pred_check
          %p2263 = pneg %p2262
        $region65: #{_lambda_.5} parent=50 // pred_check_branch
          %2265 = sbr.rel (%p2263) target = $region67
        $region66: #{_lambda_.5} parent=50 // pred_region
          %v2266 = vld [vmem:[#allocation2] sm:$0xff]
          %v2267 = vld [vmem:[#allocation2 + $0x8] sm:$0xff]
          %v2268 = vld [vmem:[#allocation2 + $0x10] sm:$0xff]
          %v2269 = vld [vmem:[#allocation2 + $0x18] sm:$0xff]
          %v2270 = vld [vmem:[#allocation2 + $0x20] sm:$0xff]
          %v2271 = vld [vmem:[#allocation2 + $0x28] sm:$0xff]
          %v2272 = vld [vmem:[#allocation2 + $0x30] sm:$0xff]
          %v2273 = vld [vmem:[#allocation2 + $0x38] sm:$0xff]
          %v2274 = vld [vmem:[%s451] sm:$0x3]
          %v2276 = vlaneseq
          %v2277 = vshrl.u32 %v2276, 7
          %v2278 = vsub.s32 0, %v2277
          %v2279 = vrot.slane %v2274, %v2278
          %v2280 = vlaneseq
          %v2281 = vshrl.u32 %v2280, 7
          %v2282 = vsub.s32 1, %v2281
          %v2283 = vrot.slane %v2274, %v2282
          %v2286 = vadd.f32 %v2266, %v2279
          %v2287 = vadd.f32 %v2267, %v2283
          %v2288 = vadd.f32 %v2268, %v2279
          %v2289 = vadd.f32 %v2269, %v2283
          %v2290 = vadd.f32 %v2270, %v2279
          %v2291 = vadd.f32 %v2271, %v2283
          %v2292 = vadd.f32 %v2272, %v2279
          %v2293 = vadd.f32 %v2273, %v2283
          %v2294 = vmax.f32 %v2286, 0.0
          %v2295 = vmax.f32 %v2287, 0.0
          %v2296 = vmax.f32 %v2288, 0.0
          %v2297 = vmax.f32 %v2289, 0.0
          %v2298 = vmax.f32 %v2290, 0.0
          %v2299 = vmax.f32 %v2291, 0.0
          %v2300 = vmax.f32 %v2292, 0.0
          %v2301 = vmax.f32 %v2293, 0.0
          %2302 = vst [vmem:[%s443] sm:$0xff] %v2294
          %2303 = vst [vmem:[%s443 + $0x8] sm:$0xff] %v2295
          %2304 = vst [vmem:[%s443 + $0x10] sm:$0xff] %v2296
          %2305 = vst [vmem:[%s443 + $0x18] sm:$0xff] %v2297
          %2306 = vst [vmem:[%s443 + $0x20] sm:$0xff] %v2298
          %2307 = vst [vmem:[%s443 + $0x28] sm:$0xff] %v2299
          %2308 = vst [vmem:[%s443 + $0x30] sm:$0xff] %v2300
          %2309 = vst [vmem:[%s443 + $0x38] sm:$0xff] %v2301
        $region67: #{_lambda_.5} parent=50 // pred_fallthru
          _
        %s2310 = sand.u32 %s128, 1
        %s2311 = sand.u32 %s128, 1
        %s2312 = smul.addr %s2311, 64
        %s2313 = scalar_lea.vmem [#allocation6], %s2312
        // Predicated region
        $region68: #{_lambda_.5} parent=50 // pred_check
          %p2314 = pneg %p138
        $region69: #{_lambda_.5} parent=50 // pred_check_branch
          %2316 = sbr.rel (%p2314) target = $region71
        $region70: #{_lambda_.5} parent=50 // pred_region
          %s2317 = smul.u32 4, %s22
          %s2318 = smul.u32 2, %s23
          %s2319 = smul.addr %s2317, 4
          %s2320 = sadd.s32 %s2318, %s2319
          %s2321 = smul.addr %s2320, 8
          %s2322 = scalar_lea.vmem %s3, %s2321
          // Predicated region
          $region72: #{_lambda_.5} parent=70 // pred_check
            _
          $region73: #{_lambda_.5} parent=70 // pred_check_branch
            %2324 = sbr.rel (0) target = $region75
          $region74: #{_lambda_.5} parent=70 // pred_region
            // Predicated region
            $region76: #{_lambda_.5} parent=74 // pred_check
              _
            $region77: #{_lambda_.5} parent=74 // pred_check_branch
              %2326 = sbr.rel (0) target = $region79
            $region78: #{_lambda_.5} parent=74 // pred_region
              loop: start=0, step=1, limit=1
              $region80: #{_lambda_.5} parent=78 // loop_pre_header
                _
              $region81: #{_lambda_.5} parent=78 // loop_header
                %s2328 = sphi 0, %s2332
                %p2329 = scmp.ge.s32.totalorder %s2328, 1
                %s2333 = sphi %s2313, %s2313
                %s2334 = sphi %s2322, %s2322
              $region82: #{_lambda_.5} parent=78 // loop_header_branch
                %2331 = sbr.rel (%p2329) target = $region86
              $region83: #{_lambda_.5} parent=78 // loop_body
                %v2335 = vld [vmem:[%s2333] sm:$0xff]
                %2336 = vst [vmem:[%s2334] sm:$0xff] %v2335
                %v2337 = vld [vmem:[%s2333 + $0x8] sm:$0xff]
                %2338 = vst [vmem:[%s2334 + $0x8] sm:$0xff] %v2337
                %v2339 = vld [vmem:[%s2333 + $0x10] sm:$0xff]
                %2340 = vst [vmem:[%s2334 + $0x20] sm:$0xff] %v2339
                %v2341 = vld [vmem:[%s2333 + $0x18] sm:$0xff]
                %2342 = vst [vmem:[%s2334 + $0x28] sm:$0xff] %v2341
                %v2343 = vld [vmem:[%s2333 + $0x20] sm:$0xff]
                %2344 = vst [vmem:[%s2334 + $0x40] sm:$0xff] %v2343
                %v2345 = vld [vmem:[%s2333 + $0x28] sm:$0xff]
                %2346 = vst [vmem:[%s2334 + $0x48] sm:$0xff] %v2345
                %v2347 = vld [vmem:[%s2333 + $0x30] sm:$0xff]
                %2348 = vst [vmem:[%s2334 + $0x60] sm:$0xff] %v2347
                %v2349 = vld [vmem:[%s2333 + $0x38] sm:$0xff]
                %2350 = vst [vmem:[%s2334 + $0x68] sm:$0xff] %v2349
              $region84: #{_lambda_.5} parent=78 // loop_footer
                %s2332 = sadd.s32 1, %s2328
              $region85: #{_lambda_.5} parent=78 // loop_footer_branch
                %2327 = sbr.rel target = $region81
              $region86: #{_lambda_.5} parent=78 // loop_exit
                _
            $region79: #{_lambda_.5} parent=74 // pred_fallthru
              _
            // Predicated region
            $region87: #{_lambda_.5} parent=74 // pred_check
              _
            $region88: #{_lambda_.5} parent=74 // pred_check_branch
              %2352 = sbr.rel target = $region90
            $region89: #{_lambda_.5} parent=74 // pred_region
              _
            $region90: #{_lambda_.5} parent=74 // pred_fallthru
              _
          $region75: #{_lambda_.5} parent=70 // pred_fallthru
            _
          %2353 = vnop
        $region71: #{_lambda_.5} parent=50 // pred_fallthru
          _
      $region51: #{_lambda_.5} parent=5 // pred_fallthru
        _
      %p2354 = scmp.le.s32.totalorder 2, %s12
      // Predicated region
      $region91: #{_lambda_.5} parent=5 // pred_check
        %p2355 = pneg %p2354
      $region92: #{_lambda_.5} parent=5 // pred_check_branch
        %2357 = sbr.rel (%p2355) target = $region94
      $region93: #{_lambda_.5} parent=5 // pred_region
        %s2358 = ssub.s32 %s12, 2
        // Predicated region
        $region95: #{_lambda_.5} parent=93 // pred_check
          %p2359 = pneg %p144
        $region96: #{_lambda_.5} parent=93 // pred_check_branch
          %2361 = sbr.rel (%p2359) target = $region98
        $region97: #{_lambda_.5} parent=93 // pred_region
          %s2362 = sand.u32 %s129, 1
          %s2363 = sand.u32 %s129, 1
          %s2364 = smul.addr %s2363, 64
          %s2365 = scalar_lea.vmem [#allocation6], %s2364
        $region98: #{_lambda_.5} parent=93 // pred_fallthru
          _
      $region94: #{_lambda_.5} parent=5 // pred_fallthru
        _
    $region6: #{_lambda_.5} parent=1 // loop_footer
      %s16 = sadd.s32 1, %s12
    $region7: #{_lambda_.5} parent=1 // loop_footer_branch
      %11 = sbr.rel target = $region3
    $region8: #{_lambda_.5} parent=1 // loop_exit
      _
    %2366 = vsyncpa [#allocation5], 1
    %s2367 = scalar_lea.sflag [#allocation5], 1
    %2368 = vsyncpa %s2367, 1

// kernel: _lambda_.6
$region0: #{_lambda_.6}
  #allocation0 [shape = 'u32[]', space=smem, size = 0x4, offset = 0x4, fixed_abs, tag = 'smem constant byte address 0x4 - core index']
  #allocation1 [shape = 'u32[144,128]{1,0:T(1,128)}', space=vmem, size = 0x12000, scoped, tag = 'internal scratch']
  %s0 = inlined_call_operand.vmem [shape: f32[32,512], index: 0, kind: input, shape index: {}]
  %s1 = inlined_call_operand.vmem [shape: f32[512,1024], index: 1, kind: input, shape index: {}]
  %s2 = inlined_call_operand.vmem [shape: f32[1,1024], index: 2, kind: input, shape index: {}]
  %s3 = inlined_call_operand.vmem [shape: f32[32,1024], index: 3, kind: output, shape index: {}]
  %s4 = sld [smem:[#allocation0]]
  $region87: #{_lambda_.6} parent=0
    _
  %s6 = ssub.s32 1, %s4
  %s7 = scalar_select 0, %s6, %s4
  $region1: #{_lambda_.6} parent=0
    #allocation2 [shape = 'u8[2097152]{0}', space=vmem, size = 0x200000, scoped, tag = 'input window, operand 1']
    #allocation3 [shape = 'u8[131072]{0}', space=vmem, size = 0x20000, scoped, tag = 'output window, operand 0']
    loop: start=0, step=1, limit=4
    $region2: #{_lambda_.6} parent=1 // loop_pre_header
      _
    $region3: #{_lambda_.6} parent=1 // loop_header
      %s9 = sphi 0, %s13
      %p10 = scmp.ge.s32.totalorder %s9, 4
      %s16 = sphi 0, %s28
      %s17 = sphi 0, %s24
      %s18 = sphi 0, %s16
      %s19 = sphi 0, %s17
      %s20 = sphi 0, %s18
      %s21 = sphi 0, %s19
      %s31 = sphi 0, %s33
      %s34 = sphi 0, %s31
      %s35 = sphi 0, %s34
      %s51 = sphi 0, %s35
      %s57 = sphi 0, %s59
      %s60 = sphi 0, %s57
      %s61 = sphi 0, %s60
      %s77 = sphi 0, %s61
      %s83 = sphi 0, %s85
      %s86 = sphi 0, %s83
      %s87 = sphi 0, %s86
      %s103 = sphi 0, %s87
      %s111 = sphi 0, %s113
      %s114 = sphi 0, %s111
      %s115 = sphi 0, %s114
      %s131 = sphi 0, %s115
    $region4: #{_lambda_.6} parent=1 // loop_header_branch
      %12 = sbr.rel (%p10) target = $region8
    $region5: #{_lambda_.6} parent=1 // loop_body
      %s14 = ssub.s32 %s9, 1
      %s15 = ssub.s32 %s9, 2
      %s22 = sadd.s32 1, %s17
      %p23 = scmp.ge.s32.totalorder %s22, 2
      %s24 = scalar_select %p23, 0, %s22
      %s25 = sadd.s32 1, %s16
      %s26 = scalar_select %p23, %s25, %s16
      %p27 = scmp.ge.s32.totalorder %s26, 1
      %s28 = scalar_select %p27, 0, %s26
      %s29 = ssub.s32 %s16, %s28
      %p30 = scmp.eq.s32.totalorder %s29, 0
      %s32 = sadd.s32 %s31, 1
      %s33 = scalar_select %p30, %s31, %s32
      %p36 = pneg %p30
      %p37 = scmp.eq.s32.totalorder %s9, 1
      %p38 = por %p36, %p37
      %p39 = scmp.ne.s32.totalorder %s31, %s34
      %p40 = scmp.eq.s32.totalorder %s9, 0
      %p41 = por %p39, %p40
      %p42 = scmp.ne.s32.totalorder %s31, %s34
      %p43 = scmp.eq.s32.totalorder %s14, 1
      %p44 = por %p42, %p43
      %p45 = scmp.ne.s32.totalorder %s34, %s35
      %p46 = scmp.eq.s32.totalorder %s14, 0
      %p47 = por %p45, %p46
      %p48 = scmp.ne.s32.totalorder %s34, %s35
      %p49 = scmp.eq.s32.totalorder %s15, 1
      %p50 = por %p48, %p49
      %p52 = scmp.ne.s32.totalorder %s35, %s51
      %p53 = scmp.eq.s32.totalorder %s15, 0
      %p54 = por %p52, %p53
      %s55 = ssub.s32 %s17, %s24
      %p56 = scmp.eq.s32.totalorder %s55, 0
      %s58 = sadd.s32 %s57, 1
      %s59 = scalar_select %p56, %s57, %s58
      %p62 = pneg %p56
      %p63 = scmp.eq.s32.totalorder %s9, 1
      %p64 = por %p62, %p63
      %p65 = scmp.ne.s32.totalorder %s57, %s60
      %p66 = scmp.eq.s32.totalorder %s9, 0
      %p67 = por %p65, %p66
      %p68 = scmp.ne.s32.totalorder %s57, %s60
      %p69 = scmp.eq.s32.totalorder %s14, 1
      %p70 = por %p68, %p69
      %p71 = scmp.ne.s32.totalorder %s60, %s61
      %p72 = scmp.eq.s32.totalorder %s14, 0
      %p73 = por %p71, %p72
      %p74 = scmp.ne.s32.totalorder %s60, %s61
      %p75 = scmp.eq.s32.totalorder %s15, 1
      %p76 = por %p74, %p75
      %p78 = scmp.ne.s32.totalorder %s61, %s77
      %p79 = scmp.eq.s32.totalorder %s15, 0
      %p80 = por %p78, %p79
      %s81 = ssub.s32 %s17, %s24
      %p82 = scmp.eq.s32.totalorder %s81, 0
      %s84 = sadd.s32 %s83, 1
      %s85 = scalar_select %p82, %s83, %s84
      %p88 = pneg %p82
      %p89 = scmp.eq.s32.totalorder %s9, 1
      %p90 = por %p88, %p89
      %p91 = scmp.ne.s32.totalorder %s83, %s86
      %p92 = scmp.eq.s32.totalorder %s9, 0
      %p93 = por %p91, %p92
      %p94 = scmp.ne.s32.totalorder %s83, %s86
      %p95 = scmp.eq.s32.totalorder %s14, 1
      %p96 = por %p94, %p95
      %p97 = scmp.ne.s32.totalorder %s86, %s87
      %p98 = scmp.eq.s32.totalorder %s14, 0
      %p99 = por %p97, %p98
      %p100 = scmp.ne.s32.totalorder %s86, %s87
      %p101 = scmp.eq.s32.totalorder %s15, 1
      %p102 = por %p100, %p101
      %p104 = scmp.ne.s32.totalorder %s87, %s103
      %p105 = scmp.eq.s32.totalorder %s15, 0
      %p106 = por %p104, %p105
      %s107 = ssub.s32 %s16, %s28
      %s108 = ssub.s32 %s17, %s24
      %s109 = sor.u32 %s107, %s108
      %p110 = scmp.eq.s32.totalorder %s109, 0
      %s112 = sadd.s32 %s111, 1
      %s113 = scalar_select %p110, %s111, %s112
      %p116 = pneg %p110
      %p117 = scmp.eq.s32.totalorder %s9, 1
      %p118 = por %p116, %p117
      %p119 = scmp.ne.s32.totalorder %s111, %s114
      %p120 = scmp.eq.s32.totalorder %s9, 0
      %p121 = por %p119, %p120
      %p122 = scmp.ne.s32.totalorder %s111, %s114
      %p123 = scmp.eq.s32.totalorder %s14, 1
      %p124 = por %p122, %p123
      %p125 = scmp.ne.s32.totalorder %s114, %s115
      %p126 = scmp.eq.s32.totalorder %s14, 0
      %p127 = por %p125, %p126
      %p128 = scmp.ne.s32.totalorder %s114, %s115
      %p129 = scmp.eq.s32.totalorder %s15, 1
      %p130 = por %p128, %p129
      %p132 = scmp.ne.s32.totalorder %s115, %s131
      %p133 = scmp.eq.s32.totalorder %s15, 0
      %p134 = por %p132, %p133
      %p135 = scmp.le.s32.totalorder 1, %s9
      %p136 = scmp.lt.s32.totalorder %s9, 3
      %p137 = pnand %p135, %p136
      %p138 = pneg %p137
      // Predicated region
      $region9: #{_lambda_.6} parent=5 // pred_check
        _
      $region10: #{_lambda_.6} parent=5 // pred_check_branch
        %140 = sbr.rel (%p137) target = $region12
      $region11: #{_lambda_.6} parent=5 // pred_region
        %s141 = ssub.s32 %s9, 1
        // Predicated region
        $region13: #{_lambda_.6} parent=11 // pred_check
          %p142 = pneg %p47
        $region14: #{_lambda_.6} parent=11 // pred_check_branch
          %144 = sbr.rel (%p142) target = $region16
        $region15: #{_lambda_.6} parent=11 // pred_region
          %s145 = smul.u32 4, %s18
          %p146 = scmp.lt.s32.totalorder %s145, 3
          %s147 = scalar_select %p146, %s145, 3
          %s148 = smul.addr %s147, 4
          %s149 = smul.addr %s148, 8
          %s150 = scalar_lea.vmem %s0, %s149
          %s151 = smul.u32 4, %s18
        $region16: #{_lambda_.6} parent=11 // pred_fallthru
          _
      $region12: #{_lambda_.6} parent=5 // pred_fallthru
        _
      %p152 = scmp.lt.s32.totalorder %s9, 2
      // Predicated region
      $region17: #{_lambda_.6} parent=5 // pred_check
        %p153 = pneg %p152
      $region18: #{_lambda_.6} parent=5 // pred_check_branch
        %155 = sbr.rel (%p153) target = $region20
      $region19: #{_lambda_.6} parent=5 // pred_region
        // Predicated region
        $region21: #{_lambda_.6} parent=19 // pred_check
          %p156 = pneg %p67
        $region22: #{_lambda_.6} parent=19 // pred_check_branch
          %158 = sbr.rel (%p156) target = $region24
        $region23: #{_lambda_.6} parent=19 // pred_region
          %s159 = sand.u32 %s57, 1
          %s160 = sand.u32 %s57, 1
          %s161 = smul.addr %s160, 2048
          %s162 = scalar_lea.vmem [#allocation2], %s161
          %s163 = smul.u32 4, %s17
          %s164 = smul.addr %s163, 8
          %s165 = scalar_lea.vmem %s1, %s164
          // Predicated region
          $region25: #{_lambda_.6} parent=23 // pred_check
            _
          $region26: #{_lambda_.6} parent=23 // pred_check_branch
            %167 = sbr.rel (0) target = $region28
          $region27: #{_lambda_.6} parent=23 // pred_region
            // Predicated region
            $region29: #{_lambda_.6} parent=27 // pred_check
              _
            $region30: #{_lambda_.6} parent=27 // pred_check_branch
              %169 = sbr.rel (0) target = $region32
            $region31: #{_lambda_.6} parent=27 // pred_region
              loop: start=0, step=1, limit=1
              $region33: #{_lambda_.6} parent=31 // loop_pre_header
                _
              $region34: #{_lambda_.6} parent=31 // loop_header
                %s171 = sphi 0, %s175
                %p172 = scmp.ge.s32.totalorder %s171, 1
                %s176 = sphi %s165, %s165
                %s177 = sphi %s162, %s162
              $region35: #{_lambda_.6} parent=31 // loop_header_branch
                %174 = sbr.rel (%p172) target = $region39
              $region36: #{_lambda_.6} parent=31 // loop_body
                %v178 = vld [vmem:[%s176] sm:$0xff]
                %179 = vst [vmem:[%s177] sm:$0xff] %v178
                %v180 = vld [vmem:[%s176 + $0x8] sm:$0xff]
                %181 = vst [vmem:[%s177 + $0x8] sm:$0xff] %v180
                %v182 = vld [vmem:[%s176 + $0x10] sm:$0xff]
                %183 = vst [vmem:[%s177 + $0x10] sm:$0xff] %v182
                %v184 = vld [vmem:[%s176 + $0x18] sm:$0xff]
                %185 = vst [vmem:[%s177 + $0x18] sm:$0xff] %v184
                %v186 = vld [vmem:[%s176 + $0x40] sm:$0xff]
                %187 = vst [vmem:[%s177 + $0x20] sm:$0xff] %v186
                %v188 = vld [vmem:[%s176 + $0x48] sm:$0xff]
                %189 = vst [vmem:[%s177 + $0x28] sm:$0xff] %v188
                %v190 = vld [vmem:[%s176 + $0x50] sm:$0xff]
                %191 = vst [vmem:[%s177 + $0x30] sm:$0xff] %v190
                %v192 = vld [vmem:[%s176 + $0x58] sm:$0xff]
                %193 = vst [vmem:[%s177 + $0x38] sm:$0xff] %v192
                %v194 = vld [vmem:[%s176 + $0x80] sm:$0xff]
                %195 = vst [vmem:[%s177 + $0x40] sm:$0xff] %v194
                %v196 = vld [vmem:[%s176 + $0x88] sm:$0xff]
                %197 = vst [vmem:[%s177 + $0x48] sm:$0xff] %v196
                %v198 = vld [vmem:[%s176 + $0x90] sm:$0xff]
                %199 = vst [vmem:[%s177 + $0x50] sm:$0xff] %v198
                %v200 = vld [vmem:[%s176 + $0x98] sm:$0xff]
                %201 = vst [vmem:[%s177 + $0x58] sm:$0xff] %v200
                %v202 = vld [vmem:[%s176 + $0xc0] sm:$0xff]
                %203 = vst [vmem:[%s177 + $0x60] sm:$0xff] %v202
                %v204 = vld [vmem:[%s176 + $0xc8] sm:$0xff]
                %205 = vst [vmem:[%s177 + $0x68] sm:$0xff] %v204
                %v206 = vld [vmem:[%s176 + $0xd0] sm:$0xff]
                %207 = vst [vmem:[%s177 + $0x70] sm:$0xff] %v206
                %v208 = vld [vmem:[%s176 + $0xd8] sm:$0xff]
                %209 = vst [vmem:[%s177 + $0x78] sm:$0xff] %v208
                %v210 = vld [vmem:[%s176 + $0x100] sm:$0xff]
                %211 = vst [vmem:[%s177 + $0x80] sm:$0xff] %v210
                %v212 = vld [vmem:[%s176 + $0x108] sm:$0xff]
                %213 = vst [vmem:[%s177 + $0x88] sm:$0xff] %v212
                %v214 = vld [vmem:[%s176 + $0x110] sm:$0xff]
                %215 = vst [vmem:[%s177 + $0x90] sm:$0xff] %v214
                %v216 = vld [vmem:[%s176 + $0x118] sm:$0xff]
                %217 = vst [vmem:[%s177 + $0x98] sm:$0xff] %v216
                %v218 = vld [vmem:[%s176 + $0x140] sm:$0xff]
                %219 = vst [vmem:[%s177 + $0xa0] sm:$0xff] %v218
                %v220 = vld [vmem:[%s176 + $0x148] sm:$0xff]
                %221 = vst [vmem:[%s177 + $0xa8] sm:$0xff] %v220
                %v222 = vld [vmem:[%s176 + $0x150] sm:$0xff]
                %223 = vst [vmem:[%s177 + $0xb0] sm:$0xff] %v222
                %v224 = vld [vmem:[%s176 + $0x158] sm:$0xff]
                %225 = vst [vmem:[%s177 + $0xb8] sm:$0xff] %v224
                %v226 = vld [vmem:[%s176 + $0x180] sm:$0xff]
                %227 = vst [vmem:[%s177 + $0xc0] sm:$0xff] %v226
                %v228 = vld [vmem:[%s176 + $0x188] sm:$0xff]
                %229 = vst [vmem:[%s177 + $0xc8] sm:$0xff] %v228
                %v230 = vld [vmem:[%s176 + $0x190] sm:$0xff]
                %231 = vst [vmem:[%s177 + $0xd0] sm:$0xff] %v230
                %v232 = vld [vmem:[%s176 + $0x198] sm:$0xff]
                %233 = vst [vmem:[%s177 + $0xd8] sm:$0xff] %v232
                %v234 = vld [vmem:[%s176 + $0x1c0] sm:$0xff]
                %235 = vst [vmem:[%s177 + $0xe0] sm:$0xff] %v234
                %v236 = vld [vmem:[%s176 + $0x1c8] sm:$0xff]
                %237 = vst [vmem:[%s177 + $0xe8] sm:$0xff] %v236
                %v238 = vld [vmem:[%s176 + $0x1d0] sm:$0xff]
                %239 = vst [vmem:[%s177 + $0xf0] sm:$0xff] %v238
                %v240 = vld [vmem:[%s176 + $0x1d8] sm:$0xff]
                %241 = vst [vmem:[%s177 + $0xf8] sm:$0xff] %v240
                %v242 = vld [vmem:[%s176 + $0x200] sm:$0xff]
                %243 = vst [vmem:[%s177 + $0x100] sm:$0xff] %v242
                %v244 = vld [vmem:[%s176 + $0x208] sm:$0xff]
                %245 = vst [vmem:[%s177 + $0x108] sm:$0xff] %v244
                %v246 = vld [vmem:[%s176 + $0x210] sm:$0xff]
                %247 = vst [vmem:[%s177 + $0x110] sm:$0xff] %v246
                %v248 = vld [vmem:[%s176 + $0x218] sm:$0xff]
                %249 = vst [vmem:[%s177 + $0x118] sm:$0xff] %v248
                %v250 = vld [vmem:[%s176 + $0x240] sm:$0xff]
                %251 = vst [vmem:[%s177 + $0x120] sm:$0xff] %v250
                %v252 = vld [vmem:[%s176 + $0x248] sm:$0xff]
                %253 = vst [vmem:[%s177 + $0x128] sm:$0xff] %v252
                %v254 = vld [vmem:[%s176 + $0x250] sm:$0xff]
                %255 = vst [vmem:[%s177 + $0x130] sm:$0xff] %v254
                %v256 = vld [vmem:[%s176 + $0x258] sm:$0xff]
                %257 = vst [vmem:[%s177 + $0x138] sm:$0xff] %v256
                %v258 = vld [vmem:[%s176 + $0x280] sm:$0xff]
                %259 = vst [vmem:[%s177 + $0x140] sm:$0xff] %v258
                %v260 = vld [vmem:[%s176 + $0x288] sm:$0xff]
                %261 = vst [vmem:[%s177 + $0x148] sm:$0xff] %v260
                %v262 = vld [vmem:[%s176 + $0x290] sm:$0xff]
                %263 = vst [vmem:[%s177 + $0x150] sm:$0xff] %v262
                %v264 = vld [vmem:[%s176 + $0x298] sm:$0xff]
                %265 = vst [vmem:[%s177 + $0x158] sm:$0xff] %v264
                %v266 = vld [vmem:[%s176 + $0x2c0] sm:$0xff]
                %267 = vst [vmem:[%s177 + $0x160] sm:$0xff] %v266
                %v268 = vld [vmem:[%s176 + $0x2c8] sm:$0xff]
                %269 = vst [vmem:[%s177 + $0x168] sm:$0xff] %v268
                %v270 = vld [vmem:[%s176 + $0x2d0] sm:$0xff]
                %271 = vst [vmem:[%s177 + $0x170] sm:$0xff] %v270
                %v272 = vld [vmem:[%s176 + $0x2d8] sm:$0xff]
                %273 = vst [vmem:[%s177 + $0x178] sm:$0xff] %v272
                %v274 = vld [vmem:[%s176 + $0x300] sm:$0xff]
                %275 = vst [vmem:[%s177 + $0x180] sm:$0xff] %v274
                %v276 = vld [vmem:[%s176 + $0x308] sm:$0xff]
                %277 = vst [vmem:[%s177 + $0x188] sm:$0xff] %v276
                %v278 = vld [vmem:[%s176 + $0x310] sm:$0xff]
                %279 = vst [vmem:[%s177 + $0x190] sm:$0xff] %v278
                %v280 = vld [vmem:[%s176 + $0x318] sm:$0xff]
                %281 = vst [vmem:[%s177 + $0x198] sm:$0xff] %v280
                %v282 = vld [vmem:[%s176 + $0x340] sm:$0xff]
                %283 = vst [vmem:[%s177 + $0x1a0] sm:$0xff] %v282
                %v284 = vld [vmem:[%s176 + $0x348] sm:$0xff]
                %285 = vst [vmem:[%s177 + $0x1a8] sm:$0xff] %v284
                %v286 = vld [vmem:[%s176 + $0x350] sm:$0xff]
                %287 = vst [vmem:[%s177 + $0x1b0] sm:$0xff] %v286
                %v288 = vld [vmem:[%s176 + $0x358] sm:$0xff]
                %289 = vst [vmem:[%s177 + $0x1b8] sm:$0xff] %v288
                %v290 = vld [vmem:[%s176 + $0x380] sm:$0xff]
                %291 = vst [vmem:[%s177 + $0x1c0] sm:$0xff] %v290
                %v292 = vld [vmem:[%s176 + $0x388] sm:$0xff]
                %293 = vst [vmem:[%s177 + $0x1c8] sm:$0xff] %v292
                %v294 = vld [vmem:[%s176 + $0x390] sm:$0xff]
                %295 = vst [vmem:[%s177 + $0x1d0] sm:$0xff] %v294
                %v296 = vld [vmem:[%s176 + $0x398] sm:$0xff]
                %297 = vst [vmem:[%s177 + $0x1d8] sm:$0xff] %v296
                %v298 = vld [vmem:[%s176 + $0x3c0] sm:$0xff]
                %299 = vst [vmem:[%s177 + $0x1e0] sm:$0xff] %v298
                %v300 = vld [vmem:[%s176 + $0x3c8] sm:$0xff]
                %301 = vst [vmem:[%s177 + $0x1e8] sm:$0xff] %v300
                %v302 = vld [vmem:[%s176 + $0x3d0] sm:$0xff]
                %303 = vst [vmem:[%s177 + $0x1f0] sm:$0xff] %v302
                %v304 = vld [vmem:[%s176 + $0x3d8] sm:$0xff]
                %305 = vst [vmem:[%s177 + $0x1f8] sm:$0xff] %v304
                %v306 = vld [vmem:[%s176 + $0x400] sm:$0xff]
                %307 = vst [vmem:[%s177 + $0x200] sm:$0xff] %v306
                %v308 = vld [vmem:[%s176 + $0x408] sm:$0xff]
                %309 = vst [vmem:[%s177 + $0x208] sm:$0xff] %v308
                %v310 = vld [vmem:[%s176 + $0x410] sm:$0xff]
                %311 = vst [vmem:[%s177 + $0x210] sm:$0xff] %v310
                %v312 = vld [vmem:[%s176 + $0x418] sm:$0xff]
                %313 = vst [vmem:[%s177 + $0x218] sm:$0xff] %v312
                %v314 = vld [vmem:[%s176 + $0x440] sm:$0xff]
                %315 = vst [vmem:[%s177 + $0x220] sm:$0xff] %v314
                %v316 = vld [vmem:[%s176 + $0x448] sm:$0xff]
                %317 = vst [vmem:[%s177 + $0x228] sm:$0xff] %v316
                %v318 = vld [vmem:[%s176 + $0x450] sm:$0xff]
                %319 = vst [vmem:[%s177 + $0x230] sm:$0xff] %v318
                %v320 = vld [vmem:[%s176 + $0x458] sm:$0xff]
                %321 = vst [vmem:[%s177 + $0x238] sm:$0xff] %v320
                %v322 = vld [vmem:[%s176 + $0x480] sm:$0xff]
                %323 = vst [vmem:[%s177 + $0x240] sm:$0xff] %v322
                %v324 = vld [vmem:[%s176 + $0x488] sm:$0xff]
                %325 = vst [vmem:[%s177 + $0x248] sm:$0xff] %v324
                %v326 = vld [vmem:[%s176 + $0x490] sm:$0xff]
                %327 = vst [vmem:[%s177 + $0x250] sm:$0xff] %v326
                %v328 = vld [vmem:[%s176 + $0x498] sm:$0xff]
                %329 = vst [vmem:[%s177 + $0x258] sm:$0xff] %v328
                %v330 = vld [vmem:[%s176 + $0x4c0] sm:$0xff]
                %331 = vst [vmem:[%s177 + $0x260] sm:$0xff] %v330
                %v332 = vld [vmem:[%s176 + $0x4c8] sm:$0xff]
                %333 = vst [vmem:[%s177 + $0x268] sm:$0xff] %v332
                %v334 = vld [vmem:[%s176 + $0x4d0] sm:$0xff]
                %335 = vst [vmem:[%s177 + $0x270] sm:$0xff] %v334
                %v336 = vld [vmem:[%s176 + $0x4d8] sm:$0xff]
                %337 = vst [vmem:[%s177 + $0x278] sm:$0xff] %v336
                %v338 = vld [vmem:[%s176 + $0x500] sm:$0xff]
                %339 = vst [vmem:[%s177 + $0x280] sm:$0xff] %v338
                %v340 = vld [vmem:[%s176 + $0x508] sm:$0xff]
                %341 = vst [vmem:[%s177 + $0x288] sm:$0xff] %v340
                %v342 = vld [vmem:[%s176 + $0x510] sm:$0xff]
                %343 = vst [vmem:[%s177 + $0x290] sm:$0xff] %v342
                %v344 = vld [vmem:[%s176 + $0x518] sm:$0xff]
                %345 = vst [vmem:[%s177 + $0x298] sm:$0xff] %v344
                %v346 = vld [vmem:[%s176 + $0x540] sm:$0xff]
                %347 = vst [vmem:[%s177 + $0x2a0] sm:$0xff] %v346
                %v348 = vld [vmem:[%s176 + $0x548] sm:$0xff]
                %349 = vst [vmem:[%s177 + $0x2a8] sm:$0xff] %v348
                %v350 = vld [vmem:[%s176 + $0x550] sm:$0xff]
                %351 = vst [vmem:[%s177 + $0x2b0] sm:$0xff] %v350
                %v352 = vld [vmem:[%s176 + $0x558] sm:$0xff]
                %353 = vst [vmem:[%s177 + $0x2b8] sm:$0xff] %v352
                %v354 = vld [vmem:[%s176 + $0x580] sm:$0xff]
                %355 = vst [vmem:[%s177 + $0x2c0] sm:$0xff] %v354
                %v356 = vld [vmem:[%s176 + $0x588] sm:$0xff]
                %357 = vst [vmem:[%s177 + $0x2c8] sm:$0xff] %v356
                %v358 = vld [vmem:[%s176 + $0x590] sm:$0xff]
                %359 = vst [vmem:[%s177 + $0x2d0] sm:$0xff] %v358
                %v360 = vld [vmem:[%s176 + $0x598] sm:$0xff]
                %361 = vst [vmem:[%s177 + $0x2d8] sm:$0xff] %v360
                %v362 = vld [vmem:[%s176 + $0x5c0] sm:$0xff]
                %363 = vst [vmem:[%s177 + $0x2e0] sm:$0xff] %v362
                %v364 = vld [vmem:[%s176 + $0x5c8] sm:$0xff]
                %365 = vst [vmem:[%s177 + $0x2e8] sm:$0xff] %v364
                %v366 = vld [vmem:[%s176 + $0x5d0] sm:$0xff]
                %367 = vst [vmem:[%s177 + $0x2f0] sm:$0xff] %v366
                %v368 = vld [vmem:[%s176 + $0x5d8] sm:$0xff]
                %369 = vst [vmem:[%s177 + $0x2f8] sm:$0xff] %v368
                %v370 = vld [vmem:[%s176 + $0x600] sm:$0xff]
                %371 = vst [vmem:[%s177 + $0x300] sm:$0xff] %v370
                %v372 = vld [vmem:[%s176 + $0x608] sm:$0xff]
                %373 = vst [vmem:[%s177 + $0x308] sm:$0xff] %v372
                %v374 = vld [vmem:[%s176 + $0x610] sm:$0xff]
                %375 = vst [vmem:[%s177 + $0x310] sm:$0xff] %v374
                %v376 = vld [vmem:[%s176 + $0x618] sm:$0xff]
                %377 = vst [vmem:[%s177 + $0x318] sm:$0xff] %v376
                %v378 = vld [vmem:[%s176 + $0x640] sm:$0xff]
                %379 = vst [vmem:[%s177 + $0x320] sm:$0xff] %v378
                %v380 = vld [vmem:[%s176 + $0x648] sm:$0xff]
                %381 = vst [vmem:[%s177 + $0x328] sm:$0xff] %v380
                %v382 = vld [vmem:[%s176 + $0x650] sm:$0xff]
                %383 = vst [vmem:[%s177 + $0x330] sm:$0xff] %v382
                %v384 = vld [vmem:[%s176 + $0x658] sm:$0xff]
                %385 = vst [vmem:[%s177 + $0x338] sm:$0xff] %v384
                %v386 = vld [vmem:[%s176 + $0x680] sm:$0xff]
                %387 = vst [vmem:[%s177 + $0x340] sm:$0xff] %v386
                %v388 = vld [vmem:[%s176 + $0x688] sm:$0xff]
                %389 = vst [vmem:[%s177 + $0x348] sm:$0xff] %v388
                %v390 = vld [vmem:[%s176 + $0x690] sm:$0xff]
                %391 = vst [vmem:[%s177 + $0x350] sm:$0xff] %v390
                %v392 = vld [vmem:[%s176 + $0x698] sm:$0xff]
                %393 = vst [vmem:[%s177 + $0x358] sm:$0xff] %v392
                %v394 = vld [vmem:[%s176 + $0x6c0] sm:$0xff]
                %395 = vst [vmem:[%s177 + $0x360] sm:$0xff] %v394
                %v396 = vld [vmem:[%s176 + $0x6c8] sm:$0xff]
                %397 = vst [vmem:[%s177 + $0x368] sm:$0xff] %v396
                %v398 = vld [vmem:[%s176 + $0x6d0] sm:$0xff]
                %399 = vst [vmem:[%s177 + $0x370] sm:$0xff] %v398
                %v400 = vld [vmem:[%s176 + $0x6d8] sm:$0xff]
                %401 = vst [vmem:[%s177 + $0x378] sm:$0xff] %v400
                %v402 = vld [vmem:[%s176 + $0x700] sm:$0xff]
                %403 = vst [vmem:[%s177 + $0x380] sm:$0xff] %v402
                %v404 = vld [vmem:[%s176 + $0x708] sm:$0xff]
                %405 = vst [vmem:[%s177 + $0x388] sm:$0xff] %v404
                %v406 = vld [vmem:[%s176 + $0x710] sm:$0xff]
                %407 = vst [vmem:[%s177 + $0x390] sm:$0xff] %v406
                %v408 = vld [vmem:[%s176 + $0x718] sm:$0xff]
                %409 = vst [vmem:[%s177 + $0x398] sm:$0xff] %v408
                %v410 = vld [vmem:[%s176 + $0x740] sm:$0xff]
                %411 = vst [vmem:[%s177 + $0x3a0] sm:$0xff] %v410
                %v412 = vld [vmem:[%s176 + $0x748] sm:$0xff]
                %413 = vst [vmem:[%s177 + $0x3a8] sm:$0xff] %v412
                %v414 = vld [vmem:[%s176 + $0x750] sm:$0xff]
                %415 = vst [vmem:[%s177 + $0x3b0] sm:$0xff] %v414
                %v416 = vld [vmem:[%s176 + $0x758] sm:$0xff]
                %417 = vst [vmem:[%s177 + $0x3b8] sm:$0xff] %v416
                %v418 = vld [vmem:[%s176 + $0x780] sm:$0xff]
                %419 = vst [vmem:[%s177 + $0x3c0] sm:$0xff] %v418
                %v420 = vld [vmem:[%s176 + $0x788] sm:$0xff]
                %421 = vst [vmem:[%s177 + $0x3c8] sm:$0xff] %v420
                %v422 = vld [vmem:[%s176 + $0x790] sm:$0xff]
                %423 = vst [vmem:[%s177 + $0x3d0] sm:$0xff] %v422
                %v424 = vld [vmem:[%s176 + $0x798] sm:$0xff]
                %425 = vst [vmem:[%s177 + $0x3d8] sm:$0xff] %v424
                %v426 = vld [vmem:[%s176 + $0x7c0] sm:$0xff]
                %427 = vst [vmem:[%s177 + $0x3e0] sm:$0xff] %v426
                %v428 = vld [vmem:[%s176 + $0x7c8] sm:$0xff]
                %429 = vst [vmem:[%s177 + $0x3e8] sm:$0xff] %v428
                %v430 = vld [vmem:[%s176 + $0x7d0] sm:$0xff]
                %431 = vst [vmem:[%s177 + $0x3f0] sm:$0xff] %v430
                %v432 = vld [vmem:[%s176 + $0x7d8] sm:$0xff]
                %433 = vst [vmem:[%s177 + $0x3f8] sm:$0xff] %v432
                %v434 = vld [vmem:[%s176 + $0x800] sm:$0xff]
                %435 = vst [vmem:[%s177 + $0x400] sm:$0xff] %v434
                %v436 = vld [vmem:[%s176 + $0x808] sm:$0xff]
                %437 = vst [vmem:[%s177 + $0x408] sm:$0xff] %v436
                %v438 = vld [vmem:[%s176 + $0x810] sm:$0xff]
                %439 = vst [vmem:[%s177 + $0x410] sm:$0xff] %v438
                %v440 = vld [vmem:[%s176 + $0x818] sm:$0xff]
                %441 = vst [vmem:[%s177 + $0x418] sm:$0xff] %v440
                %v442 = vld [vmem:[%s176 + $0x840] sm:$0xff]
                %443 = vst [vmem:[%s177 + $0x420] sm:$0xff] %v442
                %v444 = vld [vmem:[%s176 + $0x848] sm:$0xff]
                %445 = vst [vmem:[%s177 + $0x428] sm:$0xff] %v444
                %v446 = vld [vmem:[%s176 + $0x850] sm:$0xff]
                %447 = vst [vmem:[%s177 + $0x430] sm:$0xff] %v446
                %v448 = vld [vmem:[%s176 + $0x858] sm:$0xff]
                %449 = vst [vmem:[%s177 + $0x438] sm:$0xff] %v448
                %v450 = vld [vmem:[%s176 + $0x880] sm:$0xff]
                %451 = vst [vmem:[%s177 + $0x440] sm:$0xff] %v450
                %v452 = vld [vmem:[%s176 + $0x888] sm:$0xff]
                %453 = vst [vmem:[%s177 + $0x448] sm:$0xff] %v452
                %v454 = vld [vmem:[%s176 + $0x890] sm:$0xff]
                %455 = vst [vmem:[%s177 + $0x450] sm:$0xff] %v454
                %v456 = vld [vmem:[%s176 + $0x898] sm:$0xff]
                %457 = vst [vmem:[%s177 + $0x458] sm:$0xff] %v456
                %v458 = vld [vmem:[%s176 + $0x8c0] sm:$0xff]
                %459 = vst [vmem:[%s177 + $0x460] sm:$0xff] %v458
                %v460 = vld [vmem:[%s176 + $0x8c8] sm:$0xff]
                %461 = vst [vmem:[%s177 + $0x468] sm:$0xff] %v460
                %v462 = vld [vmem:[%s176 + $0x8d0] sm:$0xff]
                %463 = vst [vmem:[%s177 + $0x470] sm:$0xff] %v462
                %v464 = vld [vmem:[%s176 + $0x8d8] sm:$0xff]
                %465 = vst [vmem:[%s177 + $0x478] sm:$0xff] %v464
                %v466 = vld [vmem:[%s176 + $0x900] sm:$0xff]
                %467 = vst [vmem:[%s177 + $0x480] sm:$0xff] %v466
                %v468 = vld [vmem:[%s176 + $0x908] sm:$0xff]
                %469 = vst [vmem:[%s177 + $0x488] sm:$0xff] %v468
                %v470 = vld [vmem:[%s176 + $0x910] sm:$0xff]
                %471 = vst [vmem:[%s177 + $0x490] sm:$0xff] %v470
                %v472 = vld [vmem:[%s176 + $0x918] sm:$0xff]
                %473 = vst [vmem:[%s177 + $0x498] sm:$0xff] %v472
                %v474 = vld [vmem:[%s176 + $0x940] sm:$0xff]
                %475 = vst [vmem:[%s177 + $0x4a0] sm:$0xff] %v474
                %v476 = vld [vmem:[%s176 + $0x948] sm:$0xff]
                %477 = vst [vmem:[%s177 + $0x4a8] sm:$0xff] %v476
                %v478 = vld [vmem:[%s176 + $0x950] sm:$0xff]
                %479 = vst [vmem:[%s177 + $0x4b0] sm:$0xff] %v478
                %v480 = vld [vmem:[%s176 + $0x958] sm:$0xff]
                %481 = vst [vmem:[%s177 + $0x4b8] sm:$0xff] %v480
                %v482 = vld [vmem:[%s176 + $0x980] sm:$0xff]
                %483 = vst [vmem:[%s177 + $0x4c0] sm:$0xff] %v482
                %v484 = vld [vmem:[%s176 + $0x988] sm:$0xff]
                %485 = vst [vmem:[%s177 + $0x4c8] sm:$0xff] %v484
                %v486 = vld [vmem:[%s176 + $0x990] sm:$0xff]
                %487 = vst [vmem:[%s177 + $0x4d0] sm:$0xff] %v486
                %v488 = vld [vmem:[%s176 + $0x998] sm:$0xff]
                %489 = vst [vmem:[%s177 + $0x4d8] sm:$0xff] %v488
                %v490 = vld [vmem:[%s176 + $0x9c0] sm:$0xff]
                %491 = vst [vmem:[%s177 + $0x4e0] sm:$0xff] %v490
                %v492 = vld [vmem:[%s176 + $0x9c8] sm:$0xff]
                %493 = vst [vmem:[%s177 + $0x4e8] sm:$0xff] %v492
                %v494 = vld [vmem:[%s176 + $0x9d0] sm:$0xff]
                %495 = vst [vmem:[%s177 + $0x4f0] sm:$0xff] %v494
                %v496 = vld [vmem:[%s176 + $0x9d8] sm:$0xff]
                %497 = vst [vmem:[%s177 + $0x4f8] sm:$0xff] %v496
                %v498 = vld [vmem:[%s176 + $0xa00] sm:$0xff]
                %499 = vst [vmem:[%s177 + $0x500] sm:$0xff] %v498
                %v500 = vld [vmem:[%s176 + $0xa08] sm:$0xff]
                %501 = vst [vmem:[%s177 + $0x508] sm:$0xff] %v500
                %v502 = vld [vmem:[%s176 + $0xa10] sm:$0xff]
                %503 = vst [vmem:[%s177 + $0x510] sm:$0xff] %v502
                %v504 = vld [vmem:[%s176 + $0xa18] sm:$0xff]
                %505 = vst [vmem:[%s177 + $0x518] sm:$0xff] %v504
                %v506 = vld [vmem:[%s176 + $0xa40] sm:$0xff]
                %507 = vst [vmem:[%s177 + $0x520] sm:$0xff] %v506
                %v508 = vld [vmem:[%s176 + $0xa48] sm:$0xff]
                %509 = vst [vmem:[%s177 + $0x528] sm:$0xff] %v508
                %v510 = vld [vmem:[%s176 + $0xa50] sm:$0xff]
                %511 = vst [vmem:[%s177 + $0x530] sm:$0xff] %v510
                %v512 = vld [vmem:[%s176 + $0xa58] sm:$0xff]
                %513 = vst [vmem:[%s177 + $0x538] sm:$0xff] %v512
                %v514 = vld [vmem:[%s176 + $0xa80] sm:$0xff]
                %515 = vst [vmem:[%s177 + $0x540] sm:$0xff] %v514
                %v516 = vld [vmem:[%s176 + $0xa88] sm:$0xff]
                %517 = vst [vmem:[%s177 + $0x548] sm:$0xff] %v516
                %v518 = vld [vmem:[%s176 + $0xa90] sm:$0xff]
                %519 = vst [vmem:[%s177 + $0x550] sm:$0xff] %v518
                %v520 = vld [vmem:[%s176 + $0xa98] sm:$0xff]
                %521 = vst [vmem:[%s177 + $0x558] sm:$0xff] %v520
                %v522 = vld [vmem:[%s176 + $0xac0] sm:$0xff]
                %523 = vst [vmem:[%s177 + $0x560] sm:$0xff] %v522
                %v524 = vld [vmem:[%s176 + $0xac8] sm:$0xff]
                %525 = vst [vmem:[%s177 + $0x568] sm:$0xff] %v524
                %v526 = vld [vmem:[%s176 + $0xad0] sm:$0xff]
                %527 = vst [vmem:[%s177 + $0x570] sm:$0xff] %v526
                %v528 = vld [vmem:[%s176 + $0xad8] sm:$0xff]
                %529 = vst [vmem:[%s177 + $0x578] sm:$0xff] %v528
                %v530 = vld [vmem:[%s176 + $0xb00] sm:$0xff]
                %531 = vst [vmem:[%s177 + $0x580] sm:$0xff] %v530
                %v532 = vld [vmem:[%s176 + $0xb08] sm:$0xff]
                %533 = vst [vmem:[%s177 + $0x588] sm:$0xff] %v532
                %v534 = vld [vmem:[%s176 + $0xb10] sm:$0xff]
                %535 = vst [vmem:[%s177 + $0x590] sm:$0xff] %v534
                %v536 = vld [vmem:[%s176 + $0xb18] sm:$0xff]
                %537 = vst [vmem:[%s177 + $0x598] sm:$0xff] %v536
                %v538 = vld [vmem:[%s176 + $0xb40] sm:$0xff]
                %539 = vst [vmem:[%s177 + $0x5a0] sm:$0xff] %v538
                %v540 = vld [vmem:[%s176 + $0xb48] sm:$0xff]
                %541 = vst [vmem:[%s177 + $0x5a8] sm:$0xff] %v540
                %v542 = vld [vmem:[%s176 + $0xb50] sm:$0xff]
                %543 = vst [vmem:[%s177 + $0x5b0] sm:$0xff] %v542
                %v544 = vld [vmem:[%s176 + $0xb58] sm:$0xff]
                %545 = vst [vmem:[%s177 + $0x5b8] sm:$0xff] %v544
                %v546 = vld [vmem:[%s176 + $0xb80] sm:$0xff]
                %547 = vst [vmem:[%s177 + $0x5c0] sm:$0xff] %v546
                %v548 = vld [vmem:[%s176 + $0xb88] sm:$0xff]
                %549 = vst [vmem:[%s177 + $0x5c8] sm:$0xff] %v548
                %v550 = vld [vmem:[%s176 + $0xb90] sm:$0xff]
                %551 = vst [vmem:[%s177 + $0x5d0] sm:$0xff] %v550
                %v552 = vld [vmem:[%s176 + $0xb98] sm:$0xff]
                %553 = vst [vmem:[%s177 + $0x5d8] sm:$0xff] %v552
                %v554 = vld [vmem:[%s176 + $0xbc0] sm:$0xff]
                %555 = vst [vmem:[%s177 + $0x5e0] sm:$0xff] %v554
                %v556 = vld [vmem:[%s176 + $0xbc8] sm:$0xff]
                %557 = vst [vmem:[%s177 + $0x5e8] sm:$0xff] %v556
                %v558 = vld [vmem:[%s176 + $0xbd0] sm:$0xff]
                %559 = vst [vmem:[%s177 + $0x5f0] sm:$0xff] %v558
                %v560 = vld [vmem:[%s176 + $0xbd8] sm:$0xff]
                %561 = vst [vmem:[%s177 + $0x5f8] sm:$0xff] %v560
                %v562 = vld [vmem:[%s176 + $0xc00] sm:$0xff]
                %563 = vst [vmem:[%s177 + $0x600] sm:$0xff] %v562
                %v564 = vld [vmem:[%s176 + $0xc08] sm:$0xff]
                %565 = vst [vmem:[%s177 + $0x608] sm:$0xff] %v564
                %v566 = vld [vmem:[%s176 + $0xc10] sm:$0xff]
                %567 = vst [vmem:[%s177 + $0x610] sm:$0xff] %v566
                %v568 = vld [vmem:[%s176 + $0xc18] sm:$0xff]
                %569 = vst [vmem:[%s177 + $0x618] sm:$0xff] %v568
                %v570 = vld [vmem:[%s176 + $0xc40] sm:$0xff]
                %571 = vst [vmem:[%s177 + $0x620] sm:$0xff] %v570
                %v572 = vld [vmem:[%s176 + $0xc48] sm:$0xff]
                %573 = vst [vmem:[%s177 + $0x628] sm:$0xff] %v572
                %v574 = vld [vmem:[%s176 + $0xc50] sm:$0xff]
                %575 = vst [vmem:[%s177 + $0x630] sm:$0xff] %v574
                %v576 = vld [vmem:[%s176 + $0xc58] sm:$0xff]
                %577 = vst [vmem:[%s177 + $0x638] sm:$0xff] %v576
                %v578 = vld [vmem:[%s176 + $0xc80] sm:$0xff]
                %579 = vst [vmem:[%s177 + $0x640] sm:$0xff] %v578
                %v580 = vld [vmem:[%s176 + $0xc88] sm:$0xff]
                %581 = vst [vmem:[%s177 + $0x648] sm:$0xff] %v580
                %v582 = vld [vmem:[%s176 + $0xc90] sm:$0xff]
                %583 = vst [vmem:[%s177 + $0x650] sm:$0xff] %v582
                %v584 = vld [vmem:[%s176 + $0xc98] sm:$0xff]
                %585 = vst [vmem:[%s177 + $0x658] sm:$0xff] %v584
                %v586 = vld [vmem:[%s176 + $0xcc0] sm:$0xff]
                %587 = vst [vmem:[%s177 + $0x660] sm:$0xff] %v586
                %v588 = vld [vmem:[%s176 + $0xcc8] sm:$0xff]
                %589 = vst [vmem:[%s177 + $0x668] sm:$0xff] %v588
                %v590 = vld [vmem:[%s176 + $0xcd0] sm:$0xff]
                %591 = vst [vmem:[%s177 + $0x670] sm:$0xff] %v590
                %v592 = vld [vmem:[%s176 + $0xcd8] sm:$0xff]
                %593 = vst [vmem:[%s177 + $0x678] sm:$0xff] %v592
                %v594 = vld [vmem:[%s176 + $0xd00] sm:$0xff]
                %595 = vst [vmem:[%s177 + $0x680] sm:$0xff] %v594
                %v596 = vld [vmem:[%s176 + $0xd08] sm:$0xff]
                %597 = vst [vmem:[%s177 + $0x688] sm:$0xff] %v596
                %v598 = vld [vmem:[%s176 + $0xd10] sm:$0xff]
                %599 = vst [vmem:[%s177 + $0x690] sm:$0xff] %v598
                %v600 = vld [vmem:[%s176 + $0xd18] sm:$0xff]
                %601 = vst [vmem:[%s177 + $0x698] sm:$0xff] %v600
                %v602 = vld [vmem:[%s176 + $0xd40] sm:$0xff]
                %603 = vst [vmem:[%s177 + $0x6a0] sm:$0xff] %v602
                %v604 = vld [vmem:[%s176 + $0xd48] sm:$0xff]
                %605 = vst [vmem:[%s177 + $0x6a8] sm:$0xff] %v604
                %v606 = vld [vmem:[%s176 + $0xd50] sm:$0xff]
                %607 = vst [vmem:[%s177 + $0x6b0] sm:$0xff] %v606
                %v608 = vld [vmem:[%s176 + $0xd58] sm:$0xff]
                %609 = vst [vmem:[%s177 + $0x6b8] sm:$0xff] %v608
                %v610 = vld [vmem:[%s176 + $0xd80] sm:$0xff]
                %611 = vst [vmem:[%s177 + $0x6c0] sm:$0xff] %v610
                %v612 = vld [vmem:[%s176 + $0xd88] sm:$0xff]
                %613 = vst [vmem:[%s177 + $0x6c8] sm:$0xff] %v612
                %v614 = vld [vmem:[%s176 + $0xd90] sm:$0xff]
                %615 = vst [vmem:[%s177 + $0x6d0] sm:$0xff] %v614
                %v616 = vld [vmem:[%s176 + $0xd98] sm:$0xff]
                %617 = vst [vmem:[%s177 + $0x6d8] sm:$0xff] %v616
                %v618 = vld [vmem:[%s176 + $0xdc0] sm:$0xff]
                %619 = vst [vmem:[%s177 + $0x6e0] sm:$0xff] %v618
                %v620 = vld [vmem:[%s176 + $0xdc8] sm:$0xff]
                %621 = vst [vmem:[%s177 + $0x6e8] sm:$0xff] %v620
                %v622 = vld [vmem:[%s176 + $0xdd0] sm:$0xff]
                %623 = vst [vmem:[%s177 + $0x6f0] sm:$0xff] %v622
                %v624 = vld [vmem:[%s176 + $0xdd8] sm:$0xff]
                %625 = vst [vmem:[%s177 + $0x6f8] sm:$0xff] %v624
                %v626 = vld [vmem:[%s176 + $0xe00] sm:$0xff]
                %627 = vst [vmem:[%s177 + $0x700] sm:$0xff] %v626
                %v628 = vld [vmem:[%s176 + $0xe08] sm:$0xff]
                %629 = vst [vmem:[%s177 + $0x708] sm:$0xff] %v628
                %v630 = vld [vmem:[%s176 + $0xe10] sm:$0xff]
                %631 = vst [vmem:[%s177 + $0x710] sm:$0xff] %v630
                %v632 = vld [vmem:[%s176 + $0xe18] sm:$0xff]
                %633 = vst [vmem:[%s177 + $0x718] sm:$0xff] %v632
                %v634 = vld [vmem:[%s176 + $0xe40] sm:$0xff]
                %635 = vst [vmem:[%s177 + $0x720] sm:$0xff] %v634
                %v636 = vld [vmem:[%s176 + $0xe48] sm:$0xff]
                %637 = vst [vmem:[%s177 + $0x728] sm:$0xff] %v636
                %v638 = vld [vmem:[%s176 + $0xe50] sm:$0xff]
                %639 = vst [vmem:[%s177 + $0x730] sm:$0xff] %v638
                %v640 = vld [vmem:[%s176 + $0xe58] sm:$0xff]
                %641 = vst [vmem:[%s177 + $0x738] sm:$0xff] %v640
                %v642 = vld [vmem:[%s176 + $0xe80] sm:$0xff]
                %643 = vst [vmem:[%s177 + $0x740] sm:$0xff] %v642
                %v644 = vld [vmem:[%s176 + $0xe88] sm:$0xff]
                %645 = vst [vmem:[%s177 + $0x748] sm:$0xff] %v644
                %v646 = vld [vmem:[%s176 + $0xe90] sm:$0xff]
                %647 = vst [vmem:[%s177 + $0x750] sm:$0xff] %v646
                %v648 = vld [vmem:[%s176 + $0xe98] sm:$0xff]
                %649 = vst [vmem:[%s177 + $0x758] sm:$0xff] %v648
                %v650 = vld [vmem:[%s176 + $0xec0] sm:$0xff]
                %651 = vst [vmem:[%s177 + $0x760] sm:$0xff] %v650
                %v652 = vld [vmem:[%s176 + $0xec8] sm:$0xff]
                %653 = vst [vmem:[%s177 + $0x768] sm:$0xff] %v652
                %v654 = vld [vmem:[%s176 + $0xed0] sm:$0xff]
                %655 = vst [vmem:[%s177 + $0x770] sm:$0xff] %v654
                %v656 = vld [vmem:[%s176 + $0xed8] sm:$0xff]
                %657 = vst [vmem:[%s177 + $0x778] sm:$0xff] %v656
                %v658 = vld [vmem:[%s176 + $0xf00] sm:$0xff]
                %659 = vst [vmem:[%s177 + $0x780] sm:$0xff] %v658
                %v660 = vld [vmem:[%s176 + $0xf08] sm:$0xff]
                %661 = vst [vmem:[%s177 + $0x788] sm:$0xff] %v660
                %v662 = vld [vmem:[%s176 + $0xf10] sm:$0xff]
                %663 = vst [vmem:[%s177 + $0x790] sm:$0xff] %v662
                %v664 = vld [vmem:[%s176 + $0xf18] sm:$0xff]
                %665 = vst [vmem:[%s177 + $0x798] sm:$0xff] %v664
                %v666 = vld [vmem:[%s176 + $0xf40] sm:$0xff]
                %667 = vst [vmem:[%s177 + $0x7a0] sm:$0xff] %v666
                %v668 = vld [vmem:[%s176 + $0xf48] sm:$0xff]
                %669 = vst [vmem:[%s177 + $0x7a8] sm:$0xff] %v668
                %v670 = vld [vmem:[%s176 + $0xf50] sm:$0xff]
                %671 = vst [vmem:[%s177 + $0x7b0] sm:$0xff] %v670
                %v672 = vld [vmem:[%s176 + $0xf58] sm:$0xff]
                %673 = vst [vmem:[%s177 + $0x7b8] sm:$0xff] %v672
                %v674 = vld [vmem:[%s176 + $0xf80] sm:$0xff]
                %675 = vst [vmem:[%s177 + $0x7c0] sm:$0xff] %v674
                %v676 = vld [vmem:[%s176 + $0xf88] sm:$0xff]
                %677 = vst [vmem:[%s177 + $0x7c8] sm:$0xff] %v676
                %v678 = vld [vmem:[%s176 + $0xf90] sm:$0xff]
                %679 = vst [vmem:[%s177 + $0x7d0] sm:$0xff] %v678
                %v680 = vld [vmem:[%s176 + $0xf98] sm:$0xff]
                %681 = vst [vmem:[%s177 + $0x7d8] sm:$0xff] %v680
                %v682 = vld [vmem:[%s176 + $0xfc0] sm:$0xff]
                %683 = vst [vmem:[%s177 + $0x7e0] sm:$0xff] %v682
                %v684 = vld [vmem:[%s176 + $0xfc8] sm:$0xff]
                %685 = vst [vmem:[%s177 + $0x7e8] sm:$0xff] %v684
                %v686 = vld [vmem:[%s176 + $0xfd0] sm:$0xff]
                %687 = vst [vmem:[%s177 + $0x7f0] sm:$0xff] %v686
                %v688 = vld [vmem:[%s176 + $0xfd8] sm:$0xff]
                %689 = vst [vmem:[%s177 + $0x7f8] sm:$0xff] %v688
              $region37: #{_lambda_.6} parent=31 // loop_footer
                %s175 = sadd.s32 1, %s171
              $region38: #{_lambda_.6} parent=31 // loop_footer_branch
                %170 = sbr.rel target = $region34
              $region39: #{_lambda_.6} parent=31 // loop_exit
                _
            $region32: #{_lambda_.6} parent=27 // pred_fallthru
              _
            // Predicated region
            $region40: #{_lambda_.6} parent=27 // pred_check
              _
            $region41: #{_lambda_.6} parent=27 // pred_check_branch
              %691 = sbr.rel target = $region43
            $region42: #{_lambda_.6} parent=27 // pred_region
              _
            $region43: #{_lambda_.6} parent=27 // pred_fallthru
              _
          $region28: #{_lambda_.6} parent=23 // pred_fallthru
            _
          %692 = vnop
        $region24: #{_lambda_.6} parent=19 // pred_fallthru
          _
        // Predicated region
        $region44: #{_lambda_.6} parent=19 // pred_check
          %p693 = pneg %p93
        $region45: #{_lambda_.6} parent=19 // pred_check_branch
          %695 = sbr.rel (%p693) target = $region47
        $region46: #{_lambda_.6} parent=19 // pred_region
          %s696 = smul.u32 4, %s17
          %p697 = scmp.lt.s32.totalorder %s696, 7
          %s698 = scalar_select %p697, %s696, 7
          %s699 = scalar_lea.vmem %s2, %s698
          %s700 = smul.u32 4, %s17
        $region47: #{_lambda_.6} parent=19 // pred_fallthru
          _
      $region20: #{_lambda_.6} parent=5 // pred_fallthru
        _
      %p701 = scmp.le.s32.totalorder 1, %s9
      %p702 = scmp.lt.s32.totalorder %s9, 3
      %p703 = pnand %p701, %p702
      %p704 = pneg %p703
      // Predicated region
      $region48: #{_lambda_.6} parent=5 // pred_check
        _
      $region49: #{_lambda_.6} parent=5 // pred_check_branch
        %706 = sbr.rel (%p703) target = $region51
      $region50: #{_lambda_.6} parent=5 // pred_region
        %s707 = ssub.s32 %s9, 1
        %s708 = sand.u32 %s60, 1
        %s709 = sand.u32 %s60, 1
        %s710 = smul.addr %s709, 2048
        %s711 = scalar_lea.vmem [#allocation2], %s710
        // Predicated region
        $region52: #{_lambda_.6} parent=50 // pred_check
          %p712 = pneg %p73
        $region53: #{_lambda_.6} parent=50 // pred_check_branch
          %714 = sbr.rel (%p712) target = $region55
        $region54: #{_lambda_.6} parent=50 // pred_region
          _
        $region55: #{_lambda_.6} parent=50 // pred_fallthru
          _
        %s715 = smul.u32 4, %s18
        %p716 = scmp.lt.s32.totalorder %s715, 3
        %s717 = scalar_select %p716, %s715, 3
        %s718 = smul.addr %s717, 4
        %s719 = smul.addr %s718, 8
        %s720 = scalar_lea.vmem %s0, %s719
        %p721 = pneg %p47
        %p722 = pneg %p44
        %s723 = sand.u32 %s60, 1
        %s724 = sand.u32 %s60, 1
        %s725 = smul.addr %s724, 2048
        %s726 = scalar_lea.vmem [#allocation2], %s725
        %p727 = pneg %p73
        %p728 = pneg %p70
        %s729 = smul.u32 4, %s19
        %p730 = scmp.lt.s32.totalorder %s729, 7
        %s731 = scalar_select %p730, %s729, 7
        %s732 = scalar_lea.vmem %s2, %s731
        %p733 = pneg %p99
        %p734 = pneg %p96
        %p735 = pneg %p127
        %p736 = pneg %p124
        %s737 = sand.u32 %s114, 1
        %s738 = sand.u32 %s114, 1
        %s739 = smul.addr %s738, 128
        %s740 = scalar_lea.vmem [#allocation3], %s739
        %s741 = smul.u32 4, %s18
        %p742 = scmp.lt.s32.totalorder %s741, 3
        %s743 = scalar_select %p742, %s741, 3
        %s744 = smul.addr %s743, 4
        %s745 = smul.addr %s744, 8
        %s746 = scalar_lea.vmem %s0, %s745
        %s747 = smul.u32 4, %s18
        %s748 = smul.u32 4, %s19
        %s749 = smul.u32 4, %s19
        %p750 = scmp.lt.s32.totalorder %s749, 7
        %s751 = scalar_select %p750, %s749, 7
        %s752 = scalar_lea.vmem %s2, %s751
        %s753 = smul.u32 4, %s19
        %s754 = smul.u32 4, %s18
        %s755 = smul.u32 4, %s19
        %v756 = vld [vmem:[%s746] sm:$0xff]
        %v757 = vld [vmem:[%s746 + $0x8] sm:$0xff]
        %v758 = vld [vmem:[%s746 + $0x10] sm:$0xff]
        %v759 = vld [vmem:[%s746 + $0x18] sm:$0xff]
        %v760 = vld [vmem:[%s746 + $0x20] sm:$0xff]
        %v761 = vld [vmem:[%s746 + $0x28] sm:$0xff]
        %v762 = vld [vmem:[%s746 + $0x30] sm:$0xff]
        %v763 = vld [vmem:[%s746 + $0x38] sm:$0xff]
        %v764 = vld [vmem:[%s746 + $0x40] sm:$0xff]
        %v765 = vld [vmem:[%s746 + $0x48] sm:$0xff]
        %v766 = vld [vmem:[%s746 + $0x50] sm:$0xff]
        %v767 = vld [vmem:[%s746 + $0x58] sm:$0xff]
        %v768 = vld [vmem:[%s746 + $0x60] sm:$0xff]
        %v769 = vld [vmem:[%s746 + $0x68] sm:$0xff]
        %v770 = vld [vmem:[%s746 + $0x70] sm:$0xff]
        %v771 = vld [vmem:[%s746 + $0x78] sm:$0xff]
        %v772 = vld [vmem:[%s711] sm:$0xff]
        %v773 = vld [vmem:[%s711 + $0x8] sm:$0xff]
        %v774 = vld [vmem:[%s711 + $0x10] sm:$0xff]
        %v775 = vld [vmem:[%s711 + $0x18] sm:$0xff]
        %v776 = vld [vmem:[%s711 + $0x20] sm:$0xff]
        %v777 = vld [vmem:[%s711 + $0x28] sm:$0xff]
        %v778 = vld [vmem:[%s711 + $0x30] sm:$0xff]
        %v779 = vld [vmem:[%s711 + $0x38] sm:$0xff]
        %v780 = vld [vmem:[%s711 + $0x40] sm:$0xff]
        %v781 = vld [vmem:[%s711 + $0x48] sm:$0xff]
        %v782 = vld [vmem:[%s711 + $0x50] sm:$0xff]
        %v783 = vld [vmem:[%s711 + $0x58] sm:$0xff]
        %v784 = vld [vmem:[%s711 + $0x60] sm:$0xff]
        %v785 = vld [vmem:[%s711 + $0x68] sm:$0xff]
        %v786 = vld [vmem:[%s711 + $0x70] sm:$0xff]
        %v787 = vld [vmem:[%s711 + $0x78] sm:$0xff]
        %v788 = vld [vmem:[%s711 + $0x80] sm:$0xff]
        %v789 = vld [vmem:[%s711 + $0x88] sm:$0xff]
        %v790 = vld [vmem:[%s711 + $0x90] sm:$0xff]
        %v791 = vld [vmem:[%s711 + $0x98] sm:$0xff]
        %v792 = vld [vmem:[%s711 + $0xa0] sm:$0xff]
        %v793 = vld [vmem:[%s711 + $0xa8] sm:$0xff]
        %v794 = vld [vmem:[%s711 + $0xb0] sm:$0xff]
        %v795 = vld [vmem:[%s711 + $0xb8] sm:$0xff]
        %v796 = vld [vmem:[%s711 + $0xc0] sm:$0xff]
        %v797 = vld [vmem:[%s711 + $0xc8] sm:$0xff]
        %v798 = vld [vmem:[%s711 + $0xd0] sm:$0xff]
        %v799 = vld [vmem:[%s711 + $0xd8] sm:$0xff]
        %v800 = vld [vmem:[%s711 + $0xe0] sm:$0xff]
        %v801 = vld [vmem:[%s711 + $0xe8] sm:$0xff]
        %v802 = vld [vmem:[%s711 + $0xf0] sm:$0xff]
        %v803 = vld [vmem:[%s711 + $0xf8] sm:$0xff]
        %v804 = vld [vmem:[%s711 + $0x100] sm:$0xff]
        %v805 = vld [vmem:[%s711 + $0x108] sm:$0xff]
        %v806 = vld [vmem:[%s711 + $0x110] sm:$0xff]
        %v807 = vld [vmem:[%s711 + $0x118] sm:$0xff]
        %v808 = vld [vmem:[%s711 + $0x120] sm:$0xff]
        %v809 = vld [vmem:[%s711 + $0x128] sm:$0xff]
        %v810 = vld [vmem:[%s711 + $0x130] sm:$0xff]
        %v811 = vld [vmem:[%s711 + $0x138] sm:$0xff]
        %v812 = vld [vmem:[%s711 + $0x140] sm:$0xff]
        %v813 = vld [vmem:[%s711 + $0x148] sm:$0xff]
        %v814 = vld [vmem:[%s711 + $0x150] sm:$0xff]
        %v815 = vld [vmem:[%s711 + $0x158] sm:$0xff]
        %v816 = vld [vmem:[%s711 + $0x160] sm:$0xff]
        %v817 = vld [vmem:[%s711 + $0x168] sm:$0xff]
        %v818 = vld [vmem:[%s711 + $0x170] sm:$0xff]
        %v819 = vld [vmem:[%s711 + $0x178] sm:$0xff]
        %v820 = vld [vmem:[%s711 + $0x180] sm:$0xff]
        %v821 = vld [vmem:[%s711 + $0x188] sm:$0xff]
        %v822 = vld [vmem:[%s711 + $0x190] sm:$0xff]
        %v823 = vld [vmem:[%s711 + $0x198] sm:$0xff]
        %v824 = vld [vmem:[%s711 + $0x1a0] sm:$0xff]
        %v825 = vld [vmem:[%s711 + $0x1a8] sm:$0xff]
        %v826 = vld [vmem:[%s711 + $0x1b0] sm:$0xff]
        %v827 = vld [vmem:[%s711 + $0x1b8] sm:$0xff]
        %v828 = vld [vmem:[%s711 + $0x1c0] sm:$0xff]
        %v829 = vld [vmem:[%s711 + $0x1c8] sm:$0xff]
        %v830 = vld [vmem:[%s711 + $0x1d0] sm:$0xff]
        %v831 = vld [vmem:[%s711 + $0x1d8] sm:$0xff]
        %v832 = vld [vmem:[%s711 + $0x1e0] sm:$0xff]
        %v833 = vld [vmem:[%s711 + $0x1e8] sm:$0xff]
        %v834 = vld [vmem:[%s711 + $0x1f0] sm:$0xff]
        %v835 = vld [vmem:[%s711 + $0x1f8] sm:$0xff]
        %v836 = vld [vmem:[%s711 + $0x200] sm:$0xff]
        %v837 = vld [vmem:[%s711 + $0x208] sm:$0xff]
        %v838 = vld [vmem:[%s711 + $0x210] sm:$0xff]
        %v839 = vld [vmem:[%s711 + $0x218] sm:$0xff]
        %v840 = vld [vmem:[%s711 + $0x220] sm:$0xff]
        %v841 = vld [vmem:[%s711 + $0x228] sm:$0xff]
        %v842 = vld [vmem:[%s711 + $0x230] sm:$0xff]
        %v843 = vld [vmem:[%s711 + $0x238] sm:$0xff]
        %v844 = vld [vmem:[%s711 + $0x240] sm:$0xff]
        %v845 = vld [vmem:[%s711 + $0x248] sm:$0xff]
        %v846 = vld [vmem:[%s711 + $0x250] sm:$0xff]
        %v847 = vld [vmem:[%s711 + $0x258] sm:$0xff]
        %v848 = vld [vmem:[%s711 + $0x260] sm:$0xff]
        %v849 = vld [vmem:[%s711 + $0x268] sm:$0xff]
        %v850 = vld [vmem:[%s711 + $0x270] sm:$0xff]
        %v851 = vld [vmem:[%s711 + $0x278] sm:$0xff]
        %v852 = vld [vmem:[%s711 + $0x280] sm:$0xff]
        %v853 = vld [vmem:[%s711 + $0x288] sm:$0xff]
        %v854 = vld [vmem:[%s711 + $0x290] sm:$0xff]
        %v855 = vld [vmem:[%s711 + $0x298] sm:$0xff]
        %v856 = vld [vmem:[%s711 + $0x2a0] sm:$0xff]
        %v857 = vld [vmem:[%s711 + $0x2a8] sm:$0xff]
        %v858 = vld [vmem:[%s711 + $0x2b0] sm:$0xff]
        %v859 = vld [vmem:[%s711 + $0x2b8] sm:$0xff]
        %v860 = vld [vmem:[%s711 + $0x2c0] sm:$0xff]
        %v861 = vld [vmem:[%s711 + $0x2c8] sm:$0xff]
        %v862 = vld [vmem:[%s711 + $0x2d0] sm:$0xff]
        %v863 = vld [vmem:[%s711 + $0x2d8] sm:$0xff]
        %v864 = vld [vmem:[%s711 + $0x2e0] sm:$0xff]
        %v865 = vld [vmem:[%s711 + $0x2e8] sm:$0xff]
        %v866 = vld [vmem:[%s711 + $0x2f0] sm:$0xff]
        %v867 = vld [vmem:[%s711 + $0x2f8] sm:$0xff]
        %v868 = vld [vmem:[%s711 + $0x300] sm:$0xff]
        %v869 = vld [vmem:[%s711 + $0x308] sm:$0xff]
        %v870 = vld [vmem:[%s711 + $0x310] sm:$0xff]
        %v871 = vld [vmem:[%s711 + $0x318] sm:$0xff]
        %v872 = vld [vmem:[%s711 + $0x320] sm:$0xff]
        %v873 = vld [vmem:[%s711 + $0x328] sm:$0xff]
        %v874 = vld [vmem:[%s711 + $0x330] sm:$0xff]
        %v875 = vld [vmem:[%s711 + $0x338] sm:$0xff]
        %v876 = vld [vmem:[%s711 + $0x340] sm:$0xff]
        %v877 = vld [vmem:[%s711 + $0x348] sm:$0xff]
        %v878 = vld [vmem:[%s711 + $0x350] sm:$0xff]
        %v879 = vld [vmem:[%s711 + $0x358] sm:$0xff]
        %v880 = vld [vmem:[%s711 + $0x360] sm:$0xff]
        %v881 = vld [vmem:[%s711 + $0x368] sm:$0xff]
        %v882 = vld [vmem:[%s711 + $0x370] sm:$0xff]
        %v883 = vld [vmem:[%s711 + $0x378] sm:$0xff]
        %v884 = vld [vmem:[%s711 + $0x380] sm:$0xff]
        %v885 = vld [vmem:[%s711 + $0x388] sm:$0xff]
        %v886 = vld [vmem:[%s711 + $0x390] sm:$0xff]
        %v887 = vld [vmem:[%s711 + $0x398] sm:$0xff]
        %v888 = vld [vmem:[%s711 + $0x3a0] sm:$0xff]
        %v889 = vld [vmem:[%s711 + $0x3a8] sm:$0xff]
        %v890 = vld [vmem:[%s711 + $0x3b0] sm:$0xff]
        %v891 = vld [vmem:[%s711 + $0x3b8] sm:$0xff]
        %v892 = vld [vmem:[%s711 + $0x3c0] sm:$0xff]
        %v893 = vld [vmem:[%s711 + $0x3c8] sm:$0xff]
        %v894 = vld [vmem:[%s711 + $0x3d0] sm:$0xff]
        %v895 = vld [vmem:[%s711 + $0x3d8] sm:$0xff]
        %v896 = vld [vmem:[%s711 + $0x3e0] sm:$0xff]
        %v897 = vld [vmem:[%s711 + $0x3e8] sm:$0xff]
        %v898 = vld [vmem:[%s711 + $0x3f0] sm:$0xff]
        %v899 = vld [vmem:[%s711 + $0x3f8] sm:$0xff]
        %v900 = vld [vmem:[%s711 + $0x400] sm:$0xff]
        %v901 = vld [vmem:[%s711 + $0x408] sm:$0xff]
        %v902 = vld [vmem:[%s711 + $0x410] sm:$0xff]
        %v903 = vld [vmem:[%s711 + $0x418] sm:$0xff]
        %v904 = vld [vmem:[%s711 + $0x420] sm:$0xff]
        %v905 = vld [vmem:[%s711 + $0x428] sm:$0xff]
        %v906 = vld [vmem:[%s711 + $0x430] sm:$0xff]
        %v907 = vld [vmem:[%s711 + $0x438] sm:$0xff]
        %v908 = vld [vmem:[%s711 + $0x440] sm:$0xff]
        %v909 = vld [vmem:[%s711 + $0x448] sm:$0xff]
        %v910 = vld [vmem:[%s711 + $0x450] sm:$0xff]
        %v911 = vld [vmem:[%s711 + $0x458] sm:$0xff]
        %v912 = vld [vmem:[%s711 + $0x460] sm:$0xff]
        %v913 = vld [vmem:[%s711 + $0x468] sm:$0xff]
        %v914 = vld [vmem:[%s711 + $0x470] sm:$0xff]
        %v915 = vld [vmem:[%s711 + $0x478] sm:$0xff]
        %v916 = vld [vmem:[%s711 + $0x480] sm:$0xff]
        %v917 = vld [vmem:[%s711 + $0x488] sm:$0xff]
        %v918 = vld [vmem:[%s711 + $0x490] sm:$0xff]
        %v919 = vld [vmem:[%s711 + $0x498] sm:$0xff]
        %v920 = vld [vmem:[%s711 + $0x4a0] sm:$0xff]
        %v921 = vld [vmem:[%s711 + $0x4a8] sm:$0xff]
        %v922 = vld [vmem:[%s711 + $0x4b0] sm:$0xff]
        %v923 = vld [vmem:[%s711 + $0x4b8] sm:$0xff]
        %v924 = vld [vmem:[%s711 + $0x4c0] sm:$0xff]
        %v925 = vld [vmem:[%s711 + $0x4c8] sm:$0xff]
        %v926 = vld [vmem:[%s711 + $0x4d0] sm:$0xff]
        %v927 = vld [vmem:[%s711 + $0x4d8] sm:$0xff]
        %v928 = vld [vmem:[%s711 + $0x4e0] sm:$0xff]
        %v929 = vld [vmem:[%s711 + $0x4e8] sm:$0xff]
        %v930 = vld [vmem:[%s711 + $0x4f0] sm:$0xff]
        %v931 = vld [vmem:[%s711 + $0x4f8] sm:$0xff]
        %v932 = vld [vmem:[%s711 + $0x500] sm:$0xff]
        %v933 = vld [vmem:[%s711 + $0x508] sm:$0xff]
        %v934 = vld [vmem:[%s711 + $0x510] sm:$0xff]
        %v935 = vld [vmem:[%s711 + $0x518] sm:$0xff]
        %v936 = vld [vmem:[%s711 + $0x520] sm:$0xff]
        %v937 = vld [vmem:[%s711 + $0x528] sm:$0xff]
        %v938 = vld [vmem:[%s711 + $0x530] sm:$0xff]
        %v939 = vld [vmem:[%s711 + $0x538] sm:$0xff]
        %v940 = vld [vmem:[%s711 + $0x540] sm:$0xff]
        %v941 = vld [vmem:[%s711 + $0x548] sm:$0xff]
        %v942 = vld [vmem:[%s711 + $0x550] sm:$0xff]
        %v943 = vld [vmem:[%s711 + $0x558] sm:$0xff]
        %v944 = vld [vmem:[%s711 + $0x560] sm:$0xff]
        %v945 = vld [vmem:[%s711 + $0x568] sm:$0xff]
        %v946 = vld [vmem:[%s711 + $0x570] sm:$0xff]
        %v947 = vld [vmem:[%s711 + $0x578] sm:$0xff]
        %v948 = vld [vmem:[%s711 + $0x580] sm:$0xff]
        %v949 = vld [vmem:[%s711 + $0x588] sm:$0xff]
        %v950 = vld [vmem:[%s711 + $0x590] sm:$0xff]
        %v951 = vld [vmem:[%s711 + $0x598] sm:$0xff]
        %v952 = vld [vmem:[%s711 + $0x5a0] sm:$0xff]
        %v953 = vld [vmem:[%s711 + $0x5a8] sm:$0xff]
        %v954 = vld [vmem:[%s711 + $0x5b0] sm:$0xff]
        %v955 = vld [vmem:[%s711 + $0x5b8] sm:$0xff]
        %v956 = vld [vmem:[%s711 + $0x5c0] sm:$0xff]
        %v957 = vld [vmem:[%s711 + $0x5c8] sm:$0xff]
        %v958 = vld [vmem:[%s711 + $0x5d0] sm:$0xff]
        %v959 = vld [vmem:[%s711 + $0x5d8] sm:$0xff]
        %v960 = vld [vmem:[%s711 + $0x5e0] sm:$0xff]
        %v961 = vld [vmem:[%s711 + $0x5e8] sm:$0xff]
        %v962 = vld [vmem:[%s711 + $0x5f0] sm:$0xff]
        %v963 = vld [vmem:[%s711 + $0x5f8] sm:$0xff]
        %v964 = vld [vmem:[%s711 + $0x600] sm:$0xff]
        %v965 = vld [vmem:[%s711 + $0x608] sm:$0xff]
        %v966 = vld [vmem:[%s711 + $0x610] sm:$0xff]
        %v967 = vld [vmem:[%s711 + $0x618] sm:$0xff]
        %v968 = vld [vmem:[%s711 + $0x620] sm:$0xff]
        %v969 = vld [vmem:[%s711 + $0x628] sm:$0xff]
        %v970 = vld [vmem:[%s711 + $0x630] sm:$0xff]
        %v971 = vld [vmem:[%s711 + $0x638] sm:$0xff]
        %v972 = vld [vmem:[%s711 + $0x640] sm:$0xff]
        %v973 = vld [vmem:[%s711 + $0x648] sm:$0xff]
        %v974 = vld [vmem:[%s711 + $0x650] sm:$0xff]
        %v975 = vld [vmem:[%s711 + $0x658] sm:$0xff]
        %v976 = vld [vmem:[%s711 + $0x660] sm:$0xff]
        %v977 = vld [vmem:[%s711 + $0x668] sm:$0xff]
        %v978 = vld [vmem:[%s711 + $0x670] sm:$0xff]
        %v979 = vld [vmem:[%s711 + $0x678] sm:$0xff]
        %v980 = vld [vmem:[%s711 + $0x680] sm:$0xff]
        %v981 = vld [vmem:[%s711 + $0x688] sm:$0xff]
        %v982 = vld [vmem:[%s711 + $0x690] sm:$0xff]
        %v983 = vld [vmem:[%s711 + $0x698] sm:$0xff]
        %v984 = vld [vmem:[%s711 + $0x6a0] sm:$0xff]
        %v985 = vld [vmem:[%s711 + $0x6a8] sm:$0xff]
        %v986 = vld [vmem:[%s711 + $0x6b0] sm:$0xff]
        %v987 = vld [vmem:[%s711 + $0x6b8] sm:$0xff]
        %v988 = vld [vmem:[%s711 + $0x6c0] sm:$0xff]
        %v989 = vld [vmem:[%s711 + $0x6c8] sm:$0xff]
        %v990 = vld [vmem:[%s711 + $0x6d0] sm:$0xff]
        %v991 = vld [vmem:[%s711 + $0x6d8] sm:$0xff]
        %v992 = vld [vmem:[%s711 + $0x6e0] sm:$0xff]
        %v993 = vld [vmem:[%s711 + $0x6e8] sm:$0xff]
        %v994 = vld [vmem:[%s711 + $0x6f0] sm:$0xff]
        %v995 = vld [vmem:[%s711 + $0x6f8] sm:$0xff]
        %v996 = vld [vmem:[%s711 + $0x700] sm:$0xff]
        %v997 = vld [vmem:[%s711 + $0x708] sm:$0xff]
        %v998 = vld [vmem:[%s711 + $0x710] sm:$0xff]
        %v999 = vld [vmem:[%s711 + $0x718] sm:$0xff]
        %v1000 = vld [vmem:[%s711 + $0x720] sm:$0xff]
        %v1001 = vld [vmem:[%s711 + $0x728] sm:$0xff]
        %v1002 = vld [vmem:[%s711 + $0x730] sm:$0xff]
        %v1003 = vld [vmem:[%s711 + $0x738] sm:$0xff]
        %v1004 = vld [vmem:[%s711 + $0x740] sm:$0xff]
        %v1005 = vld [vmem:[%s711 + $0x748] sm:$0xff]
        %v1006 = vld [vmem:[%s711 + $0x750] sm:$0xff]
        %v1007 = vld [vmem:[%s711 + $0x758] sm:$0xff]
        %v1008 = vld [vmem:[%s711 + $0x760] sm:$0xff]
        %v1009 = vld [vmem:[%s711 + $0x768] sm:$0xff]
        %v1010 = vld [vmem:[%s711 + $0x770] sm:$0xff]
        %v1011 = vld [vmem:[%s711 + $0x778] sm:$0xff]
        %v1012 = vld [vmem:[%s711 + $0x780] sm:$0xff]
        %v1013 = vld [vmem:[%s711 + $0x788] sm:$0xff]
        %v1014 = vld [vmem:[%s711 + $0x790] sm:$0xff]
        %v1015 = vld [vmem:[%s711 + $0x798] sm:$0xff]
        %v1016 = vld [vmem:[%s711 + $0x7a0] sm:$0xff]
        %v1017 = vld [vmem:[%s711 + $0x7a8] sm:$0xff]
        %v1018 = vld [vmem:[%s711 + $0x7b0] sm:$0xff]
        %v1019 = vld [vmem:[%s711 + $0x7b8] sm:$0xff]
        %v1020 = vld [vmem:[%s711 + $0x7c0] sm:$0xff]
        %v1021 = vld [vmem:[%s711 + $0x7c8] sm:$0xff]
        %v1022 = vld [vmem:[%s711 + $0x7d0] sm:$0xff]
        %v1023 = vld [vmem:[%s711 + $0x7d8] sm:$0xff]
        %v1024 = vld [vmem:[%s711 + $0x7e0] sm:$0xff]
        %v1025 = vld [vmem:[%s711 + $0x7e8] sm:$0xff]
        %v1026 = vld [vmem:[%s711 + $0x7f0] sm:$0xff]
        %v1027 = vld [vmem:[%s711 + $0x7f8] sm:$0xff]
        %v1028 = vld [vmem:[%s752] sm:$0xf]
        %v1030 = vlaneseq
        %v1031 = vshrl.u32 %v1030, 7
        %v1032 = vsub.s32 0, %v1031
        %v1033 = vrot.slane %v1028, %v1032
        %v1034 = vlaneseq
        %v1035 = vshrl.u32 %v1034, 7
        %v1036 = vsub.s32 1, %v1035
        %v1037 = vrot.slane %v1028, %v1036
        %v1038 = vlaneseq
        %v1039 = vshrl.u32 %v1038, 7
        %v1040 = vsub.s32 2, %v1039
        %v1041 = vrot.slane %v1028, %v1040
        %v1042 = vlaneseq
        %v1043 = vshrl.u32 %v1042, 7
        %v1044 = vsub.s32 3, %v1043
        %v1045 = vrot.slane %v1028, %v1044
        %1050 = vmatprep.subr.mxu0 %v773
        %1051 = vmatpush1.msra.mxu0 %v772
        %1052 = vmatprep.subr.mxu0 %v777
        %1053 = vmatpush1.msra.mxu0 %v776
        %1054 = vmatprep.subr.mxu0 %v781
        %1055 = vmatpush1.msra.mxu0 %v780
        %1056 = vmatprep.subr.mxu0 %v785
        %1057 = vmatpush1.msra.mxu0 %v784
        %1058 = vmatprep.subr.mxu0 %v789
        %1059 = vmatpush1.msra.mxu0 %v788
        %1060 = vmatprep.subr.mxu0 %v793
        %1061 = vmatpush1.msra.mxu0 %v792
        %1062 = vmatprep.subr.mxu0 %v797
        %1063 = vmatpush1.msra.mxu0 %v796
        %1064 = vmatprep.subr.mxu0 %v801
        %1065 = vmatpush1.msra.mxu0 %v800
        %1066 = vmatprep.subr.mxu0 %v805
        %1067 = vmatpush1.msra.mxu0 %v804
        %1068 = vmatprep.subr.mxu0 %v809
        %1069 = vmatpush1.msra.mxu0 %v808
        %1070 = vmatprep.subr.mxu0 %v813
        %1071 = vmatpush1.msra.mxu0 %v812
        %1072 = vmatprep.subr.mxu0 %v817
        %1073 = vmatpush1.msra.mxu0 %v816
        %1074 = vmatprep.subr.mxu0 %v821
        %1075 = vmatpush1.msra.mxu0 %v820
        %1076 = vmatprep.subr.mxu0 %v825
        %1077 = vmatpush1.msra.mxu0 %v824
        %1078 = vmatprep.subr.mxu0 %v829
        %1079 = vmatpush1.msra.mxu0 %v828
        %1080 = vmatprep.subr.mxu0 %v833
        %1081 = vmatpush1.msra.mxu0 %v832
        %1082 = vmatprep.subr.mxu0 %v837
        %1083 = vmatpush1.msra.mxu0 %v836
        %1084 = vmatprep.subr.mxu0 %v841
        %1085 = vmatpush1.msra.mxu0 %v840
        %1086 = vmatprep.subr.mxu0 %v845
        %1087 = vmatpush1.msra.mxu0 %v844
        %1088 = vmatprep.subr.mxu0 %v849
        %1089 = vmatpush1.msra.mxu0 %v848
        %1090 = vmatprep.subr.mxu0 %v853
        %1091 = vmatpush1.msra.mxu0 %v852
        %1092 = vmatprep.subr.mxu0 %v857
        %1093 = vmatpush1.msra.mxu0 %v856
        %1094 = vmatprep.subr.mxu0 %v861
        %1095 = vmatpush1.msra.mxu0 %v860
        %1096 = vmatprep.subr.mxu0 %v865
        %1097 = vmatpush1.msra.mxu0 %v864
        %1098 = vmatprep.subr.mxu0 %v869
        %1099 = vmatpush1.msra.mxu0 %v868
        %1100 = vmatprep.subr.mxu0 %v873
        %1101 = vmatpush1.msra.mxu0 %v872
        %1102 = vmatprep.subr.mxu0 %v877
        %1103 = vmatpush1.msra.mxu0 %v876
        %1104 = vmatprep.subr.mxu0 %v881
        %1105 = vmatpush1.msra.mxu0 %v880
        %1106 = vmatprep.subr.mxu0 %v885
        %1107 = vmatpush1.msra.mxu0 %v884
        %1108 = vmatprep.subr.mxu0 %v889
        %1109 = vmatpush1.msra.mxu0 %v888
        %1110 = vmatprep.subr.mxu0 %v893
        %1111 = vmatpush1.msra.mxu0 %v892
        %1112 = vmatprep.subr.mxu0 %v897
        %1113 = vmatpush1.msra.mxu0 %v896
        %1114 = vmatprep.mubr.f32.mxu0 %v757
        %1115 = vmatmul.mubr.f32.gmra.mrb[0].mxu0 %v756
        %v1116 = vpop.f32.mrb[0].mxu0
        %v1117 = vadd.f32 %v1033, %v1116
        %v1118 = vpop.f32.mrb[0].mxu0
        %v1119 = vadd.f32 %v1037, %v1118
        %1120 = vmatprep.mubr.f32.mxu0 %v761
        %1121 = vmatmul.mubr.f32.gmra.mrb[0].mxu0 %v760
        %v1122 = vpop.f32.mrb[0].mxu0
        %v1123 = vadd.f32 %v1033, %v1122
        %v1124 = vpop.f32.mrb[0].mxu0
        %v1125 = vadd.f32 %v1037, %v1124
        %1126 = vmatprep.mubr.f32.mxu0 %v765
        %1127 = vmatmul.mubr.f32.gmra.mrb[0].mxu0 %v764
        %v1128 = vpop.f32.mrb[0].mxu0
        %v1129 = vadd.f32 %v1033, %v1128
        %v1130 = vpop.f32.mrb[0].mxu0
        %v1131 = vadd.f32 %v1037, %v1130
        %1132 = vmatprep.mubr.f32.mxu0 %v769
        %1133 = vmatmul.mubr.f32.gmra.mrb[0].mxu0 %v768
        %v1134 = vpop.f32.mrb[0].mxu0
        %v1135 = vadd.f32 %v1033, %v1134
        %v1136 = vpop.f32.mrb[0].mxu0
        %v1137 = vadd.f32 %v1037, %v1136
        %1138 = vdwg.mxu0
        %1139 = vmatprep.subr.mxu0 %v901
        %1140 = vmatpush1.msra.mxu0 %v900
        %1141 = vmatprep.subr.mxu0 %v905
        %1142 = vmatpush1.msra.mxu0 %v904
        %1143 = vmatprep.subr.mxu0 %v909
        %1144 = vmatpush1.msra.mxu0 %v908
        %1145 = vmatprep.subr.mxu0 %v913
        %1146 = vmatpush1.msra.mxu0 %v912
        %1147 = vmatprep.subr.mxu0 %v917
        %1148 = vmatpush1.msra.mxu0 %v916
        %1149 = vmatprep.subr.mxu0 %v921
        %1150 = vmatpush1.msra.mxu0 %v920
        %1151 = vmatprep.subr.mxu0 %v925
        %1152 = vmatpush1.msra.mxu0 %v924
        %1153 = vmatprep.subr.mxu0 %v929
        %1154 = vmatpush1.msra.mxu0 %v928
        %1155 = vmatprep.subr.mxu0 %v933
        %1156 = vmatpush1.msra.mxu0 %v932
        %1157 = vmatprep.subr.mxu0 %v937
        %1158 = vmatpush1.msra.mxu0 %v936
        %1159 = vmatprep.subr.mxu0 %v941
        %1160 = vmatpush1.msra.mxu0 %v940
        %1161 = vmatprep.subr.mxu0 %v945
        %1162 = vmatpush1.msra.mxu0 %v944
        %1163 = vmatprep.subr.mxu0 %v949
        %1164 = vmatpush1.msra.mxu0 %v948
        %1165 = vmatprep.subr.mxu0 %v953
        %1166 = vmatpush1.msra.mxu0 %v952
        %1167 = vmatprep.subr.mxu0 %v957
        %1168 = vmatpush1.msra.mxu0 %v956
        %1169 = vmatprep.subr.mxu0 %v961
        %1170 = vmatpush1.msra.mxu0 %v960
        %1171 = vmatprep.subr.mxu0 %v965
        %1172 = vmatpush1.msra.mxu0 %v964
        %1173 = vmatprep.subr.mxu0 %v969
        %1174 = vmatpush1.msra.mxu0 %v968
        %1175 = vmatprep.subr.mxu0 %v973
        %1176 = vmatpush1.msra.mxu0 %v972
        %1177 = vmatprep.subr.mxu0 %v977
        %1178 = vmatpush1.msra.mxu0 %v976
        %1179 = vmatprep.subr.mxu0 %v981
        %1180 = vmatpush1.msra.mxu0 %v980
        %1181 = vmatprep.subr.mxu0 %v985
        %1182 = vmatpush1.msra.mxu0 %v984
        %1183 = vmatprep.subr.mxu0 %v989
        %1184 = vmatpush1.msra.mxu0 %v988
        %1185 = vmatprep.subr.mxu0 %v993
        %1186 = vmatpush1.msra.mxu0 %v992
        %1187 = vmatprep.subr.mxu0 %v997
        %1188 = vmatpush1.msra.mxu0 %v996
        %1189 = vmatprep.subr.mxu0 %v1001
        %1190 = vmatpush1.msra.mxu0 %v1000
        %1191 = vmatprep.subr.mxu0 %v1005
        %1192 = vmatpush1.msra.mxu0 %v1004
        %1193 = vmatprep.subr.mxu0 %v1009
        %1194 = vmatpush1.msra.mxu0 %v1008
        %1195 = vmatprep.subr.mxu0 %v1013
        %1196 = vmatpush1.msra.mxu0 %v1012
        %1197 = vmatprep.subr.mxu0 %v1017
        %1198 = vmatpush1.msra.mxu0 %v1016
        %1199 = vmatprep.subr.mxu0 %v1021
        %1200 = vmatpush1.msra.mxu0 %v1020
        %1201 = vmatprep.subr.mxu0 %v1025
        %1202 = vmatpush1.msra.mxu0 %v1024
        %1203 = vmatprep.mubr.f32.mxu0 %v759
        %1204 = vmatmul.mubr.f32.gmra.mrb[0].mxu0 %v758
        %v1205 = vpop.f32.mrb[0].mxu0
        %v1206 = vadd.f32 %v1117, %v1205
        %v1207 = vpop.f32.mrb[0].mxu0
        %v1208 = vadd.f32 %v1119, %v1207
        %1209 = vmatprep.mubr.f32.mxu0 %v763
        %1210 = vmatmul.mubr.f32.gmra.mrb[0].mxu0 %v762
        %v1211 = vpop.f32.mrb[0].mxu0
        %v1212 = vadd.f32 %v1123, %v1211
        %v1213 = vpop.f32.mrb[0].mxu0
        %v1214 = vadd.f32 %v1125, %v1213
        %1215 = vmatprep.mubr.f32.mxu0 %v767
        %1216 = vmatmul.mubr.f32.gmra.mrb[0].mxu0 %v766
        %v1217 = vpop.f32.mrb[0].mxu0
        %v1218 = vadd.f32 %v1129, %v1217
        %v1219 = vpop.f32.mrb[0].mxu0
        %v1220 = vadd.f32 %v1131, %v1219
        %1221 = vmatprep.mubr.f32.mxu0 %v771
        %1222 = vmatmul.mubr.f32.gmra.mrb[0].mxu0 %v770
        %v1223 = vpop.f32.mrb[0].mxu0
        %v1224 = vadd.f32 %v1135, %v1223
        %v1225 = vpop.f32.mrb[0].mxu0
        %v1226 = vadd.f32 %v1137, %v1225
        %1227 = vdwg.mxu0
        %1228 = vmatprep.subr.mxu0 %v775
        %1229 = vmatpush1.msra.mxu0 %v774
        %1230 = vmatprep.subr.mxu0 %v779
        %1231 = vmatpush1.msra.mxu0 %v778
        %1232 = vmatprep.subr.mxu0 %v783
        %1233 = vmatpush1.msra.mxu0 %v782
        %1234 = vmatprep.subr.mxu0 %v787
        %1235 = vmatpush1.msra.mxu0 %v786
        %1236 = vmatprep.subr.mxu0 %v791
        %1237 = vmatpush1.msra.mxu0 %v790
        %1238 = vmatprep.subr.mxu0 %v795
        %1239 = vmatpush1.msra.mxu0 %v794
        %1240 = vmatprep.subr.mxu0 %v799
        %1241 = vmatpush1.msra.mxu0 %v798
        %1242 = vmatprep.subr.mxu0 %v803
        %1243 = vmatpush1.msra.mxu0 %v802
        %1244 = vmatprep.subr.mxu0 %v807
        %1245 = vmatpush1.msra.mxu0 %v806
        %1246 = vmatprep.subr.mxu0 %v811
        %1247 = vmatpush1.msra.mxu0 %v810
        %1248 = vmatprep.subr.mxu0 %v815
        %1249 = vmatpush1.msra.mxu0 %v814
        %1250 = vmatprep.subr.mxu0 %v819
        %1251 = vmatpush1.msra.mxu0 %v818
        %1252 = vmatprep.subr.mxu0 %v823
        %1253 = vmatpush1.msra.mxu0 %v822
        %1254 = vmatprep.subr.mxu0 %v827
        %1255 = vmatpush1.msra.mxu0 %v826
        %1256 = vmatprep.subr.mxu0 %v831
        %1257 = vmatpush1.msra.mxu0 %v830
        %1258 = vmatprep.subr.mxu0 %v835
        %1259 = vmatpush1.msra.mxu0 %v834
        %1260 = vmatprep.subr.mxu0 %v839
        %1261 = vmatpush1.msra.mxu0 %v838
        %1262 = vmatprep.subr.mxu0 %v843
        %1263 = vmatpush1.msra.mxu0 %v842
        %1264 = vmatprep.subr.mxu0 %v847
        %1265 = vmatpush1.msra.mxu0 %v846
        %1266 = vmatprep.subr.mxu0 %v851
        %1267 = vmatpush1.msra.mxu0 %v850
        %1268 = vmatprep.subr.mxu0 %v855
        %1269 = vmatpush1.msra.mxu0 %v854
        %1270 = vmatprep.subr.mxu0 %v859
        %1271 = vmatpush1.msra.mxu0 %v858
        %1272 = vmatprep.subr.mxu0 %v863
        %1273 = vmatpush1.msra.mxu0 %v862
        %1274 = vmatprep.subr.mxu0 %v867
        %1275 = vmatpush1.msra.mxu0 %v866
        %1276 = vmatprep.subr.mxu0 %v871
        %1277 = vmatpush1.msra.mxu0 %v870
        %1278 = vmatprep.subr.mxu0 %v875
        %1279 = vmatpush1.msra.mxu0 %v874
        %1280 = vmatprep.subr.mxu0 %v879
        %1281 = vmatpush1.msra.mxu0 %v878
        %1282 = vmatprep.subr.mxu0 %v883
        %1283 = vmatpush1.msra.mxu0 %v882
        %1284 = vmatprep.subr.mxu0 %v887
        %1285 = vmatpush1.msra.mxu0 %v886
        %1286 = vmatprep.subr.mxu0 %v891
        %1287 = vmatpush1.msra.mxu0 %v890
        %1288 = vmatprep.subr.mxu0 %v895
        %1289 = vmatpush1.msra.mxu0 %v894
        %1290 = vmatprep.subr.mxu0 %v899
        %1291 = vmatpush1.msra.mxu0 %v898
        %1292 = vmatprep.mubr.f32.mxu0 %v757
        %1293 = vmatmul.mubr.f32.gmra.mrb[0].mxu0 %v756
        %v1294 = vpop.f32.mrb[0].mxu0
        %v1295 = vadd.f32 %v1041, %v1294
        %v1296 = vpop.f32.mrb[0].mxu0
        %v1297 = vadd.f32 %v1045, %v1296
        %1298 = vmatprep.mubr.f32.mxu0 %v761
        %1299 = vmatmul.mubr.f32.gmra.mrb[0].mxu0 %v760
        %v1300 = vpop.f32.mrb[0].mxu0
        %v1301 = vadd.f32 %v1041, %v1300
        %v1302 = vpop.f32.mrb[0].mxu0
        %v1303 = vadd.f32 %v1045, %v1302
        %1304 = vmatprep.mubr.f32.mxu0 %v765
        %1305 = vmatmul.mubr.f32.gmra.mrb[0].mxu0 %v764
        %v1306 = vpop.f32.mrb[0].mxu0
        %v1307 = vadd.f32 %v1041, %v1306
        %v1308 = vpop.f32.mrb[0].mxu0
        %v1309 = vadd.f32 %v1045, %v1308
        %1310 = vmatprep.mubr.f32.mxu0 %v769
        %1311 = vmatmul.mubr.f32.gmra.mrb[0].mxu0 %v768
        %v1312 = vpop.f32.mrb[0].mxu0
        %v1313 = vadd.f32 %v1041, %v1312
        %v1314 = vpop.f32.mrb[0].mxu0
        %v1315 = vadd.f32 %v1045, %v1314
        %1316 = vdwg.mxu0
        %1317 = vmatprep.subr.mxu0 %v903
        %1318 = vmatpush1.msra.mxu0 %v902
        %1319 = vmatprep.subr.mxu0 %v907
        %1320 = vmatpush1.msra.mxu0 %v906
        %1321 = vmatprep.subr.mxu0 %v911
        %1322 = vmatpush1.msra.mxu0 %v910
        %1323 = vmatprep.subr.mxu0 %v915
        %1324 = vmatpush1.msra.mxu0 %v914
        %1325 = vmatprep.subr.mxu0 %v919
        %1326 = vmatpush1.msra.mxu0 %v918
        %1327 = vmatprep.subr.mxu0 %v923
        %1328 = vmatpush1.msra.mxu0 %v922
        %1329 = vmatprep.subr.mxu0 %v927
        %1330 = vmatpush1.msra.mxu0 %v926
        %1331 = vmatprep.subr.mxu0 %v931
        %1332 = vmatpush1.msra.mxu0 %v930
        %1333 = vmatprep.subr.mxu0 %v935
        %1334 = vmatpush1.msra.mxu0 %v934
        %1335 = vmatprep.subr.mxu0 %v939
        %1336 = vmatpush1.msra.mxu0 %v938
        %1337 = vmatprep.subr.mxu0 %v943
        %1338 = vmatpush1.msra.mxu0 %v942
        %1339 = vmatprep.subr.mxu0 %v947
        %1340 = vmatpush1.msra.mxu0 %v946
        %1341 = vmatprep.subr.mxu0 %v951
        %1342 = vmatpush1.msra.mxu0 %v950
        %1343 = vmatprep.subr.mxu0 %v955
        %1344 = vmatpush1.msra.mxu0 %v954
        %1345 = vmatprep.subr.mxu0 %v959
        %1346 = vmatpush1.msra.mxu0 %v958
        %1347 = vmatprep.subr.mxu0 %v963
        %1348 = vmatpush1.msra.mxu0 %v962
        %1349 = vmatprep.subr.mxu0 %v967
        %1350 = vmatpush1.msra.mxu0 %v966
        %1351 = vmatprep.subr.mxu0 %v971
        %1352 = vmatpush1.msra.mxu0 %v970
        %1353 = vmatprep.subr.mxu0 %v975
        %1354 = vmatpush1.msra.mxu0 %v974
        %1355 = vmatprep.subr.mxu0 %v979
        %1356 = vmatpush1.msra.mxu0 %v978
        %1357 = vmatprep.subr.mxu0 %v983
        %1358 = vmatpush1.msra.mxu0 %v982
        %1359 = vmatprep.subr.mxu0 %v987
        %1360 = vmatpush1.msra.mxu0 %v986
        %1361 = vmatprep.subr.mxu0 %v991
        %1362 = vmatpush1.msra.mxu0 %v990
        %1363 = vmatprep.subr.mxu0 %v995
        %1364 = vmatpush1.msra.mxu0 %v994
        %1365 = vmatprep.subr.mxu0 %v999
        %1366 = vmatpush1.msra.mxu0 %v998
        %1367 = vmatprep.subr.mxu0 %v1003
        %1368 = vmatpush1.msra.mxu0 %v1002
        %1369 = vmatprep.subr.mxu0 %v1007
        %1370 = vmatpush1.msra.mxu0 %v1006
        %1371 = vmatprep.subr.mxu0 %v1011
        %1372 = vmatpush1.msra.mxu0 %v1010
        %1373 = vmatprep.subr.mxu0 %v1015
        %1374 = vmatpush1.msra.mxu0 %v1014
        %1375 = vmatprep.subr.mxu0 %v1019
        %1376 = vmatpush1.msra.mxu0 %v1018
        %1377 = vmatprep.subr.mxu0 %v1023
        %1378 = vmatpush1.msra.mxu0 %v1022
        %1379 = vmatprep.subr.mxu0 %v1027
        %1380 = vmatpush1.msra.mxu0 %v1026
        %1381 = vmatprep.mubr.f32.mxu0 %v759
        %1382 = vmatmul.mubr.f32.gmra.mrb[0].mxu0 %v758
        %v1383 = vpop.f32.mrb[0].mxu0
        %v1384 = vadd.f32 %v1295, %v1383
        %v1385 = vpop.f32.mrb[0].mxu0
        %v1386 = vadd.f32 %v1297, %v1385
        %1387 = vmatprep.mubr.f32.mxu0 %v763
        %1388 = vmatmul.mubr.f32.gmra.mrb[0].mxu0 %v762
        %v1389 = vpop.f32.mrb[0].mxu0
        %v1390 = vadd.f32 %v1301, %v1389
        %v1391 = vpop.f32.mrb[0].mxu0
        %v1392 = vadd.f32 %v1303, %v1391
        %1393 = vmatprep.mubr.f32.mxu0 %v767
        %1394 = vmatmul.mubr.f32.gmra.mrb[0].mxu0 %v766
        %v1395 = vpop.f32.mrb[0].mxu0
        %v1396 = vadd.f32 %v1307, %v1395
        %v1397 = vpop.f32.mrb[0].mxu0
        %v1398 = vadd.f32 %v1309, %v1397
        %1399 = vmatprep.mubr.f32.mxu0 %v771
        %1400 = vmatmul.mubr.f32.gmra.mrb[0].mxu0 %v770
        %v1401 = vpop.f32.mrb[0].mxu0
        %v1402 = vadd.f32 %v1313, %v1401
        %v1403 = vpop.f32.mrb[0].mxu0
        %v1404 = vadd.f32 %v1315, %v1403
        %1405 = vdwg.mxu0
        %v1406 = vmax.f32 %v1206, 0.0
        %v1407 = vmax.f32 %v1208, 0.0
        %v1408 = vmax.f32 %v1384, 0.0
        %v1409 = vmax.f32 %v1386, 0.0
        %v1410 = vmax.f32 %v1212, 0.0
        %v1411 = vmax.f32 %v1214, 0.0
        %v1412 = vmax.f32 %v1390, 0.0
        %v1413 = vmax.f32 %v1392, 0.0
        %v1414 = vmax.f32 %v1218, 0.0
        %v1415 = vmax.f32 %v1220, 0.0
        %v1416 = vmax.f32 %v1396, 0.0
        %v1417 = vmax.f32 %v1398, 0.0
        %v1418 = vmax.f32 %v1224, 0.0
        %v1419 = vmax.f32 %v1226, 0.0
        %v1420 = vmax.f32 %v1402, 0.0
        %v1421 = vmax.f32 %v1404, 0.0
        %1422 = vst [vmem:[%s740] sm:$0xff] %v1406
        %1423 = vst [vmem:[%s740 + $0x8] sm:$0xff] %v1407
        %1424 = vst [vmem:[%s740 + $0x10] sm:$0xff] %v1408
        %1425 = vst [vmem:[%s740 + $0x18] sm:$0xff] %v1409
        %1426 = vst [vmem:[%s740 + $0x20] sm:$0xff] %v1410
        %1427 = vst [vmem:[%s740 + $0x28] sm:$0xff] %v1411
        %1428 = vst [vmem:[%s740 + $0x30] sm:$0xff] %v1412
        %1429 = vst [vmem:[%s740 + $0x38] sm:$0xff] %v1413
        %1430 = vst [vmem:[%s740 + $0x40] sm:$0xff] %v1414
        %1431 = vst [vmem:[%s740 + $0x48] sm:$0xff] %v1415
        %1432 = vst [vmem:[%s740 + $0x50] sm:$0xff] %v1416
        %1433 = vst [vmem:[%s740 + $0x58] sm:$0xff] %v1417
        %1434 = vst [vmem:[%s740 + $0x60] sm:$0xff] %v1418
        %1435 = vst [vmem:[%s740 + $0x68] sm:$0xff] %v1419
        %1436 = vst [vmem:[%s740 + $0x70] sm:$0xff] %v1420
        %1437 = vst [vmem:[%s740 + $0x78] sm:$0xff] %v1421
        %s1438 = sand.u32 %s114, 1
        %s1439 = sand.u32 %s114, 1
        %s1440 = smul.addr %s1439, 128
        %s1441 = scalar_lea.vmem [#allocation3], %s1440
        // Predicated region
        $region56: #{_lambda_.6} parent=50 // pred_check
          %p1442 = pneg %p124
        $region57: #{_lambda_.6} parent=50 // pred_check_branch
          %1444 = sbr.rel (%p1442) target = $region59
        $region58: #{_lambda_.6} parent=50 // pred_region
          %s1445 = smul.u32 4, %s18
          %s1446 = smul.u32 4, %s19
          %s1447 = smul.addr %s1445, 8
          %s1448 = sadd.s32 %s1446, %s1447
          %s1449 = smul.addr %s1448, 8
          %s1450 = scalar_lea.vmem %s3, %s1449
          // Predicated region
          $region60: #{_lambda_.6} parent=58 // pred_check
            _
          $region61: #{_lambda_.6} parent=58 // pred_check_branch
            %1452 = sbr.rel (0) target = $region63
          $region62: #{_lambda_.6} parent=58 // pred_region
            // Predicated region
            $region64: #{_lambda_.6} parent=62 // pred_check
              _
            $region65: #{_lambda_.6} parent=62 // pred_check_branch
              %1454 = sbr.rel (0) target = $region67
            $region66: #{_lambda_.6} parent=62 // pred_region
              loop: start=0, step=1, limit=1
              $region68: #{_lambda_.6} parent=66 // loop_pre_header
                _
              $region69: #{_lambda_.6} parent=66 // loop_header
                %s1456 = sphi 0, %s1460
                %p1457 = scmp.ge.s32.totalorder %s1456, 1
                %s1461 = sphi %s1441, %s1441
                %s1462 = sphi %s1450, %s1450
              $region70: #{_lambda_.6} parent=66 // loop_header_branch
                %1459 = sbr.rel (%p1457) target = $region74
              $region71: #{_lambda_.6} parent=66 // loop_body
                %v1463 = vld [vmem:[%s1461] sm:$0xff]
                %1464 = vst [vmem:[%s1462] sm:$0xff] %v1463
                %v1465 = vld [vmem:[%s1461 + $0x8] sm:$0xff]
                %1466 = vst [vmem:[%s1462 + $0x8] sm:$0xff] %v1465
                %v1467 = vld [vmem:[%s1461 + $0x10] sm:$0xff]
                %1468 = vst [vmem:[%s1462 + $0x10] sm:$0xff] %v1467
                %v1469 = vld [vmem:[%s1461 + $0x18] sm:$0xff]
                %1470 = vst [vmem:[%s1462 + $0x18] sm:$0xff] %v1469
                %v1471 = vld [vmem:[%s1461 + $0x20] sm:$0xff]
                %1472 = vst [vmem:[%s1462 + $0x40] sm:$0xff] %v1471
                %v1473 = vld [vmem:[%s1461 + $0x28] sm:$0xff]
                %1474 = vst [vmem:[%s1462 + $0x48] sm:$0xff] %v1473
                %v1475 = vld [vmem:[%s1461 + $0x30] sm:$0xff]
                %1476 = vst [vmem:[%s1462 + $0x50] sm:$0xff] %v1475
                %v1477 = vld [vmem:[%s1461 + $0x38] sm:$0xff]
                %1478 = vst [vmem:[%s1462 + $0x58] sm:$0xff] %v1477
                %v1479 = vld [vmem:[%s1461 + $0x40] sm:$0xff]
                %1480 = vst [vmem:[%s1462 + $0x80] sm:$0xff] %v1479
                %v1481 = vld [vmem:[%s1461 + $0x48] sm:$0xff]
                %1482 = vst [vmem:[%s1462 + $0x88] sm:$0xff] %v1481
                %v1483 = vld [vmem:[%s1461 + $0x50] sm:$0xff]
                %1484 = vst [vmem:[%s1462 + $0x90] sm:$0xff] %v1483
                %v1485 = vld [vmem:[%s1461 + $0x58] sm:$0xff]
                %1486 = vst [vmem:[%s1462 + $0x98] sm:$0xff] %v1485
                %v1487 = vld [vmem:[%s1461 + $0x60] sm:$0xff]
                %1488 = vst [vmem:[%s1462 + $0xc0] sm:$0xff] %v1487
                %v1489 = vld [vmem:[%s1461 + $0x68] sm:$0xff]
                %1490 = vst [vmem:[%s1462 + $0xc8] sm:$0xff] %v1489
                %v1491 = vld [vmem:[%s1461 + $0x70] sm:$0xff]
                %1492 = vst [vmem:[%s1462 + $0xd0] sm:$0xff] %v1491
                %v1493 = vld [vmem:[%s1461 + $0x78] sm:$0xff]
                %1494 = vst [vmem:[%s1462 + $0xd8] sm:$0xff] %v1493
              $region72: #{_lambda_.6} parent=66 // loop_footer
                %s1460 = sadd.s32 1, %s1456
              $region73: #{_lambda_.6} parent=66 // loop_footer_branch
                %1455 = sbr.rel target = $region69
              $region74: #{_lambda_.6} parent=66 // loop_exit
                _
            $region67: #{_lambda_.6} parent=62 // pred_fallthru
              _
            // Predicated region
            $region75: #{_lambda_.6} parent=62 // pred_check
              _
            $region76: #{_lambda_.6} parent=62 // pred_check_branch
              %1496 = sbr.rel target = $region78
            $region77: #{_lambda_.6} parent=62 // pred_region
              _
            $region78: #{_lambda_.6} parent=62 // pred_fallthru
              _
          $region63: #{_lambda_.6} parent=58 // pred_fallthru
            _
          %1497 = vnop
        $region59: #{_lambda_.6} parent=50 // pred_fallthru
          _
      $region51: #{_lambda_.6} parent=5 // pred_fallthru
        _
      %p1498 = scmp.le.s32.totalorder 2, %s9
      // Predicated region
      $region79: #{_lambda_.6} parent=5 // pred_check
        %p1499 = pneg %p1498
      $region80: #{_lambda_.6} parent=5 // pred_check_branch
        %1501 = sbr.rel (%p1499) target = $region82
      $region81: #{_lambda_.6} parent=5 // pred_region
        %s1502 = ssub.s32 %s9, 2
        // Predicated region
        $region83: #{_lambda_.6} parent=81 // pred_check
          %p1503 = pneg %p130
        $region84: #{_lambda_.6} parent=81 // pred_check_branch
          %1505 = sbr.rel (%p1503) target = $region86
        $region85: #{_lambda_.6} parent=81 // pred_region
          %s1506 = sand.u32 %s115, 1
          %s1507 = sand.u32 %s115, 1
          %s1508 = smul.addr %s1507, 128
          %s1509 = scalar_lea.vmem [#allocation3], %s1508
        $region86: #{_lambda_.6} parent=81 // pred_fallthru
          _
      $region82: #{_lambda_.6} parent=5 // pred_fallthru
        _
    $region6: #{_lambda_.6} parent=1 // loop_footer
      %s13 = sadd.s32 1, %s9
    $region7: #{_lambda_.6} parent=1 // loop_footer_branch
      %8 = sbr.rel target = $region3
    $region8: #{_lambda_.6} parent=1 // loop_exit
      _

// kernel: _lambda_.7
$region0: #{_lambda_.7}
  #allocation0 [shape = 'u32[]', space=smem, size = 0x4, offset = 0x4, fixed_abs, tag = 'smem constant byte address 0x4 - core index']
  #allocation1 [shape = 'u32[144,128]{1,0:T(1,128)}', space=vmem, size = 0x12000, scoped, tag = 'internal scratch']
  %s0 = inlined_call_operand.vmem [shape: f32[128,256], index: 0, kind: input, shape index: {}]
  %s1 = inlined_call_operand.vmem [shape: f32[256,8], index: 1, kind: input, shape index: {}]
  %s2 = inlined_call_operand.vmem [shape: f32[1,8], index: 2, kind: input, shape index: {}]
  %s3 = inlined_call_operand.vmem [shape: f32[128,8], index: 3, kind: output, shape index: {}]
  %s4 = sld [smem:[#allocation0]]
  $region22: #{_lambda_.7} parent=0
    _
  %s6 = ssub.s32 1, %s4
  %s7 = scalar_select 0, %s6, %s4
  // Predicated region
  $region2: #{_lambda_.7} parent=0 // pred_check
    _
  $region3: #{_lambda_.7} parent=0 // pred_check_branch
    %9 = sbr.rel (0) target = $region5
  $region4: #{_lambda_.7} parent=0 // pred_region
    _
  $region5: #{_lambda_.7} parent=0 // pred_fallthru
    _
  // Predicated region
  $region6: #{_lambda_.7} parent=0 // pred_check
    _
  $region7: #{_lambda_.7} parent=0 // pred_check_branch
    %11 = sbr.rel (0) target = $region9
  $region8: #{_lambda_.7} parent=0 // pred_region
    _
  $region9: #{_lambda_.7} parent=0 // pred_fallthru
    _
  // Predicated region
  $region10: #{_lambda_.7} parent=0 // pred_check
    _
  $region11: #{_lambda_.7} parent=0 // pred_check_branch
    %13 = sbr.rel (0) target = $region13
  $region12: #{_lambda_.7} parent=0 // pred_region
    _
  $region13: #{_lambda_.7} parent=0 // pred_fallthru
    _
  %v14 = vld [vmem:[%s0] sm:$0xff]
  %v15 = vld [vmem:[%s0 + $0x8] sm:$0xff]
  %v16 = vld [vmem:[%s0 + $0x10] sm:$0xff]
  %v17 = vld [vmem:[%s0 + $0x18] sm:$0xff]
  %v18 = vld [vmem:[%s0 + $0x20] sm:$0xff]
  %v19 = vld [vmem:[%s0 + $0x28] sm:$0xff]
  %v20 = vld [vmem:[%s0 + $0x30] sm:$0xff]
  %v21 = vld [vmem:[%s0 + $0x38] sm:$0xff]
  %v22 = vld [vmem:[%s0 + $0x40] sm:$0xff]
  %v23 = vld [vmem:[%s0 + $0x48] sm:$0xff]
  %v24 = vld [vmem:[%s0 + $0x50] sm:$0xff]
  %v25 = vld [vmem:[%s0 + $0x58] sm:$0xff]
  %v26 = vld [vmem:[%s0 + $0x60] sm:$0xff]
  %v27 = vld [vmem:[%s0 + $0x68] sm:$0xff]
  %v28 = vld [vmem:[%s0 + $0x70] sm:$0xff]
  %v29 = vld [vmem:[%s0 + $0x78] sm:$0xff]
  %v30 = vld [vmem:[%s0 + $0x80] sm:$0xff]
  %v31 = vld [vmem:[%s0 + $0x88] sm:$0xff]
  %v32 = vld [vmem:[%s0 + $0x90] sm:$0xff]
  %v33 = vld [vmem:[%s0 + $0x98] sm:$0xff]
  %v34 = vld [vmem:[%s0 + $0xa0] sm:$0xff]
  %v35 = vld [vmem:[%s0 + $0xa8] sm:$0xff]
  %v36 = vld [vmem:[%s0 + $0xb0] sm:$0xff]
  %v37 = vld [vmem:[%s0 + $0xb8] sm:$0xff]
  %v38 = vld [vmem:[%s0 + $0xc0] sm:$0xff]
  %v39 = vld [vmem:[%s0 + $0xc8] sm:$0xff]
  %v40 = vld [vmem:[%s0 + $0xd0] sm:$0xff]
  %v41 = vld [vmem:[%s0 + $0xd8] sm:$0xff]
  %v42 = vld [vmem:[%s0 + $0xe0] sm:$0xff]
  %v43 = vld [vmem:[%s0 + $0xe8] sm:$0xff]
  %v44 = vld [vmem:[%s0 + $0xf0] sm:$0xff]
  %v45 = vld [vmem:[%s0 + $0xf8] sm:$0xff]
  %v46 = vld [vmem:[%s1] sm:$0xff]
  %v47 = vld [vmem:[%s1 + $0x8] sm:$0xff]
  %v48 = vld [vmem:[%s1 + $0x10] sm:$0xff]
  %v49 = vld [vmem:[%s1 + $0x18] sm:$0xff]
  %v50 = vld [vmem:[%s1 + $0x20] sm:$0xff]
  %v51 = vld [vmem:[%s1 + $0x28] sm:$0xff]
  %v52 = vld [vmem:[%s1 + $0x30] sm:$0xff]
  %v53 = vld [vmem:[%s1 + $0x38] sm:$0xff]
  %v54 = vld [vmem:[%s1 + $0x40] sm:$0xff]
  %v55 = vld [vmem:[%s1 + $0x48] sm:$0xff]
  %v56 = vld [vmem:[%s1 + $0x50] sm:$0xff]
  %v57 = vld [vmem:[%s1 + $0x58] sm:$0xff]
  %v58 = vld [vmem:[%s1 + $0x60] sm:$0xff]
  %v59 = vld [vmem:[%s1 + $0x68] sm:$0xff]
  %v60 = vld [vmem:[%s1 + $0x70] sm:$0xff]
  %v61 = vld [vmem:[%s1 + $0x78] sm:$0xff]
  %v62 = vld [vmem:[%s1 + $0x80] sm:$0xff]
  %v63 = vld [vmem:[%s1 + $0x88] sm:$0xff]
  %v64 = vld [vmem:[%s1 + $0x90] sm:$0xff]
  %v65 = vld [vmem:[%s1 + $0x98] sm:$0xff]
  %v66 = vld [vmem:[%s1 + $0xa0] sm:$0xff]
  %v67 = vld [vmem:[%s1 + $0xa8] sm:$0xff]
  %v68 = vld [vmem:[%s1 + $0xb0] sm:$0xff]
  %v69 = vld [vmem:[%s1 + $0xb8] sm:$0xff]
  %v70 = vld [vmem:[%s1 + $0xc0] sm:$0xff]
  %v71 = vld [vmem:[%s1 + $0xc8] sm:$0xff]
  %v72 = vld [vmem:[%s1 + $0xd0] sm:$0xff]
  %v73 = vld [vmem:[%s1 + $0xd8] sm:$0xff]
  %v74 = vld [vmem:[%s1 + $0xe0] sm:$0xff]
  %v75 = vld [vmem:[%s1 + $0xe8] sm:$0xff]
  %v76 = vld [vmem:[%s1 + $0xf0] sm:$0xff]
  %v77 = vld [vmem:[%s1 + $0xf8] sm:$0xff]
  %v78 = vld [vmem:[%s2] sm:$0x1]
  %v80 = vlaneseq
  %v81 = vshrl.u32 %v80, 7
  %v82 = vsub.s32 0, %v81
  %v83 = vrot.slane %v78, %v82
  %85 = vmatprep.subr.mxu0 0.0
  %86 = vmatpush1.msra.mxu0 %v46
  %87 = vmatprep.subr.mxu0 0.0
  %88 = vmatpush1.msra.mxu0 %v47
  %89 = vmatprep.subr.mxu0 0.0
  %90 = vmatpush1.msra.mxu0 %v48
  %91 = vmatprep.subr.mxu0 0.0
  %92 = vmatpush1.msra.mxu0 %v49
  %93 = vmatprep.subr.mxu0 0.0
  %94 = vmatpush1.msra.mxu0 %v50
  %95 = vmatprep.subr.mxu0 0.0
  %96 = vmatpush1.msra.mxu0 %v51
  %97 = vmatprep.subr.mxu0 0.0
  %98 = vmatpush1.msra.mxu0 %v52
  %99 = vmatprep.subr.mxu0 0.0
  %100 = vmatpush1.msra.mxu0 %v53
  %101 = vmatprep.subr.mxu0 0.0
  %102 = vmatpush1.msra.mxu0 %v54
  %103 = vmatprep.subr.mxu0 0.0
  %104 = vmatpush1.msra.mxu0 %v55
  %105 = vmatprep.subr.mxu0 0.0
  %106 = vmatpush1.msra.mxu0 %v56
  %107 = vmatprep.subr.mxu0 0.0
  %108 = vmatpush1.msra.mxu0 %v57
  %109 = vmatprep.subr.mxu0 0.0
  %110 = vmatpush1.msra.mxu0 %v58
  %111 = vmatprep.subr.mxu0 0.0
  %112 = vmatpush1.msra.mxu0 %v59
  %113 = vmatprep.subr.mxu0 0.0
  %114 = vmatpush1.msra.mxu0 %v60
  %115 = vmatprep.subr.mxu0 0.0
  %116 = vmatpush1.msra.mxu0 %v61
  %117 = vmatprep.subr.mxu0 0.0
  %118 = vmatpush1.msra.mxu0 %v62
  %119 = vmatprep.subr.mxu0 0.0
  %120 = vmatpush1.msra.mxu0 %v63
  %121 = vmatprep.subr.mxu0 0.0
  %122 = vmatpush1.msra.mxu0 %v64
  %123 = vmatprep.subr.mxu0 0.0
  %124 = vmatpush1.msra.mxu0 %v65
  %125 = vmatprep.subr.mxu0 0.0
  %126 = vmatpush1.msra.mxu0 %v66
  %127 = vmatprep.subr.mxu0 0.0
  %128 = vmatpush1.msra.mxu0 %v67
  %129 = vmatprep.subr.mxu0 0.0
  %130 = vmatpush1.msra.mxu0 %v68
  %131 = vmatprep.subr.mxu0 0.0
  %132 = vmatpush1.msra.mxu0 %v69
  %133 = vmatprep.subr.mxu0 0.0
  %134 = vmatpush1.msra.mxu0 %v70
  %135 = vmatprep.subr.mxu0 0.0
  %136 = vmatpush1.msra.mxu0 %v71
  %137 = vmatprep.subr.mxu0 0.0
  %138 = vmatpush1.msra.mxu0 %v72
  %139 = vmatprep.subr.mxu0 0.0
  %140 = vmatpush1.msra.mxu0 %v73
  %141 = vmatprep.subr.mxu0 0.0
  %142 = vmatpush1.msra.mxu0 %v74
  %143 = vmatprep.subr.mxu0 0.0
  %144 = vmatpush1.msra.mxu0 %v75
  %145 = vmatprep.subr.mxu0 0.0
  %146 = vmatpush1.msra.mxu0 %v76
  %147 = vmatprep.subr.mxu0 0.0
  %148 = vmatpush1.msra.mxu0 %v77
  %149 = vmatprep.mubr.f32.mxu0 %v15
  %150 = vmatmul.mubr.f32.gmra.mrb[0].mxu0 %v14
  %v151 = vpop.f32.mrb[0].mxu0
  %v152 = vadd.f32 %v83, %v151
  %v153 = vpop.f32.mrb[0].mxu0
  %154 = vmatprep.mubr.f32.mxu0 %v17
  %155 = vmatmul.mubr.f32.gmra.mrb[0].mxu0 %v16
  %v156 = vpop.f32.mrb[0].mxu0
  %v157 = vadd.f32 %v83, %v156
  %v158 = vpop.f32.mrb[0].mxu0
  %159 = vmatprep.mubr.f32.mxu0 %v19
  %160 = vmatmul.mubr.f32.gmra.mrb[0].mxu0 %v18
  %v161 = vpop.f32.mrb[0].mxu0
  %v162 = vadd.f32 %v83, %v161
  %v163 = vpop.f32.mrb[0].mxu0
  %164 = vmatprep.mubr.f32.mxu0 %v21
  %165 = vmatmul.mubr.f32.gmra.mrb[0].mxu0 %v20
  %v166 = vpop.f32.mrb[0].mxu0
  %v167 = vadd.f32 %v83, %v166
  %v168 = vpop.f32.mrb[0].mxu0
  %169 = vmatprep.mubr.f32.mxu0 %v23
  %170 = vmatmul.mubr.f32.gmra.mrb[0].mxu0 %v22
  %v171 = vpop.f32.mrb[0].mxu0
  %v172 = vadd.f32 %v83, %v171
  %v173 = vpop.f32.mrb[0].mxu0
  %174 = vmatprep.mubr.f32.mxu0 %v25
  %175 = vmatmul.mubr.f32.gmra.mrb[0].mxu0 %v24
  %v176 = vpop.f32.mrb[0].mxu0
  %v177 = vadd.f32 %v83, %v176
  %v178 = vpop.f32.mrb[0].mxu0
  %179 = vmatprep.mubr.f32.mxu0 %v27
  %180 = vmatmul.mubr.f32.gmra.mrb[0].mxu0 %v26
  %v181 = vpop.f32.mrb[0].mxu0
  %v182 = vadd.f32 %v83, %v181
  %v183 = vpop.f32.mrb[0].mxu0
  %184 = vmatprep.mubr.f32.mxu0 %v29
  %185 = vmatmul.mubr.f32.gmra.mrb[0].mxu0 %v28
  %v186 = vpop.f32.mrb[0].mxu0
  %v187 = vadd.f32 %v83, %v186
  %v188 = vpop.f32.mrb[0].mxu0
  %189 = vmatprep.mubr.f32.mxu0 %v31
  %190 = vmatmul.mubr.f32.gmra.mrb[0].mxu0 %v30
  %v191 = vpop.f32.mrb[0].mxu0
  %v192 = vadd.f32 %v83, %v191
  %v193 = vpop.f32.mrb[0].mxu0
  %194 = vmatprep.mubr.f32.mxu0 %v33
  %195 = vmatmul.mubr.f32.gmra.mrb[0].mxu0 %v32
  %v196 = vpop.f32.mrb[0].mxu0
  %v197 = vadd.f32 %v83, %v196
  %v198 = vpop.f32.mrb[0].mxu0
  %199 = vmatprep.mubr.f32.mxu0 %v35
  %200 = vmatmul.mubr.f32.gmra.mrb[0].mxu0 %v34
  %v201 = vpop.f32.mrb[0].mxu0
  %v202 = vadd.f32 %v83, %v201
  %v203 = vpop.f32.mrb[0].mxu0
  %204 = vmatprep.mubr.f32.mxu0 %v37
  %205 = vmatmul.mubr.f32.gmra.mrb[0].mxu0 %v36
  %v206 = vpop.f32.mrb[0].mxu0
  %v207 = vadd.f32 %v83, %v206
  %v208 = vpop.f32.mrb[0].mxu0
  %209 = vmatprep.mubr.f32.mxu0 %v39
  %210 = vmatmul.mubr.f32.gmra.mrb[0].mxu0 %v38
  %v211 = vpop.f32.mrb[0].mxu0
  %v212 = vadd.f32 %v83, %v211
  %v213 = vpop.f32.mrb[0].mxu0
  %214 = vmatprep.mubr.f32.mxu0 %v41
  %215 = vmatmul.mubr.f32.gmra.mrb[0].mxu0 %v40
  %v216 = vpop.f32.mrb[0].mxu0
  %v217 = vadd.f32 %v83, %v216
  %v218 = vpop.f32.mrb[0].mxu0
  %219 = vmatprep.mubr.f32.mxu0 %v43
  %220 = vmatmul.mubr.f32.gmra.mrb[0].mxu0 %v42
  %v221 = vpop.f32.mrb[0].mxu0
  %v222 = vadd.f32 %v83, %v221
  %v223 = vpop.f32.mrb[0].mxu0
  %224 = vmatprep.mubr.f32.mxu0 %v45
  %225 = vmatmul.mubr.f32.gmra.mrb[0].mxu0 %v44
  %v226 = vpop.f32.mrb[0].mxu0
  %v227 = vadd.f32 %v83, %v226
  %v228 = vpop.f32.mrb[0].mxu0
  %229 = vdwg.mxu0
  %vm230 = vcmask 64512
  %231 = vst.msk [vmem:[%s3] sm:$0xff] %vm230, %v152
  %232 = vst.msk [vmem:[%s3 + $0x8] sm:$0xff] %vm230, %v157
  %233 = vst.msk [vmem:[%s3 + $0x10] sm:$0xff] %vm230, %v162
  %234 = vst.msk [vmem:[%s3 + $0x18] sm:$0xff] %vm230, %v167
  %235 = vst.msk [vmem:[%s3 + $0x20] sm:$0xff] %vm230, %v172
  %236 = vst.msk [vmem:[%s3 + $0x28] sm:$0xff] %vm230, %v177
  %237 = vst.msk [vmem:[%s3 + $0x30] sm:$0xff] %vm230, %v182
  %238 = vst.msk [vmem:[%s3 + $0x38] sm:$0xff] %vm230, %v187
  %239 = vst.msk [vmem:[%s3 + $0x40] sm:$0xff] %vm230, %v192
  %240 = vst.msk [vmem:[%s3 + $0x48] sm:$0xff] %vm230, %v197
  %241 = vst.msk [vmem:[%s3 + $0x50] sm:$0xff] %vm230, %v202
  %242 = vst.msk [vmem:[%s3 + $0x58] sm:$0xff] %vm230, %v207
  %243 = vst.msk [vmem:[%s3 + $0x60] sm:$0xff] %vm230, %v212
  %244 = vst.msk [vmem:[%s3 + $0x68] sm:$0xff] %vm230, %v217
  %245 = vst.msk [vmem:[%s3 + $0x70] sm:$0xff] %vm230, %v222
  %246 = vst.msk [vmem:[%s3 + $0x78] sm:$0xff] %vm230, %v227
  // Predicated region
  $region14: #{_lambda_.7} parent=0 // pred_check
    _
  $region15: #{_lambda_.7} parent=0 // pred_check_branch
    %248 = sbr.rel (0) target = $region17
  $region16: #{_lambda_.7} parent=0 // pred_region
    _
  $region17: #{_lambda_.7} parent=0 // pred_fallthru
    _
  // Predicated region
  $region18: #{_lambda_.7} parent=0 // pred_check
    _
  $region19: #{_lambda_.7} parent=0 // pred_check_branch
    %250 = sbr.rel (0) target = $region21
  $region20: #{_lambda_.7} parent=0 // pred_region
    _
  $region21: #{_lambda_.7} parent=0 // pred_fallthru
    _

// kernel: _lambda_.8
$region0: #{_lambda_.8}
  #allocation0 [shape = 'u32[]', space=smem, size = 0x4, offset = 0x4, fixed_abs, tag = 'smem constant byte address 0x4 - core index']
  #allocation1 [shape = 'u32[144,128]{1,0:T(1,128)}', space=vmem, size = 0x12000, scoped, tag = 'internal scratch']
  %s0 = inlined_call_operand.vmem [shape: f32[32,8], index: 0, kind: input, shape index: {}]
  %s1 = inlined_call_operand.vmem [shape: f32[8,128], index: 1, kind: input, shape index: {}]
  %s2 = inlined_call_operand.vmem [shape: f32[32,128], index: 2, kind: output, shape index: {}]
  %s3 = sld [smem:[#allocation0]]
  $region18: #{_lambda_.8} parent=0
    _
  %s5 = ssub.s32 1, %s3
  %s6 = scalar_select 0, %s5, %s3
  // Predicated region
  $region2: #{_lambda_.8} parent=0 // pred_check
    _
  $region3: #{_lambda_.8} parent=0 // pred_check_branch
    %8 = sbr.rel (0) target = $region5
  $region4: #{_lambda_.8} parent=0 // pred_region
    _
  $region5: #{_lambda_.8} parent=0 // pred_fallthru
    _
  // Predicated region
  $region6: #{_lambda_.8} parent=0 // pred_check
    _
  $region7: #{_lambda_.8} parent=0 // pred_check_branch
    %10 = sbr.rel (0) target = $region9
  $region8: #{_lambda_.8} parent=0 // pred_region
    _
  $region9: #{_lambda_.8} parent=0 // pred_fallthru
    _
  %v11 = vld [vmem:[%s0] sm:$0xff]
  %v12 = vld [vmem:[%s0 + $0x8] sm:$0xff]
  %v13 = vld [vmem:[%s0 + $0x10] sm:$0xff]
  %v14 = vld [vmem:[%s0 + $0x18] sm:$0xff]
  %v15 = vld [vmem:[%s1] sm:$0xff]
  %vm16 = vcmask 64512
  %v18 = vsel %vm16, %v11, 0
  %v21 = vsel %vm16, %v12, 0
  %v24 = vsel %vm16, %v13, 0
  %v27 = vsel %vm16, %v14, 0
  %29 = vmatprep.subr.mxu0 0.0
  %30 = vmatpush1.msra.mxu0 %v15
  %31 = vmatprep.subr.mxu0 0.0
  %32 = vmatpush1.msra.mxu0 0.0
  %33 = vmatprep.subr.mxu0 0.0
  %34 = vmatpush1.msra.mxu0 0.0
  %35 = vmatprep.subr.mxu0 0.0
  %36 = vmatpush1.msra.mxu0 0.0
  %37 = vmatprep.subr.mxu0 0.0
  %38 = vmatpush1.msra.mxu0 0.0
  %39 = vmatprep.subr.mxu0 0.0
  %40 = vmatpush1.msra.mxu0 0.0
  %41 = vmatprep.subr.mxu0 0.0
  %42 = vmatpush1.msra.mxu0 0.0
  %43 = vmatprep.subr.mxu0 0.0
  %44 = vmatpush1.msra.mxu0 0.0
  %45 = vmatprep.subr.mxu0 0.0
  %46 = vmatpush1.msra.mxu0 0.0
  %47 = vmatprep.subr.mxu0 0.0
  %48 = vmatpush1.msra.mxu0 0.0
  %49 = vmatprep.subr.mxu0 0.0
  %50 = vmatpush1.msra.mxu0 0.0
  %51 = vmatprep.subr.mxu0 0.0
  %52 = vmatpush1.msra.mxu0 0.0
  %53 = vmatprep.subr.mxu0 0.0
  %54 = vmatpush1.msra.mxu0 0.0
  %55 = vmatprep.subr.mxu0 0.0
  %56 = vmatpush1.msra.mxu0 0.0
  %57 = vmatprep.subr.mxu0 0.0
  %58 = vmatpush1.msra.mxu0 0.0
  %59 = vmatprep.subr.mxu0 0.0
  %60 = vmatpush1.msra.mxu0 0.0
  %61 = vmatprep.subr.mxu0 0.0
  %62 = vmatpush1.msra.mxu0 0.0
  %63 = vmatprep.subr.mxu0 0.0
  %64 = vmatpush1.msra.mxu0 0.0
  %65 = vmatprep.subr.mxu0 0.0
  %66 = vmatpush1.msra.mxu0 0.0
  %67 = vmatprep.subr.mxu0 0.0
  %68 = vmatpush1.msra.mxu0 0.0
  %69 = vmatprep.subr.mxu0 0.0
  %70 = vmatpush1.msra.mxu0 0.0
  %71 = vmatprep.subr.mxu0 0.0
  %72 = vmatpush1.msra.mxu0 0.0
  %73 = vmatprep.subr.mxu0 0.0
  %74 = vmatpush1.msra.mxu0 0.0
  %75 = vmatprep.subr.mxu0 0.0
  %76 = vmatpush1.msra.mxu0 0.0
  %77 = vmatprep.subr.mxu0 0.0
  %78 = vmatpush1.msra.mxu0 0.0
  %79 = vmatprep.subr.mxu0 0.0
  %80 = vmatpush1.msra.mxu0 0.0
  %81 = vmatprep.subr.mxu0 0.0
  %82 = vmatpush1.msra.mxu0 0.0
  %83 = vmatprep.subr.mxu0 0.0
  %84 = vmatpush1.msra.mxu0 0.0
  %85 = vmatprep.subr.mxu0 0.0
  %86 = vmatpush1.msra.mxu0 0.0
  %87 = vmatprep.subr.mxu0 0.0
  %88 = vmatpush1.msra.mxu0 0.0
  %89 = vmatprep.subr.mxu0 0.0
  %90 = vmatpush1.msra.mxu0 0.0
  %91 = vmatprep.subr.mxu0 0.0
  %92 = vmatpush1.msra.mxu0 0.0
  %93 = vmatprep.mubr.f32.mxu0 0.0
  %94 = vmatmul.mubr.f32.gmra.mrb[0].mxu0 %v18
  %v95 = vpop.f32.mrb[0].mxu0
  %v96 = vadd.f32 0.0, %v95
  %v97 = vpop.f32.mrb[0].mxu0
  %98 = vmatprep.mubr.f32.mxu0 0.0
  %99 = vmatmul.mubr.f32.gmra.mrb[0].mxu0 %v21
  %v100 = vpop.f32.mrb[0].mxu0
  %v101 = vadd.f32 0.0, %v100
  %v102 = vpop.f32.mrb[0].mxu0
  %103 = vmatprep.mubr.f32.mxu0 0.0
  %104 = vmatmul.mubr.f32.gmra.mrb[0].mxu0 %v24
  %v105 = vpop.f32.mrb[0].mxu0
  %v106 = vadd.f32 0.0, %v105
  %v107 = vpop.f32.mrb[0].mxu0
  %108 = vmatprep.mubr.f32.mxu0 0.0
  %109 = vmatmul.mubr.f32.gmra.mrb[0].mxu0 %v27
  %v110 = vpop.f32.mrb[0].mxu0
  %v111 = vadd.f32 0.0, %v110
  %v112 = vpop.f32.mrb[0].mxu0
  %113 = vdwg.mxu0
  %114 = vst [vmem:[%s2] sm:$0xff] %v96
  %115 = vst [vmem:[%s2 + $0x8] sm:$0xff] %v101
  %116 = vst [vmem:[%s2 + $0x10] sm:$0xff] %v106
  %117 = vst [vmem:[%s2 + $0x18] sm:$0xff] %v111
  // Predicated region
  $region10: #{_lambda_.8} parent=0 // pred_check
    _
  $region11: #{_lambda_.8} parent=0 // pred_check_branch
    %119 = sbr.rel (0) target = $region13
  $region12: #{_lambda_.8} parent=0 // pred_region
    _
  $region13: #{_lambda_.8} parent=0 // pred_fallthru
    _
  // Predicated region
  $region14: #{_lambda_.8} parent=0 // pred_check
    _
  $region15: #{_lambda_.8} parent=0 // pred_check_branch
    %121 = sbr.rel (0) target = $region17
  $region16: #{_lambda_.8} parent=0 // pred_region
    _
  $region17: #{_lambda_.8} parent=0 // pred_fallthru
    _

// kernel: _lambda_.9
$region0: #{_lambda_.9}
  #allocation0 [shape = 'u32[]', space=smem, size = 0x4, offset = 0x4, fixed_abs, tag = 'smem constant byte address 0x4 - core index']
  #allocation1 [shape = 'u32[144,128]{1,0:T(1,128)}', space=vmem, size = 0x12000, scoped, tag = 'internal scratch']
  %s0 = inlined_call_operand.vmem [shape: f32[32,8], index: 0, kind: input, shape index: {}]
  %s1 = inlined_call_operand.vmem [shape: f32[8,512], index: 1, kind: input, shape index: {}]
  %s2 = inlined_call_operand.vmem [shape: f32[32,512], index: 2, kind: output, shape index: {}]
  %s3 = sld [smem:[#allocation0]]
  $region18: #{_lambda_.9} parent=0
    _
  %s5 = ssub.s32 1, %s3
  %s6 = scalar_select 0, %s5, %s3
  // Predicated region
  $region2: #{_lambda_.9} parent=0 // pred_check
    _
  $region3: #{_lambda_.9} parent=0 // pred_check_branch
    %8 = sbr.rel (0) target = $region5
  $region4: #{_lambda_.9} parent=0 // pred_region
    _
  $region5: #{_lambda_.9} parent=0 // pred_fallthru
    _
  // Predicated region
  $region6: #{_lambda_.9} parent=0 // pred_check
    _
  $region7: #{_lambda_.9} parent=0 // pred_check_branch
    %10 = sbr.rel (0) target = $region9
  $region8: #{_lambda_.9} parent=0 // pred_region
    _
  $region9: #{_lambda_.9} parent=0 // pred_fallthru
    _
  %v11 = vld [vmem:[%s0] sm:$0xff]
  %v12 = vld [vmem:[%s0 + $0x8] sm:$0xff]
  %v13 = vld [vmem:[%s0 + $0x10] sm:$0xff]
  %v14 = vld [vmem:[%s0 + $0x18] sm:$0xff]
  %v15 = vld [vmem:[%s1] sm:$0xff]
  %v16 = vld [vmem:[%s1 + $0x8] sm:$0xff]
  %v17 = vld [vmem:[%s1 + $0x10] sm:$0xff]
  %v18 = vld [vmem:[%s1 + $0x18] sm:$0xff]
  %vm19 = vcmask 64512
  %v21 = vsel %vm19, %v11, 0
  %v24 = vsel %vm19, %v12, 0
  %v27 = vsel %vm19, %v13, 0
  %v30 = vsel %vm19, %v14, 0
  %32 = vmatprep.subr.mxu0 %v16
  %33 = vmatpush1.msra.mxu0 %v15
  %34 = vmatprep.subr.mxu0 0.0
  %35 = vmatpush1.msra.mxu0 0.0
  %36 = vmatprep.subr.mxu0 0.0
  %37 = vmatpush1.msra.mxu0 0.0
  %38 = vmatprep.subr.mxu0 0.0
  %39 = vmatpush1.msra.mxu0 0.0
  %40 = vmatprep.subr.mxu0 0.0
  %41 = vmatpush1.msra.mxu0 0.0
  %42 = vmatprep.subr.mxu0 0.0
  %43 = vmatpush1.msra.mxu0 0.0
  %44 = vmatprep.subr.mxu0 0.0
  %45 = vmatpush1.msra.mxu0 0.0
  %46 = vmatprep.subr.mxu0 0.0
  %47 = vmatpush1.msra.mxu0 0.0
  %48 = vmatprep.subr.mxu0 0.0
  %49 = vmatpush1.msra.mxu0 0.0
  %50 = vmatprep.subr.mxu0 0.0
  %51 = vmatpush1.msra.mxu0 0.0
  %52 = vmatprep.subr.mxu0 0.0
  %53 = vmatpush1.msra.mxu0 0.0
  %54 = vmatprep.subr.mxu0 0.0
  %55 = vmatpush1.msra.mxu0 0.0
  %56 = vmatprep.subr.mxu0 0.0
  %57 = vmatpush1.msra.mxu0 0.0
  %58 = vmatprep.subr.mxu0 0.0
  %59 = vmatpush1.msra.mxu0 0.0
  %60 = vmatprep.subr.mxu0 0.0
  %61 = vmatpush1.msra.mxu0 0.0
  %62 = vmatprep.subr.mxu0 0.0
  %63 = vmatpush1.msra.mxu0 0.0
  %64 = vmatprep.subr.mxu0 0.0
  %65 = vmatpush1.msra.mxu0 0.0
  %66 = vmatprep.subr.mxu0 0.0
  %67 = vmatpush1.msra.mxu0 0.0
  %68 = vmatprep.subr.mxu0 0.0
  %69 = vmatpush1.msra.mxu0 0.0
  %70 = vmatprep.subr.mxu0 0.0
  %71 = vmatpush1.msra.mxu0 0.0
  %72 = vmatprep.subr.mxu0 0.0
  %73 = vmatpush1.msra.mxu0 0.0
  %74 = vmatprep.subr.mxu0 0.0
  %75 = vmatpush1.msra.mxu0 0.0
  %76 = vmatprep.subr.mxu0 0.0
  %77 = vmatpush1.msra.mxu0 0.0
  %78 = vmatprep.subr.mxu0 0.0
  %79 = vmatpush1.msra.mxu0 0.0
  %80 = vmatprep.subr.mxu0 0.0
  %81 = vmatpush1.msra.mxu0 0.0
  %82 = vmatprep.subr.mxu0 0.0
  %83 = vmatpush1.msra.mxu0 0.0
  %84 = vmatprep.subr.mxu0 0.0
  %85 = vmatpush1.msra.mxu0 0.0
  %86 = vmatprep.subr.mxu0 0.0
  %87 = vmatpush1.msra.mxu0 0.0
  %88 = vmatprep.subr.mxu0 0.0
  %89 = vmatpush1.msra.mxu0 0.0
  %90 = vmatprep.subr.mxu0 0.0
  %91 = vmatpush1.msra.mxu0 0.0
  %92 = vmatprep.subr.mxu0 0.0
  %93 = vmatpush1.msra.mxu0 0.0
  %94 = vmatprep.subr.mxu0 0.0
  %95 = vmatpush1.msra.mxu0 0.0
  %96 = vmatprep.mubr.f32.mxu0 0.0
  %97 = vmatmul.mubr.f32.gmra.mrb[0].mxu0 %v21
  %v98 = vpop.f32.mrb[0].mxu0
  %v99 = vadd.f32 0.0, %v98
  %v100 = vpop.f32.mrb[0].mxu0
  %v101 = vadd.f32 0.0, %v100
  %102 = vmatprep.mubr.f32.mxu0 0.0
  %103 = vmatmul.mubr.f32.gmra.mrb[0].mxu0 %v24
  %v104 = vpop.f32.mrb[0].mxu0
  %v105 = vadd.f32 0.0, %v104
  %v106 = vpop.f32.mrb[0].mxu0
  %v107 = vadd.f32 0.0, %v106
  %108 = vmatprep.mubr.f32.mxu0 0.0
  %109 = vmatmul.mubr.f32.gmra.mrb[0].mxu0 %v27
  %v110 = vpop.f32.mrb[0].mxu0
  %v111 = vadd.f32 0.0, %v110
  %v112 = vpop.f32.mrb[0].mxu0
  %v113 = vadd.f32 0.0, %v112
  %114 = vmatprep.mubr.f32.mxu0 0.0
  %115 = vmatmul.mubr.f32.gmra.mrb[0].mxu0 %v30
  %v116 = vpop.f32.mrb[0].mxu0
  %v117 = vadd.f32 0.0, %v116
  %v118 = vpop.f32.mrb[0].mxu0
  %v119 = vadd.f32 0.0, %v118
  %120 = vdwg.mxu0
  %121 = vmatprep.subr.mxu0 %v18
  %122 = vmatpush1.msra.mxu0 %v17
  %123 = vmatprep.subr.mxu0 0.0
  %124 = vmatpush1.msra.mxu0 0.0
  %125 = vmatprep.subr.mxu0 0.0
  %126 = vmatpush1.msra.mxu0 0.0
  %127 = vmatprep.subr.mxu0 0.0
  %128 = vmatpush1.msra.mxu0 0.0
  %129 = vmatprep.subr.mxu0 0.0
  %130 = vmatpush1.msra.mxu0 0.0
  %131 = vmatprep.subr.mxu0 0.0
  %132 = vmatpush1.msra.mxu0 0.0
  %133 = vmatprep.subr.mxu0 0.0
  %134 = vmatpush1.msra.mxu0 0.0
  %135 = vmatprep.subr.mxu0 0.0
  %136 = vmatpush1.msra.mxu0 0.0
  %137 = vmatprep.subr.mxu0 0.0
  %138 = vmatpush1.msra.mxu0 0.0
  %139 = vmatprep.subr.mxu0 0.0
  %140 = vmatpush1.msra.mxu0 0.0
  %141 = vmatprep.subr.mxu0 0.0
  %142 = vmatpush1.msra.mxu0 0.0
  %143 = vmatprep.subr.mxu0 0.0
  %144 = vmatpush1.msra.mxu0 0.0
  %145 = vmatprep.subr.mxu0 0.0
  %146 = vmatpush1.msra.mxu0 0.0
  %147 = vmatprep.subr.mxu0 0.0
  %148 = vmatpush1.msra.mxu0 0.0
  %149 = vmatprep.subr.mxu0 0.0
  %150 = vmatpush1.msra.mxu0 0.0
  %151 = vmatprep.subr.mxu0 0.0
  %152 = vmatpush1.msra.mxu0 0.0
  %153 = vmatprep.subr.mxu0 0.0
  %154 = vmatpush1.msra.mxu0 0.0
  %155 = vmatprep.subr.mxu0 0.0
  %156 = vmatpush1.msra.mxu0 0.0
  %157 = vmatprep.subr.mxu0 0.0
  %158 = vmatpush1.msra.mxu0 0.0
  %159 = vmatprep.subr.mxu0 0.0
  %160 = vmatpush1.msra.mxu0 0.0
  %161 = vmatprep.subr.mxu0 0.0
  %162 = vmatpush1.msra.mxu0 0.0
  %163 = vmatprep.subr.mxu0 0.0
  %164 = vmatpush1.msra.mxu0 0.0
  %165 = vmatprep.subr.mxu0 0.0
  %166 = vmatpush1.msra.mxu0 0.0
  %167 = vmatprep.subr.mxu0 0.0
  %168 = vmatpush1.msra.mxu0 0.0
  %169 = vmatprep.subr.mxu0 0.0
  %170 = vmatpush1.msra.mxu0 0.0
  %171 = vmatprep.subr.mxu0 0.0
  %172 = vmatpush1.msra.mxu0 0.0
  %173 = vmatprep.subr.mxu0 0.0
  %174 = vmatpush1.msra.mxu0 0.0
  %175 = vmatprep.subr.mxu0 0.0
  %176 = vmatpush1.msra.mxu0 0.0
  %177 = vmatprep.subr.mxu0 0.0
  %178 = vmatpush1.msra.mxu0 0.0
  %179 = vmatprep.subr.mxu0 0.0
  %180 = vmatpush1.msra.mxu0 0.0
  %181 = vmatprep.subr.mxu0 0.0
  %182 = vmatpush1.msra.mxu0 0.0
  %183 = vmatprep.subr.mxu0 0.0
  %184 = vmatpush1.msra.mxu0 0.0
  %185 = vmatprep.mubr.f32.mxu0 0.0
  %186 = vmatmul.mubr.f32.gmra.mrb[0].mxu0 %v21
  %v187 = vpop.f32.mrb[0].mxu0
  %v188 = vadd.f32 0.0, %v187
  %v189 = vpop.f32.mrb[0].mxu0
  %v190 = vadd.f32 0.0, %v189
  %191 = vmatprep.mubr.f32.mxu0 0.0
  %192 = vmatmul.mubr.f32.gmra.mrb[0].mxu0 %v24
  %v193 = vpop.f32.mrb[0].mxu0
  %v194 = vadd.f32 0.0, %v193
  %v195 = vpop.f32.mrb[0].mxu0
  %v196 = vadd.f32 0.0, %v195
  %197 = vmatprep.mubr.f32.mxu0 0.0
  %198 = vmatmul.mubr.f32.gmra.mrb[0].mxu0 %v27
  %v199 = vpop.f32.mrb[0].mxu0
  %v200 = vadd.f32 0.0, %v199
  %v201 = vpop.f32.mrb[0].mxu0
  %v202 = vadd.f32 0.0, %v201
  %203 = vmatprep.mubr.f32.mxu0 0.0
  %204 = vmatmul.mubr.f32.gmra.mrb[0].mxu0 %v30
  %v205 = vpop.f32.mrb[0].mxu0
  %v206 = vadd.f32 0.0, %v205
  %v207 = vpop.f32.mrb[0].mxu0
  %v208 = vadd.f32 0.0, %v207
  %209 = vdwg.mxu0
  %210 = vst [vmem:[%s2] sm:$0xff] %v99
  %211 = vst [vmem:[%s2 + $0x8] sm:$0xff] %v101
  %212 = vst [vmem:[%s2 + $0x10] sm:$0xff] %v188
  %213 = vst [vmem:[%s2 + $0x18] sm:$0xff] %v190
  %214 = vst [vmem:[%s2 + $0x20] sm:$0xff] %v105
  %215 = vst [vmem:[%s2 + $0x28] sm:$0xff] %v107
  %216 = vst [vmem:[%s2 + $0x30] sm:$0xff] %v194
  %217 = vst [vmem:[%s2 + $0x38] sm:$0xff] %v196
  %218 = vst [vmem:[%s2 + $0x40] sm:$0xff] %v111
  %219 = vst [vmem:[%s2 + $0x48] sm:$0xff] %v113
  %220 = vst [vmem:[%s2 + $0x50] sm:$0xff] %v200
  %221 = vst [vmem:[%s2 + $0x58] sm:$0xff] %v202
  %222 = vst [vmem:[%s2 + $0x60] sm:$0xff] %v117
  %223 = vst [vmem:[%s2 + $0x68] sm:$0xff] %v119
  %224 = vst [vmem:[%s2 + $0x70] sm:$0xff] %v206
  %225 = vst [vmem:[%s2 + $0x78] sm:$0xff] %v208
  // Predicated region
  $region10: #{_lambda_.9} parent=0 // pred_check
    _
  $region11: #{_lambda_.9} parent=0 // pred_check_branch
    %227 = sbr.rel (0) target = $region13
  $region12: #{_lambda_.9} parent=0 // pred_region
    _
  $region13: #{_lambda_.9} parent=0 // pred_fallthru
    _
  // Predicated region
  $region14: #{_lambda_.9} parent=0 // pred_check
    _
  $region15: #{_lambda_.9} parent=0 // pred_check_branch
    %229 = sbr.rel (0) target = $region17
  $region16: #{_lambda_.9} parent=0 // pred_region
    _
  $region17: #{_lambda_.9} parent=0 // pred_fallthru
    _

</llo_original>
